<compile_context>
chip_gen: v7x
topology: tpu7x:2x2x1
jax: 0.10.0
libtpu: 0.0.40
codegen_flags: <defaults>
</compile_context>

<pallas_src>
import functools

import jax
import jax.numpy as jnp
from jax.experimental import pallas as pl
from jax.experimental.pallas import tpu as pltpu


# ----------------------------------------------------------------------------
# Pallas kernels
# ----------------------------------------------------------------------------
def _matmul_shift_act_kernel(x_ref, w_ref, shift_ref, o_ref, *, act):
    """Fused conv tile: y = act(dot(w, x) + shift); lane axis = flattened pixels."""
    y = jnp.dot(w_ref[...], x_ref[...], preferred_element_type=jnp.float32)
    y = y + shift_ref[...]                       # (N, tm) + (N, 1)
    if act == "relu":
        y = jnp.maximum(y, 0.0)
    o_ref[...] = y.astype(o_ref.dtype)


def _pick_m_tile(m):
    if m >= 512 and m % 256 == 0:
        return 256
    if m % 128 == 0:
        return 128
    return m                                     # small M: single full block


def _fused_matmul(x2d, w, shift, act, out_dtype):
    """x2d: (K, M) bf16, w: (N, K) bf16, shift: (N, 1) f32 -> (N, M) out_dtype."""
    K, M = x2d.shape
    N = w.shape[0]
    tm = _pick_m_tile(M)
    kernel = functools.partial(_matmul_shift_act_kernel, act=act)
    return pl.pallas_call(
        kernel,
        out_shape=jax.ShapeDtypeStruct((N, M), out_dtype),
        grid_spec=pltpu.PrefetchScalarGridSpec(
            num_scalar_prefetch=0,
            grid=(M // tm,),
            in_specs=[
                pl.BlockSpec((K, tm), lambda i: (0, i)),   # activation tile
                pl.BlockSpec((N, K), lambda i: (0, 0)),    # weight (resident)
                pl.BlockSpec((N, 1), lambda i: (0, 0)),    # folded-BN shift
            ],
            out_specs=pl.BlockSpec((N, tm), lambda i: (0, i)),
        ),
        compiler_params=pltpu.CompilerParams(
            dimension_semantics=("parallel",),
            vmem_limit_bytes=32 * 1024 * 1024,
        ),
    )(x2d, w, shift)


def _sfam_fused_kernel(f_ref, w1_ref, b1_ref, w2_ref, b2_ref, o_ref, *, inv_hw):
    """Single-pass squeeze-excite: pool -> fc1 -> relu -> fc2 -> sigmoid -> scale."""
    f = f_ref[...].astype(jnp.float32)                         # (C, B, HW)
    pooled = jnp.sum(f, axis=2) * inv_hw                       # (C, B)
    h = jnp.dot(w1_ref[...], pooled,
                preferred_element_type=jnp.float32) + b1_ref[...]
    h = jnp.maximum(h, 0.0)
    s = jnp.dot(w2_ref[...], h,
                preferred_element_type=jnp.float32) + b2_ref[...]
    gate = 1.0 / (1.0 + jnp.exp(-s))                           # (C, B)
    o_ref[...] = (f * gate[:, :, None]).astype(o_ref.dtype)


def _sfam_gate_kernel(f_ref, w1_ref, b1_ref, w2_ref, b2_ref, s_ref, acc_ref,
                      *, inv_hw):
    """Fallback tiled squeeze: accumulate global-avg-pool, then fc1->relu->fc2->sigmoid."""
    i = pl.program_id(0)

    @pl.when(i == 0)
    def _():
        acc_ref[...] = jnp.zeros_like(acc_ref)

    acc_ref[...] += jnp.sum(f_ref[...].astype(jnp.float32), axis=2)   # (C, B)

    @pl.when(i == pl.num_programs(0) - 1)
    def _():
        pooled = acc_ref[...] * inv_hw                                 # (C, B)
        h = jnp.dot(w1_ref[...], pooled,
                    preferred_element_type=jnp.float32) + b1_ref[...]
        h = jnp.maximum(h, 0.0)
        s = jnp.dot(w2_ref[...], h,
                    preferred_element_type=jnp.float32) + b2_ref[...]
        s_ref[...] = 1.0 / (1.0 + jnp.exp(-s))                         # sigmoid


def _sfam_scale_kernel(f_ref, s_ref, o_ref):
    """Fallback excite: feature tile * per-(channel,batch) gate."""
    o_ref[...] = (f_ref[...].astype(jnp.float32) *
                  s_ref[...][:, :, None]).astype(o_ref.dtype)


_SFAM_FUSE_BYTES = 4 * 1024 * 1024   # keep fused path well under VMEM limits


def _sfam_apply(f, p):
    """f: (C, B, H, W) bf16 -> (C, B, H, W) f32, gated by squeeze-excite."""
    C, B, H, W = f.shape
    HW = H * W
    f3 = f.reshape(C, B, HW)
    inv_hw = 1.0 / HW
    cmid = p["w1"].shape[0]

    if C * B * HW * (f3.dtype.itemsize + 4) <= _SFAM_FUSE_BYTES:
        # Fully fused single-block path (pool + gate + rescale in one kernel).
        out = pl.pallas_call(
            functools.partial(_sfam_fused_kernel, inv_hw=inv_hw),
            out_shape=jax.ShapeDtypeStruct((C, B, HW), jnp.float32),
            grid_spec=pltpu.PrefetchScalarGridSpec(
                num_scalar_prefetch=0,
                grid=(1,),
                in_specs=[
                    pl.BlockSpec((C, B, HW), lambda i: (0, 0, 0)),
                    pl.BlockSpec((cmid, C), lambda i: (0, 0)),
                    pl.BlockSpec((cmid, 1), lambda i: (0, 0)),
                    pl.BlockSpec((C, cmid), lambda i: (0, 0)),
                    pl.BlockSpec((C, 1), lambda i: (0, 0)),
                ],
                out_specs=pl.BlockSpec((C, B, HW), lambda i: (0, 0, 0)),
            ),
            compiler_params=pltpu.CompilerParams(
                dimension_semantics=("arbitrary",),
                vmem_limit_bytes=32 * 1024 * 1024,
            ),
        )(f3, p["w1"], p["b1"], p["w2"], p["b2"])
        return out.reshape(C, B, H, W)

    # Fallback: gridded two-pass squeeze-excite for large spatial extents.
    thw = 128 if HW % 128 == 0 else HW
    grid = (HW // thw,)
    gate = pl.pallas_call(
        functools.partial(_sfam_gate_kernel, inv_hw=inv_hw),
        out_shape=jax.ShapeDtypeStruct((C, B), jnp.float32),
        grid_spec=pltpu.PrefetchScalarGridSpec(
            num_scalar_prefetch=0,
            grid=grid,
            in_specs=[
                pl.BlockSpec((C, B, thw), lambda i: (0, 0, i)),
                pl.BlockSpec((cmid, C), lambda i: (0, 0)),
                pl.BlockSpec((cmid, 1), lambda i: (0, 0)),
                pl.BlockSpec((C, cmid), lambda i: (0, 0)),
                pl.BlockSpec((C, 1), lambda i: (0, 0)),
            ],
            out_specs=pl.BlockSpec((C, B), lambda i: (0, 0)),
            scratch_shapes=[pltpu.VMEM((C, B), jnp.float32)],
        ),
        compiler_params=pltpu.CompilerParams(
            dimension_semantics=("arbitrary",)),
    )(f3, p["w1"], p["b1"], p["w2"], p["b2"])

    out = pl.pallas_call(
        _sfam_scale_kernel,
        out_shape=jax.ShapeDtypeStruct((C, B, HW), jnp.float32),
        grid_spec=pltpu.PrefetchScalarGridSpec(
            num_scalar_prefetch=0,
            grid=grid,
            in_specs=[
                pl.BlockSpec((C, B, thw), lambda i: (0, 0, i)),
                pl.BlockSpec((C, B), lambda i: (0, 0)),
            ],
            out_specs=pl.BlockSpec((C, B, thw), lambda i: (0, 0, i)),
        ),
        compiler_params=pltpu.CompilerParams(
            dimension_semantics=("parallel",)),
    )(f3, gate)
    return out.reshape(C, B, H, W)


# ----------------------------------------------------------------------------
# JAX glue: im2col (channels-first), nearest upsample, conv wrapper
# ----------------------------------------------------------------------------
def _im2col_3x3_cf(x, stride):
    """x: (C, B, H, W) -> (9*C, B, Ho, Wo); k-order = (kh, kw, cin-fastest)."""
    C, B, H, W = x.shape
    xp = jnp.pad(x, ((0, 0), (0, 0), (1, 1), (1, 1)))
    Ho = (H + 2 - 3) // stride + 1
    Wo = (W + 2 - 3) // stride + 1
    cols = []
    for dh in range(3):
        for dw in range(3):
            cols.append(xp[:, :, dh:dh + stride * (Ho - 1) + 1:stride,
                              dw:dw + stride * (Wo - 1) + 1:stride])
    return jnp.concatenate(cols, axis=0), Ho, Wo


def _nearest_upsample(x, out_h, out_w):
    C, B, H, W = x.shape
    fh, fw = out_h // H, out_w // W
    assert fh * H == out_h and fw * W == out_w
    return jnp.repeat(jnp.repeat(x, fh, axis=2), fw, axis=3)


def _conv_apply(x, p, stride=1, act="relu", out_dtype=jnp.bfloat16):
    """x: (Cin, B, H, W) -> (Cout, B, Ho, Wo)."""
    C, B, H, W = x.shape
    if p["k"] == 1:
        cols, Ho, Wo = x, H, W
    else:
        cols, Ho, Wo = _im2col_3x3_cf(x, stride)
    Kc = cols.shape[0]
    x2d = cols.reshape(Kc, B * Ho * Wo).astype(jnp.bfloat16)
    Kp = p["w"].shape[1]
    if Kp != Kc:                                  # K alignment padding (27->32)
        x2d = jnp.pad(x2d, ((0, Kp - Kc), (0, 0)))
    y = _fused_matmul(x2d, p["w"], p["shift"], act, out_dtype)
    return y.reshape(-1, B, Ho, Wo)


# ----------------------------------------------------------------------------
# Parameter construction (xavier_normal_ conv weights, fresh BatchNorm stats,
# zero biases).  BN scale is folded into the weights; K is padded to mult of 8.
# ----------------------------------------------------------------------------
def _round8(n):
    return ((n + 7) // 8) * 8


def _xavier_normal(key, cout, cin, k):
    fan_in, fan_out = cin * k * k, cout * k * k
    std = (2.0 / (fan_in + fan_out)) ** 0.5
    return jax.random.normal(key, (cout, cin, k, k), jnp.float32) * std


def _fold_conv(w_oihw, scale, shift):
    O, C, kh, kw = w_oihw.shape
    if kh == 1:
        w2d = w_oihw.reshape(O, C)
    else:  # k-order (kh, kw, cin) to match _im2col_3x3_cf
        w2d = jnp.transpose(w_oihw, (0, 2, 3, 1)).reshape(O, kh * kw * C)
    w2d = w2d * scale[:, None]                    # fold BN scale into weights
    K = w2d.shape[1]
    Kp = _round8(K)
    if Kp != K:
        w2d = jnp.pad(w2d, ((0, 0), (0, Kp - K)))
    return {"w": w2d.astype(jnp.bfloat16),
            "shift": shift.reshape(-1, 1).astype(jnp.float32),
            "k": kh}


def _make_conv_bn(key, cin, cout, k):
    """conv.Conv2dBn: Conv2d(no bias) + BatchNorm2d(default stats) + ReLU."""
    w = _xavier_normal(key, cout, cin, k)
    eps = 1e-5
    gamma, beta = jnp.ones((cout,)), jnp.zeros((cout,))
    mean, var = jnp.zeros((cout,)), jnp.ones((cout,))
    scale = gamma / jnp.sqrt(var + eps)
    shift = beta - mean * scale
    return _fold_conv(w, scale, shift)


def _make_conv_bias(key, cin, cout, k):
    """Plain Conv2d + bias (bias zero-initialised)."""
    w = _xavier_normal(key, cout, cin, k)
    return _fold_conv(w, jnp.ones((cout,)), jnp.zeros((cout,)))


def _combine_1x1(pa, pb):
    """Row-stack two 1x1 conv params sharing the same (padded) K into one matmul."""
    assert pa["k"] == 1 and pb["k"] == 1
    assert pa["w"].shape[1] == pb["w"].shape[1]
    return {"w": jnp.concatenate([pa["w"], pb["w"]], axis=0),
            "shift": jnp.concatenate([pa["shift"], pb["shift"]], axis=0),
            "k": 1,
            "split": pa["w"].shape[0]}


def _make_tum(keys, in_ch, inner_ch, out_ch, num_scales):
    down, up, smooth = [], [], []
    for i in range(num_scales):
        if i > 0:
            down.append(_make_conv_bn(next(keys), in_ch if i == 1 else inner_ch,
                                      inner_ch, 3))
            up.append(_make_conv_bn(next(keys), inner_ch,
                                    in_ch if i == 1 else inner_ch, 1))
        smooth.append(_make_conv_bn(next(keys), in_ch if i == 0 else inner_ch,
                                    out_ch, 1))
    # Fuse the (up, smooth) pair that reads the same up-path activation:
    # step j uses up[num_scales-2-j] and smooth[num_scales-1-j].
    fused = [_combine_1x1(up[num_scales - 2 - j], smooth[num_scales - 1 - j])
             for j in range(num_scales - 1)]
    return {"down": down, "fused": fused, "smooth_first": smooth[0]}


def build_params(num_scales=3, num_tums=2, base_channels=(8, 16),
                 base_reduced_channels=(8, 16), reduced_channels=16,
                 tum_inner=16, tum_out=8, sfam_reduction=4):
    keys = iter(jax.random.split(jax.random.PRNGKey(0), 64))
    params = {}

    # synthetic backbone: [Conv3x3(3->c1,s1), ReLU, Conv3x3(c1->c2,s2), ReLU]
    # out_layers = [1, 3]  (i.e. after each ReLU)
    params["base"] = [_make_conv_bias(next(keys), 3, base_channels[0], 3),
                      _make_conv_bias(next(keys), base_channels[0],
                                      base_channels[1], 3)]

    params["base_reducers"] = [
        _make_conv_bn(next(keys), cin, cout, 1)
        for cin, cout in zip(base_channels, base_reduced_channels)]

    in0 = sum(base_reduced_channels)
    params["tums"] = [_make_tum(keys, in0, tum_inner, tum_out, num_scales)]
    params["reducers"] = []
    for _ in range(1, num_tums):
        params["tums"].append(
            _make_tum(keys, reduced_channels + tum_out, tum_inner, tum_out,
                      num_scales))
        params["reducers"].append(_make_conv_bn(next(keys), in0,
                                                reduced_channels, 1))

    sfam_ch = tum_out * num_tums
    sfam_mid = sfam_ch // sfam_reduction
    params["sfam"] = []
    for _ in range(num_scales):
        w1 = _xavier_normal(next(keys), sfam_mid, sfam_ch, 1)
        w2 = _xavier_normal(next(keys), sfam_ch, sfam_mid, 1)
        params["sfam"].append({
            "w1": w1.reshape(sfam_mid, sfam_ch),             # (Cmid, C)
            "b1": jnp.zeros((sfam_mid, 1), jnp.float32),
            "w2": w2.reshape(sfam_ch, sfam_mid),             # (C, Cmid)
            "b2": jnp.zeros((sfam_ch, 1), jnp.float32),
        })
    return params


# ----------------------------------------------------------------------------
# Forward passes (channels-first: (C, B, H, W))
# ----------------------------------------------------------------------------
def _base_forward(x, bp):
    """get_multiple_outputs over the synthetic backbone, out_layers=[1, 3]."""
    sources = []
    x = _conv_apply(x, bp[0], stride=1, act="relu")
    sources.append(x)
    x = _conv_apply(x, bp[1], stride=2, act="relu")
    sources.append(x)
    return sources, x


def _tum_forward(x, p):
    """ThinnedUshapeModule with fused (up-conv + smooth-conv) matmuls."""
    down_path = [x]
    for dp in p["down"]:
        x = _conv_apply(x, dp, stride=2, act="relu")
        down_path.append(x)
    num = len(p["down"]) + 1               # num_scales
    outs = []
    cur = down_path[-1]
    for j in range(num - 1):
        fp = p["fused"][j]
        y = _conv_apply(cur, fp, stride=1, act="relu")   # (Nup+Nsm, B, H, W)
        n_up = fp["split"]
        y_up, y_sm = y[:n_up], y[n_up:]
        outs.append(y_sm)                                # smooth output (coarse->fine)
        down_x = down_path[num - 2 - j]
        cur = _nearest_upsample(y_up, down_x.shape[2], down_x.shape[3]) + down_x
    outs.append(_conv_apply(cur, p["smooth_first"], stride=1, act="relu"))
    return outs                                          # coarsest first


def mfp_forward(x_nchw, params):
    x = jnp.transpose(x_nchw, (1, 0, 2, 3))          # NCHW -> (C, B, H, W)

    sources, _ = _base_forward(x, params["base"])
    base_reduced = [_conv_apply(s, rp, stride=1, act="relu")
                    for rp, s in zip(params["base_reducers"], sources)]
    H0, W0 = base_reduced[0].shape[2:4]
    upscaled = [base_reduced[0]] + [_nearest_upsample(f, H0, W0)
                                    for f in base_reduced[1:]]
    base_features = jnp.concatenate(upscaled, axis=0)

    feats = _tum_forward(base_features, params["tums"][0])
    feats = [[f] for f in feats]
    for tum_p, red_p in zip(params["tums"][1:], params["reducers"]):
        x_in = feats[-1][-1]
        reduced = _conv_apply(base_features, red_p, stride=1, act="relu")
        x_in = jnp.concatenate([x_in, reduced], axis=0)
        for i, f in enumerate(_tum_forward(x_in, tum_p)):
            feats[i].append(f)

    feats = [jnp.concatenate(fs, axis=0) for fs in reversed(feats)]
    feats = [_sfam_apply(f, sp) for f, sp in zip(feats, params["sfam"])]
    feats = [jnp.transpose(f, (1, 0, 2, 3)) for f in feats]   # -> NCHW
    return feats, feats[-1]


# ----------------------------------------------------------------------------
if __name__ == "__main__":
    params = build_params()
    x = jax.random.normal(jax.random.fold_in(jax.random.PRNGKey(0), 999),
                          (2, 3, 16, 16), jnp.float32)   # NCHW input

    fwd = jax.jit(lambda inp: mfp_forward(inp, params))
    feats, last = fwd(x)
    for f in feats:
        jax.block_until_ready(f)
    jax.block_until_ready(last)

    # sanity: 3 scales (finest first), channels = tum_out(8) * num_tums(2) = 16
    assert feats[0].shape == (2, 16, 16, 16)
    assert feats[1].shape == (2, 16, 8, 8)
    assert feats[2].shape == (2, 16, 4, 4)
    assert last.shape == (2, 16, 4, 4)
    assert all(jnp.isfinite(f).all() for f in feats)
    print("KERNEL_OK")
</pallas_src>

<mosaic_0001>
module attributes {stable_mosaic.version = 11 : i64} {
  func.func @_matmul_shift_act_kernel(%arg0: i32, %arg1: memref<32x256xbf16, #tpu.memory_space<vmem>>, %arg2: memref<8x32xbf16, #tpu.memory_space<vmem>>, %arg3: memref<8x1xf32, #tpu.memory_space<vmem>>, %arg4: memref<8x256xbf16, #tpu.memory_space<vmem>>) attributes {dimension_semantics = [#tpu.dimension_semantics<parallel>], iteration_bounds = array<i64: 2>, scalar_prefetch = 0 : i64, scratch_operands = 0 : i64, tpu.core_type = #tpu.core_type<tc>, window_params = [{transform_indices = @transform_0, window_bounds = array<i64: 32, 256>}, {pipeline_mode = #tpu.pipeline_mode<synchronous>, transform_indices = @transform_1, window_bounds = array<i64: 8, 32>}, {pipeline_mode = #tpu.pipeline_mode<synchronous>, transform_indices = @transform_2, window_bounds = array<i64: 8, 1>}, {transform_indices = @transform_3, window_bounds = array<i64: 8, 256>}]} {
    %c0 = arith.constant 0 : index
    %c0_0 = arith.constant 0 : index
    %0 = vector.load %arg2[%c0, %c0_0] : memref<8x32xbf16, #tpu.memory_space<vmem>>, vector<8x32xbf16>
    %c0_1 = arith.constant 0 : index
    %c0_2 = arith.constant 0 : index
    %1 = vector.load %arg1[%c0_1, %c0_2] : memref<32x256xbf16, #tpu.memory_space<vmem>>, vector<32x256xbf16>
    %cst = arith.constant dense<0.000000e+00> : vector<8x256xf32>
    %2 = tpu.matmul %0, %1, %cst {dimension_numbers = #tpu.dot_dimension_numbers<[1], [0], [0], [1], [0, 0, 1, 1], [], []>} : vector<8x32xbf16>, vector<32x256xbf16>, vector<8x256xf32> -> vector<8x256xf32>
    %c0_3 = arith.constant 0 : index
    %c0_4 = arith.constant 0 : index
    %3 = vector.load %arg3[%c0_3, %c0_4] : memref<8x1xf32, #tpu.memory_space<vmem>>, vector<8x1xf32>
    %4 = vector.broadcast %3 : vector<8x1xf32> to vector<8x256xf32>
    %5 = arith.addf %2, %4 : vector<8x256xf32>
    %cst_5 = arith.constant 0.000000e+00 : f32
    %6 = vector.broadcast %cst_5 : f32 to vector<8x256xf32>
    %7 = arith.maximumf %5, %6 : vector<8x256xf32>
    %8 = arith.truncf %7 : vector<8x256xf32> to vector<8x256xbf16>
    %c0_6 = arith.constant 0 : index
    %c0_7 = arith.constant 0 : index
    %9 = vector.load %arg4[%c0_6, %c0_7] : memref<8x256xbf16, #tpu.memory_space<vmem>>, vector<8x256xbf16>
    tpu.vector_store %arg4[%c0_6, %c0_7], %8 {strides = array<i32>} : memref<8x256xbf16, #tpu.memory_space<vmem>>, vector<8x256xbf16>,
    return
  }
  func.func @transform_0(%arg0: i32) -> (i32, i32) {
    %c0_i32 = arith.constant 0 : i32
    %c0_i32_0 = arith.constant 0 : i32
    return %c0_i32, %arg0 : i32, i32
  }
  func.func @transform_1(%arg0: i32) -> (i32, i32) {
    %c0_i32 = arith.constant 0 : i32
    %c0_i32_0 = arith.constant 0 : i32
    %c0_i32_1 = arith.constant 0 : i32
    return %c0_i32, %c0_i32_0 : i32, i32
  }
  func.func @transform_2(%arg0: i32) -> (i32, i32) {
    %c0_i32 = arith.constant 0 : i32
    %c0_i32_0 = arith.constant 0 : i32
    %c0_i32_1 = arith.constant 0 : i32
    return %c0_i32, %c0_i32_0 : i32, i32
  }
  func.func @transform_3(%arg0: i32) -> (i32, i32) {
    %c0_i32 = arith.constant 0 : i32
    %c0_i32_0 = arith.constant 0 : i32
    return %c0_i32, %arg0 : i32, i32
  }
}

module attributes {stable_mosaic.version = 11 : i64} {
  func.func @_matmul_shift_act_kernel(%arg0: i32, %arg1: memref<72x128xbf16, #tpu.memory_space<vmem>>, %arg2: memref<16x72xbf16, #tpu.memory_space<vmem>>, %arg3: memref<16x1xf32, #tpu.memory_space<vmem>>, %arg4: memref<16x128xbf16, #tpu.memory_space<vmem>>) attributes {dimension_semantics = [#tpu.dimension_semantics<parallel>], iteration_bounds = array<i64: 1>, scalar_prefetch = 0 : i64, scratch_operands = 0 : i64, tpu.core_type = #tpu.core_type<tc>, window_params = [{transform_indices = @transform_0, window_bounds = array<i64: 72, 128>}, {pipeline_mode = #tpu.pipeline_mode<synchronous>, transform_indices = @transform_1, window_bounds = array<i64: 16, 72>}, {pipeline_mode = #tpu.pipeline_mode<synchronous>, transform_indices = @transform_2, window_bounds = array<i64: 16, 1>}, {transform_indices = @transform_3, window_bounds = array<i64: 16, 128>}]} {
    %c0 = arith.constant 0 : index
    %c0_0 = arith.constant 0 : index
    %0 = vector.load %arg2[%c0, %c0_0] : memref<16x72xbf16, #tpu.memory_space<vmem>>, vector<16x72xbf16>
    %c0_1 = arith.constant 0 : index
    %c0_2 = arith.constant 0 : index
    %1 = vector.load %arg1[%c0_1, %c0_2] : memref<72x128xbf16, #tpu.memory_space<vmem>>, vector<72x128xbf16>
    %cst = arith.constant dense<0.000000e+00> : vector<16x128xf32>
    %2 = tpu.matmul %0, %1, %cst {dimension_numbers = #tpu.dot_dimension_numbers<[1], [0], [0], [1], [0, 0, 1, 1], [], []>} : vector<16x72xbf16>, vector<72x128xbf16>, vector<16x128xf32> -> vector<16x128xf32>
    %c0_3 = arith.constant 0 : index
    %c0_4 = arith.constant 0 : index
    %3 = vector.load %arg3[%c0_3, %c0_4] : memref<16x1xf32, #tpu.memory_space<vmem>>, vector<16x1xf32>
    %4 = vector.broadcast %3 : vector<16x1xf32> to vector<16x128xf32>
    %5 = arith.addf %2, %4 : vector<16x128xf32>
    %cst_5 = arith.constant 0.000000e+00 : f32
    %6 = vector.broadcast %cst_5 : f32 to vector<16x128xf32>
    %7 = arith.maximumf %5, %6 : vector<16x128xf32>
    %8 = arith.truncf %7 : vector<16x128xf32> to vector<16x128xbf16>
    %c0_6 = arith.constant 0 : index
    %c0_7 = arith.constant 0 : index
    %9 = vector.load %arg4[%c0_6, %c0_7] : memref<16x128xbf16, #tpu.memory_space<vmem>>, vector<16x128xbf16>
    tpu.vector_store %arg4[%c0_6, %c0_7], %8 {strides = array<i32>} : memref<16x128xbf16, #tpu.memory_space<vmem>>, vector<16x128xbf16>,
    return
  }
  func.func @transform_0(%arg0: i32) -> (i32, i32) {
    %c0_i32 = arith.constant 0 : i32
    %c0_i32_0 = arith.constant 0 : i32
    return %c0_i32, %arg0 : i32, i32
  }
  func.func @transform_1(%arg0: i32) -> (i32, i32) {
    %c0_i32 = arith.constant 0 : i32
    %c0_i32_0 = arith.constant 0 : i32
    %c0_i32_1 = arith.constant 0 : i32
    return %c0_i32, %c0_i32_0 : i32, i32
  }
  func.func @transform_2(%arg0: i32) -> (i32, i32) {
    %c0_i32 = arith.constant 0 : i32
    %c0_i32_0 = arith.constant 0 : i32
    %c0_i32_1 = arith.constant 0 : i32
    return %c0_i32, %c0_i32_0 : i32, i32
  }
  func.func @transform_3(%arg0: i32) -> (i32, i32) {
    %c0_i32 = arith.constant 0 : i32
    %c0_i32_0 = arith.constant 0 : i32
    return %c0_i32, %arg0 : i32, i32
  }
}

module attributes {stable_mosaic.version = 11 : i64} {
  func.func @_matmul_shift_act_kernel(%arg0: i32, %arg1: memref<16x128xbf16, #tpu.memory_space<vmem>>, %arg2: memref<16x16xbf16, #tpu.memory_space<vmem>>, %arg3: memref<16x1xf32, #tpu.memory_space<vmem>>, %arg4: memref<16x128xbf16, #tpu.memory_space<vmem>>) attributes {dimension_semantics = [#tpu.dimension_semantics<parallel>], iteration_bounds = array<i64: 1>, scalar_prefetch = 0 : i64, scratch_operands = 0 : i64, tpu.core_type = #tpu.core_type<tc>, window_params = [{transform_indices = @transform_0, window_bounds = array<i64: 16, 128>}, {pipeline_mode = #tpu.pipeline_mode<synchronous>, transform_indices = @transform_1, window_bounds = array<i64: 16, 16>}, {pipeline_mode = #tpu.pipeline_mode<synchronous>, transform_indices = @transform_2, window_bounds = array<i64: 16, 1>}, {transform_indices = @transform_3, window_bounds = array<i64: 16, 128>}]} {
    %c0 = arith.constant 0 : index
    %c0_0 = arith.constant 0 : index
    %0 = vector.load %arg2[%c0, %c0_0] : memref<16x16xbf16, #tpu.memory_space<vmem>>, vector<16x16xbf16>
    %c0_1 = arith.constant 0 : index
    %c0_2 = arith.constant 0 : index
    %1 = vector.load %arg1[%c0_1, %c0_2] : memref<16x128xbf16, #tpu.memory_space<vmem>>, vector<16x128xbf16>
    %cst = arith.constant dense<0.000000e+00> : vector<16x128xf32>
    %2 = tpu.matmul %0, %1, %cst {dimension_numbers = #tpu.dot_dimension_numbers<[1], [0], [0], [1], [0, 0, 1, 1], [], []>} : vector<16x16xbf16>, vector<16x128xbf16>, vector<16x128xf32> -> vector<16x128xf32>
    %c0_3 = arith.constant 0 : index
    %c0_4 = arith.constant 0 : index
    %3 = vector.load %arg3[%c0_3, %c0_4] : memref<16x1xf32, #tpu.memory_space<vmem>>, vector<16x1xf32>
    %4 = vector.broadcast %3 : vector<16x1xf32> to vector<16x128xf32>
    %5 = arith.addf %2, %4 : vector<16x128xf32>
    %cst_5 = arith.constant 0.000000e+00 : f32
    %6 = vector.broadcast %cst_5 : f32 to vector<16x128xf32>
    %7 = arith.maximumf %5, %6 : vector<16x128xf32>
    %8 = arith.truncf %7 : vector<16x128xf32> to vector<16x128xbf16>
    %c0_6 = arith.constant 0 : index
    %c0_7 = arith.constant 0 : index
    %9 = vector.load %arg4[%c0_6, %c0_7] : memref<16x128xbf16, #tpu.memory_space<vmem>>, vector<16x128xbf16>
    tpu.vector_store %arg4[%c0_6, %c0_7], %8 {strides = array<i32>} : memref<16x128xbf16, #tpu.memory_space<vmem>>, vector<16x128xbf16>,
    return
  }
  func.func @transform_0(%arg0: i32) -> (i32, i32) {
    %c0_i32 = arith.constant 0 : i32
    %c0_i32_0 = arith.constant 0 : i32
    return %c0_i32, %arg0 : i32, i32
  }
  func.func @transform_1(%arg0: i32) -> (i32, i32) {
    %c0_i32 = arith.constant 0 : i32
    %c0_i32_0 = arith.constant 0 : i32
    %c0_i32_1 = arith.constant 0 : i32
    return %c0_i32, %c0_i32_0 : i32, i32
  }
  func.func @transform_2(%arg0: i32) -> (i32, i32) {
    %c0_i32 = arith.constant 0 : i32
    %c0_i32_0 = arith.constant 0 : i32
    %c0_i32_1 = arith.constant 0 : i32
    return %c0_i32, %c0_i32_0 : i32, i32
  }
  func.func @transform_3(%arg0: i32) -> (i32, i32) {
    %c0_i32 = arith.constant 0 : i32
    %c0_i32_0 = arith.constant 0 : i32
    return %c0_i32, %arg0 : i32, i32
  }
}

module attributes {stable_mosaic.version = 11 : i64} {
  func.func @_matmul_shift_act_kernel(%arg0: i32, %arg1: memref<8x256xbf16, #tpu.memory_space<vmem>>, %arg2: memref<8x8xbf16, #tpu.memory_space<vmem>>, %arg3: memref<8x1xf32, #tpu.memory_space<vmem>>, %arg4: memref<8x256xbf16, #tpu.memory_space<vmem>>) attributes {dimension_semantics = [#tpu.dimension_semantics<parallel>], iteration_bounds = array<i64: 2>, scalar_prefetch = 0 : i64, scratch_operands = 0 : i64, tpu.core_type = #tpu.core_type<tc>, window_params = [{transform_indices = @transform_0, window_bounds = array<i64: 8, 256>}, {pipeline_mode = #tpu.pipeline_mode<synchronous>, transform_indices = @transform_1, window_bounds = array<i64: 8, 8>}, {pipeline_mode = #tpu.pipeline_mode<synchronous>, transform_indices = @transform_2, window_bounds = array<i64: 8, 1>}, {transform_indices = @transform_3, window_bounds = array<i64: 8, 256>}]} {
    %c0 = arith.constant 0 : index
    %c0_0 = arith.constant 0 : index
    %0 = vector.load %arg2[%c0, %c0_0] : memref<8x8xbf16, #tpu.memory_space<vmem>>, vector<8x8xbf16>
    %c0_1 = arith.constant 0 : index
    %c0_2 = arith.constant 0 : index
    %1 = vector.load %arg1[%c0_1, %c0_2] : memref<8x256xbf16, #tpu.memory_space<vmem>>, vector<8x256xbf16>
    %cst = arith.constant dense<0.000000e+00> : vector<8x256xf32>
    %2 = tpu.matmul %0, %1, %cst {dimension_numbers = #tpu.dot_dimension_numbers<[1], [0], [0], [1], [0, 0, 1, 1], [], []>} : vector<8x8xbf16>, vector<8x256xbf16>, vector<8x256xf32> -> vector<8x256xf32>
    %c0_3 = arith.constant 0 : index
    %c0_4 = arith.constant 0 : index
    %3 = vector.load %arg3[%c0_3, %c0_4] : memref<8x1xf32, #tpu.memory_space<vmem>>, vector<8x1xf32>
    %4 = vector.broadcast %3 : vector<8x1xf32> to vector<8x256xf32>
    %5 = arith.addf %2, %4 : vector<8x256xf32>
    %cst_5 = arith.constant 0.000000e+00 : f32
    %6 = vector.broadcast %cst_5 : f32 to vector<8x256xf32>
    %7 = arith.maximumf %5, %6 : vector<8x256xf32>
    %8 = arith.truncf %7 : vector<8x256xf32> to vector<8x256xbf16>
    %c0_6 = arith.constant 0 : index
    %c0_7 = arith.constant 0 : index
    %9 = vector.load %arg4[%c0_6, %c0_7] : memref<8x256xbf16, #tpu.memory_space<vmem>>, vector<8x256xbf16>
    tpu.vector_store %arg4[%c0_6, %c0_7], %8 {strides = array<i32>} : memref<8x256xbf16, #tpu.memory_space<vmem>>, vector<8x256xbf16>,
    return
  }
  func.func @transform_0(%arg0: i32) -> (i32, i32) {
    %c0_i32 = arith.constant 0 : i32
    %c0_i32_0 = arith.constant 0 : i32
    return %c0_i32, %arg0 : i32, i32
  }
  func.func @transform_1(%arg0: i32) -> (i32, i32) {
    %c0_i32 = arith.constant 0 : i32
    %c0_i32_0 = arith.constant 0 : i32
    %c0_i32_1 = arith.constant 0 : i32
    return %c0_i32, %c0_i32_0 : i32, i32
  }
  func.func @transform_2(%arg0: i32) -> (i32, i32) {
    %c0_i32 = arith.constant 0 : i32
    %c0_i32_0 = arith.constant 0 : i32
    %c0_i32_1 = arith.constant 0 : i32
    return %c0_i32, %c0_i32_0 : i32, i32
  }
  func.func @transform_3(%arg0: i32) -> (i32, i32) {
    %c0_i32 = arith.constant 0 : i32
    %c0_i32_0 = arith.constant 0 : i32
    return %c0_i32, %arg0 : i32, i32
  }
}

module attributes {stable_mosaic.version = 11 : i64} {
  func.func @_matmul_shift_act_kernel(%arg0: i32, %arg1: memref<216x128xbf16, #tpu.memory_space<vmem>>, %arg2: memref<16x216xbf16, #tpu.memory_space<vmem>>, %arg3: memref<16x1xf32, #tpu.memory_space<vmem>>, %arg4: memref<16x128xbf16, #tpu.memory_space<vmem>>) attributes {dimension_semantics = [#tpu.dimension_semantics<parallel>], iteration_bounds = array<i64: 1>, scalar_prefetch = 0 : i64, scratch_operands = 0 : i64, tpu.core_type = #tpu.core_type<tc>, window_params = [{transform_indices = @transform_0, window_bounds = array<i64: 216, 128>}, {pipeline_mode = #tpu.pipeline_mode<synchronous>, transform_indices = @transform_1, window_bounds = array<i64: 16, 216>}, {pipeline_mode = #tpu.pipeline_mode<synchronous>, transform_indices = @transform_2, window_bounds = array<i64: 16, 1>}, {transform_indices = @transform_3, window_bounds = array<i64: 16, 128>}]} {
    %c0 = arith.constant 0 : index
    %c0_0 = arith.constant 0 : index
    %0 = vector.load %arg2[%c0, %c0_0] : memref<16x216xbf16, #tpu.memory_space<vmem>>, vector<16x216xbf16>
    %c0_1 = arith.constant 0 : index
    %c0_2 = arith.constant 0 : index
    %1 = vector.load %arg1[%c0_1, %c0_2] : memref<216x128xbf16, #tpu.memory_space<vmem>>, vector<216x128xbf16>
    %cst = arith.constant dense<0.000000e+00> : vector<16x128xf32>
    %2 = tpu.matmul %0, %1, %cst {dimension_numbers = #tpu.dot_dimension_numbers<[1], [0], [0], [1], [0, 0, 1, 1], [], []>} : vector<16x216xbf16>, vector<216x128xbf16>, vector<16x128xf32> -> vector<16x128xf32>
    %c0_3 = arith.constant 0 : index
    %c0_4 = arith.constant 0 : index
    %3 = vector.load %arg3[%c0_3, %c0_4] : memref<16x1xf32, #tpu.memory_space<vmem>>, vector<16x1xf32>
    %4 = vector.broadcast %3 : vector<16x1xf32> to vector<16x128xf32>
    %5 = arith.addf %2, %4 : vector<16x128xf32>
    %cst_5 = arith.constant 0.000000e+00 : f32
    %6 = vector.broadcast %cst_5 : f32 to vector<16x128xf32>
    %7 = arith.maximumf %5, %6 : vector<16x128xf32>
    %8 = arith.truncf %7 : vector<16x128xf32> to vector<16x128xbf16>
    %c0_6 = arith.constant 0 : index
    %c0_7 = arith.constant 0 : index
    %9 = vector.load %arg4[%c0_6, %c0_7] : memref<16x128xbf16, #tpu.memory_space<vmem>>, vector<16x128xbf16>
    tpu.vector_store %arg4[%c0_6, %c0_7], %8 {strides = array<i32>} : memref<16x128xbf16, #tpu.memory_space<vmem>>, vector<16x128xbf16>,
    return
  }
  func.func @transform_0(%arg0: i32) -> (i32, i32) {
    %c0_i32 = arith.constant 0 : i32
    %c0_i32_0 = arith.constant 0 : i32
    return %c0_i32, %arg0 : i32, i32
  }
  func.func @transform_1(%arg0: i32) -> (i32, i32) {
    %c0_i32 = arith.constant 0 : i32
    %c0_i32_0 = arith.constant 0 : i32
    %c0_i32_1 = arith.constant 0 : i32
    return %c0_i32, %c0_i32_0 : i32, i32
  }
  func.func @transform_2(%arg0: i32) -> (i32, i32) {
    %c0_i32 = arith.constant 0 : i32
    %c0_i32_0 = arith.constant 0 : i32
    %c0_i32_1 = arith.constant 0 : i32
    return %c0_i32, %c0_i32_0 : i32, i32
  }
  func.func @transform_3(%arg0: i32) -> (i32, i32) {
    %c0_i32 = arith.constant 0 : i32
    %c0_i32_0 = arith.constant 0 : i32
    return %c0_i32, %arg0 : i32, i32
  }
}

module attributes {stable_mosaic.version = 11 : i64} {
  func.func @_matmul_shift_act_kernel(%arg0: i32, %arg1: memref<16x32xbf16, #tpu.memory_space<vmem>>, %arg2: memref<24x16xbf16, #tpu.memory_space<vmem>>, %arg3: memref<24x1xf32, #tpu.memory_space<vmem>>, %arg4: memref<24x32xbf16, #tpu.memory_space<vmem>>) attributes {dimension_semantics = [#tpu.dimension_semantics<parallel>], iteration_bounds = array<i64: 1>, scalar_prefetch = 0 : i64, scratch_operands = 0 : i64, tpu.core_type = #tpu.core_type<tc>, window_params = [{transform_indices = @transform_0, window_bounds = array<i64: 16, 32>}, {pipeline_mode = #tpu.pipeline_mode<synchronous>, transform_indices = @transform_1, window_bounds = array<i64: 24, 16>}, {pipeline_mode = #tpu.pipeline_mode<synchronous>, transform_indices = @transform_2, window_bounds = array<i64: 24, 1>}, {transform_indices = @transform_3, window_bounds = array<i64: 24, 32>}]} {
    %c0 = arith.constant 0 : index
    %c0_0 = arith.constant 0 : index
    %0 = vector.load %arg2[%c0, %c0_0] : memref<24x16xbf16, #tpu.memory_space<vmem>>, vector<24x16xbf16>
    %c0_1 = arith.constant 0 : index
    %c0_2 = arith.constant 0 : index
    %1 = vector.load %arg1[%c0_1, %c0_2] : memref<16x32xbf16, #tpu.memory_space<vmem>>, vector<16x32xbf16>
    %cst = arith.constant dense<0.000000e+00> : vector<24x32xf32>
    %2 = tpu.matmul %0, %1, %cst {dimension_numbers = #tpu.dot_dimension_numbers<[1], [0], [0], [1], [0, 0, 1, 1], [], []>} : vector<24x16xbf16>, vector<16x32xbf16>, vector<24x32xf32> -> vector<24x32xf32>
    %c0_3 = arith.constant 0 : index
    %c0_4 = arith.constant 0 : index
    %3 = vector.load %arg3[%c0_3, %c0_4] : memref<24x1xf32, #tpu.memory_space<vmem>>, vector<24x1xf32>
    %4 = vector.broadcast %3 : vector<24x1xf32> to vector<24x32xf32>
    %5 = arith.addf %2, %4 : vector<24x32xf32>
    %cst_5 = arith.constant 0.000000e+00 : f32
    %6 = vector.broadcast %cst_5 : f32 to vector<24x32xf32>
    %7 = arith.maximumf %5, %6 : vector<24x32xf32>
    %8 = arith.truncf %7 : vector<24x32xf32> to vector<24x32xbf16>
    %c0_6 = arith.constant 0 : index
    %c0_7 = arith.constant 0 : index
    %9 = vector.load %arg4[%c0_6, %c0_7] : memref<24x32xbf16, #tpu.memory_space<vmem>>, vector<24x32xbf16>
    tpu.vector_store %arg4[%c0_6, %c0_7], %8 {strides = array<i32>} : memref<24x32xbf16, #tpu.memory_space<vmem>>, vector<24x32xbf16>,
    return
  }
  func.func @transform_0(%arg0: i32) -> (i32, i32) {
    %c0_i32 = arith.constant 0 : i32
    %c0_i32_0 = arith.constant 0 : i32
    return %c0_i32, %arg0 : i32, i32
  }
  func.func @transform_1(%arg0: i32) -> (i32, i32) {
    %c0_i32 = arith.constant 0 : i32
    %c0_i32_0 = arith.constant 0 : i32
    %c0_i32_1 = arith.constant 0 : i32
    return %c0_i32, %c0_i32_0 : i32, i32
  }
  func.func @transform_2(%arg0: i32) -> (i32, i32) {
    %c0_i32 = arith.constant 0 : i32
    %c0_i32_0 = arith.constant 0 : i32
    %c0_i32_1 = arith.constant 0 : i32
    return %c0_i32, %c0_i32_0 : i32, i32
  }
  func.func @transform_3(%arg0: i32) -> (i32, i32) {
    %c0_i32 = arith.constant 0 : i32
    %c0_i32_0 = arith.constant 0 : i32
    return %c0_i32, %arg0 : i32, i32
  }
}

module attributes {stable_mosaic.version = 11 : i64} {
  func.func @_matmul_shift_act_kernel(%arg0: i32, %arg1: memref<144x32xbf16, #tpu.memory_space<vmem>>, %arg2: memref<16x144xbf16, #tpu.memory_space<vmem>>, %arg3: memref<16x1xf32, #tpu.memory_space<vmem>>, %arg4: memref<16x32xbf16, #tpu.memory_space<vmem>>) attributes {dimension_semantics = [#tpu.dimension_semantics<parallel>], iteration_bounds = array<i64: 1>, scalar_prefetch = 0 : i64, scratch_operands = 0 : i64, tpu.core_type = #tpu.core_type<tc>, window_params = [{transform_indices = @transform_0, window_bounds = array<i64: 144, 32>}, {pipeline_mode = #tpu.pipeline_mode<synchronous>, transform_indices = @transform_1, window_bounds = array<i64: 16, 144>}, {pipeline_mode = #tpu.pipeline_mode<synchronous>, transform_indices = @transform_2, window_bounds = array<i64: 16, 1>}, {transform_indices = @transform_3, window_bounds = array<i64: 16, 32>}]} {
    %c0 = arith.constant 0 : index
    %c0_0 = arith.constant 0 : index
    %0 = vector.load %arg2[%c0, %c0_0] : memref<16x144xbf16, #tpu.memory_space<vmem>>, vector<16x144xbf16>
    %c0_1 = arith.constant 0 : index
    %c0_2 = arith.constant 0 : index
    %1 = vector.load %arg1[%c0_1, %c0_2] : memref<144x32xbf16, #tpu.memory_space<vmem>>, vector<144x32xbf16>
    %cst = arith.constant dense<0.000000e+00> : vector<16x32xf32>
    %2 = tpu.matmul %0, %1, %cst {dimension_numbers = #tpu.dot_dimension_numbers<[1], [0], [0], [1], [0, 0, 1, 1], [], []>} : vector<16x144xbf16>, vector<144x32xbf16>, vector<16x32xf32> -> vector<16x32xf32>
    %c0_3 = arith.constant 0 : index
    %c0_4 = arith.constant 0 : index
    %3 = vector.load %arg3[%c0_3, %c0_4] : memref<16x1xf32, #tpu.memory_space<vmem>>, vector<16x1xf32>
    %4 = vector.broadcast %3 : vector<16x1xf32> to vector<16x32xf32>
    %5 = arith.addf %2, %4 : vector<16x32xf32>
    %cst_5 = arith.constant 0.000000e+00 : f32
    %6 = vector.broadcast %cst_5 : f32 to vector<16x32xf32>
    %7 = arith.maximumf %5, %6 : vector<16x32xf32>
    %8 = arith.truncf %7 : vector<16x32xf32> to vector<16x32xbf16>
    %c0_6 = arith.constant 0 : index
    %c0_7 = arith.constant 0 : index
    %9 = vector.load %arg4[%c0_6, %c0_7] : memref<16x32xbf16, #tpu.memory_space<vmem>>, vector<16x32xbf16>
    tpu.vector_store %arg4[%c0_6, %c0_7], %8 {strides = array<i32>} : memref<16x32xbf16, #tpu.memory_space<vmem>>, vector<16x32xbf16>,
    return
  }
  func.func @transform_0(%arg0: i32) -> (i32, i32) {
    %c0_i32 = arith.constant 0 : i32
    %c0_i32_0 = arith.constant 0 : i32
    return %c0_i32, %arg0 : i32, i32
  }
  func.func @transform_1(%arg0: i32) -> (i32, i32) {
    %c0_i32 = arith.constant 0 : i32
    %c0_i32_0 = arith.constant 0 : i32
    %c0_i32_1 = arith.constant 0 : i32
    return %c0_i32, %c0_i32_0 : i32, i32
  }
  func.func @transform_2(%arg0: i32) -> (i32, i32) {
    %c0_i32 = arith.constant 0 : i32
    %c0_i32_0 = arith.constant 0 : i32
    %c0_i32_1 = arith.constant 0 : i32
    return %c0_i32, %c0_i32_0 : i32, i32
  }
  func.func @transform_3(%arg0: i32) -> (i32, i32) {
    %c0_i32 = arith.constant 0 : i32
    %c0_i32_0 = arith.constant 0 : i32
    return %c0_i32, %arg0 : i32, i32
  }
}

module attributes {stable_mosaic.version = 11 : i64} {
  func.func @_matmul_shift_act_kernel(%arg0: i32, %arg1: memref<16x128xbf16, #tpu.memory_space<vmem>>, %arg2: memref<32x16xbf16, #tpu.memory_space<vmem>>, %arg3: memref<32x1xf32, #tpu.memory_space<vmem>>, %arg4: memref<32x128xbf16, #tpu.memory_space<vmem>>) attributes {dimension_semantics = [#tpu.dimension_semantics<parallel>], iteration_bounds = array<i64: 1>, scalar_prefetch = 0 : i64, scratch_operands = 0 : i64, tpu.core_type = #tpu.core_type<tc>, window_params = [{transform_indices = @transform_0, window_bounds = array<i64: 16, 128>}, {pipeline_mode = #tpu.pipeline_mode<synchronous>, transform_indices = @transform_1, window_bounds = array<i64: 32, 16>}, {pipeline_mode = #tpu.pipeline_mode<synchronous>, transform_indices = @transform_2, window_bounds = array<i64: 32, 1>}, {transform_indices = @transform_3, window_bounds = array<i64: 32, 128>}]} {
    %c0 = arith.constant 0 : index
    %c0_0 = arith.constant 0 : index
    %0 = vector.load %arg2[%c0, %c0_0] : memref<32x16xbf16, #tpu.memory_space<vmem>>, vector<32x16xbf16>
    %c0_1 = arith.constant 0 : index
    %c0_2 = arith.constant 0 : index
    %1 = vector.load %arg1[%c0_1, %c0_2] : memref<16x128xbf16, #tpu.memory_space<vmem>>, vector<16x128xbf16>
    %cst = arith.constant dense<0.000000e+00> : vector<32x128xf32>
    %2 = tpu.matmul %0, %1, %cst {dimension_numbers = #tpu.dot_dimension_numbers<[1], [0], [0], [1], [0, 0, 1, 1], [], []>} : vector<32x16xbf16>, vector<16x128xbf16>, vector<32x128xf32> -> vector<32x128xf32>
    %c0_3 = arith.constant 0 : index
    %c0_4 = arith.constant 0 : index
    %3 = vector.load %arg3[%c0_3, %c0_4] : memref<32x1xf32, #tpu.memory_space<vmem>>, vector<32x1xf32>
    %4 = vector.broadcast %3 : vector<32x1xf32> to vector<32x128xf32>
    %5 = arith.addf %2, %4 : vector<32x128xf32>
    %cst_5 = arith.constant 0.000000e+00 : f32
    %6 = vector.broadcast %cst_5 : f32 to vector<32x128xf32>
    %7 = arith.maximumf %5, %6 : vector<32x128xf32>
    %8 = arith.truncf %7 : vector<32x128xf32> to vector<32x128xbf16>
    %c0_6 = arith.constant 0 : index
    %c0_7 = arith.constant 0 : index
    %9 = vector.load %arg4[%c0_6, %c0_7] : memref<32x128xbf16, #tpu.memory_space<vmem>>, vector<32x128xbf16>
    tpu.vector_store %arg4[%c0_6, %c0_7], %8 {strides = array<i32>} : memref<32x128xbf16, #tpu.memory_space<vmem>>, vector<32x128xbf16>,
    return
  }
  func.func @transform_0(%arg0: i32) -> (i32, i32) {
    %c0_i32 = arith.constant 0 : i32
    %c0_i32_0 = arith.constant 0 : i32
    return %c0_i32, %arg0 : i32, i32
  }
  func.func @transform_1(%arg0: i32) -> (i32, i32) {
    %c0_i32 = arith.constant 0 : i32
    %c0_i32_0 = arith.constant 0 : i32
    %c0_i32_1 = arith.constant 0 : i32
    return %c0_i32, %c0_i32_0 : i32, i32
  }
  func.func @transform_2(%arg0: i32) -> (i32, i32) {
    %c0_i32 = arith.constant 0 : i32
    %c0_i32_0 = arith.constant 0 : i32
    %c0_i32_1 = arith.constant 0 : i32
    return %c0_i32, %c0_i32_0 : i32, i32
  }
  func.func @transform_3(%arg0: i32) -> (i32, i32) {
    %c0_i32 = arith.constant 0 : i32
    %c0_i32_0 = arith.constant 0 : i32
    return %c0_i32, %arg0 : i32, i32
  }
}

module attributes {stable_mosaic.version = 11 : i64} {
  func.func @_matmul_shift_act_kernel(%arg0: i32, %arg1: memref<24x256xbf16, #tpu.memory_space<vmem>>, %arg2: memref<8x24xbf16, #tpu.memory_space<vmem>>, %arg3: memref<8x1xf32, #tpu.memory_space<vmem>>, %arg4: memref<8x256xbf16, #tpu.memory_space<vmem>>) attributes {dimension_semantics = [#tpu.dimension_semantics<parallel>], iteration_bounds = array<i64: 2>, scalar_prefetch = 0 : i64, scratch_operands = 0 : i64, tpu.core_type = #tpu.core_type<tc>, window_params = [{transform_indices = @transform_0, window_bounds = array<i64: 24, 256>}, {pipeline_mode = #tpu.pipeline_mode<synchronous>, transform_indices = @transform_1, window_bounds = array<i64: 8, 24>}, {pipeline_mode = #tpu.pipeline_mode<synchronous>, transform_indices = @transform_2, window_bounds = array<i64: 8, 1>}, {transform_indices = @transform_3, window_bounds = array<i64: 8, 256>}]} {
    %c0 = arith.constant 0 : index
    %c0_0 = arith.constant 0 : index
    %0 = vector.load %arg2[%c0, %c0_0] : memref<8x24xbf16, #tpu.memory_space<vmem>>, vector<8x24xbf16>
    %c0_1 = arith.constant 0 : index
    %c0_2 = arith.constant 0 : index
    %1 = vector.load %arg1[%c0_1, %c0_2] : memref<24x256xbf16, #tpu.memory_space<vmem>>, vector<24x256xbf16>
    %cst = arith.constant dense<0.000000e+00> : vector<8x256xf32>
    %2 = tpu.matmul %0, %1, %cst {dimension_numbers = #tpu.dot_dimension_numbers<[1], [0], [0], [1], [0, 0, 1, 1], [], []>} : vector<8x24xbf16>, vector<24x256xbf16>, vector<8x256xf32> -> vector<8x256xf32>
    %c0_3 = arith.constant 0 : index
    %c0_4 = arith.constant 0 : index
    %3 = vector.load %arg3[%c0_3, %c0_4] : memref<8x1xf32, #tpu.memory_space<vmem>>, vector<8x1xf32>
    %4 = vector.broadcast %3 : vector<8x1xf32> to vector<8x256xf32>
    %5 = arith.addf %2, %4 : vector<8x256xf32>
    %cst_5 = arith.constant 0.000000e+00 : f32
    %6 = vector.broadcast %cst_5 : f32 to vector<8x256xf32>
    %7 = arith.maximumf %5, %6 : vector<8x256xf32>
    %8 = arith.truncf %7 : vector<8x256xf32> to vector<8x256xbf16>
    %c0_6 = arith.constant 0 : index
    %c0_7 = arith.constant 0 : index
    %9 = vector.load %arg4[%c0_6, %c0_7] : memref<8x256xbf16, #tpu.memory_space<vmem>>, vector<8x256xbf16>
    tpu.vector_store %arg4[%c0_6, %c0_7], %8 {strides = array<i32>} : memref<8x256xbf16, #tpu.memory_space<vmem>>, vector<8x256xbf16>,
    return
  }
  func.func @transform_0(%arg0: i32) -> (i32, i32) {
    %c0_i32 = arith.constant 0 : i32
    %c0_i32_0 = arith.constant 0 : i32
    return %c0_i32, %arg0 : i32, i32
  }
  func.func @transform_1(%arg0: i32) -> (i32, i32) {
    %c0_i32 = arith.constant 0 : i32
    %c0_i32_0 = arith.constant 0 : i32
    %c0_i32_1 = arith.constant 0 : i32
    return %c0_i32, %c0_i32_0 : i32, i32
  }
  func.func @transform_2(%arg0: i32) -> (i32, i32) {
    %c0_i32 = arith.constant 0 : i32
    %c0_i32_0 = arith.constant 0 : i32
    %c0_i32_1 = arith.constant 0 : i32
    return %c0_i32, %c0_i32_0 : i32, i32
  }
  func.func @transform_3(%arg0: i32) -> (i32, i32) {
    %c0_i32 = arith.constant 0 : i32
    %c0_i32_0 = arith.constant 0 : i32
    return %c0_i32, %arg0 : i32, i32
  }
}

module attributes {stable_mosaic.version = 11 : i64} {
  func.func @_matmul_shift_act_kernel(%arg0: i32, %arg1: memref<24x256xbf16, #tpu.memory_space<vmem>>, %arg2: memref<16x24xbf16, #tpu.memory_space<vmem>>, %arg3: memref<16x1xf32, #tpu.memory_space<vmem>>, %arg4: memref<16x256xbf16, #tpu.memory_space<vmem>>) attributes {dimension_semantics = [#tpu.dimension_semantics<parallel>], iteration_bounds = array<i64: 2>, scalar_prefetch = 0 : i64, scratch_operands = 0 : i64, tpu.core_type = #tpu.core_type<tc>, window_params = [{transform_indices = @transform_0, window_bounds = array<i64: 24, 256>}, {pipeline_mode = #tpu.pipeline_mode<synchronous>, transform_indices = @transform_1, window_bounds = array<i64: 16, 24>}, {pipeline_mode = #tpu.pipeline_mode<synchronous>, transform_indices = @transform_2, window_bounds = array<i64: 16, 1>}, {transform_indices = @transform_3, window_bounds = array<i64: 16, 256>}]} {
    %c0 = arith.constant 0 : index
    %c0_0 = arith.constant 0 : index
    %0 = vector.load %arg2[%c0, %c0_0] : memref<16x24xbf16, #tpu.memory_space<vmem>>, vector<16x24xbf16>
    %c0_1 = arith.constant 0 : index
    %c0_2 = arith.constant 0 : index
    %1 = vector.load %arg1[%c0_1, %c0_2] : memref<24x256xbf16, #tpu.memory_space<vmem>>, vector<24x256xbf16>
    %cst = arith.constant dense<0.000000e+00> : vector<16x256xf32>
    %2 = tpu.matmul %0, %1, %cst {dimension_numbers = #tpu.dot_dimension_numbers<[1], [0], [0], [1], [0, 0, 1, 1], [], []>} : vector<16x24xbf16>, vector<24x256xbf16>, vector<16x256xf32> -> vector<16x256xf32>
    %c0_3 = arith.constant 0 : index
    %c0_4 = arith.constant 0 : index
    %3 = vector.load %arg3[%c0_3, %c0_4] : memref<16x1xf32, #tpu.memory_space<vmem>>, vector<16x1xf32>
    %4 = vector.broadcast %3 : vector<16x1xf32> to vector<16x256xf32>
    %5 = arith.addf %2, %4 : vector<16x256xf32>
    %cst_5 = arith.constant 0.000000e+00 : f32
    %6 = vector.broadcast %cst_5 : f32 to vector<16x256xf32>
    %7 = arith.maximumf %5, %6 : vector<16x256xf32>
    %8 = arith.truncf %7 : vector<16x256xf32> to vector<16x256xbf16>
    %c0_6 = arith.constant 0 : index
    %c0_7 = arith.constant 0 : index
    %9 = vector.load %arg4[%c0_6, %c0_7] : memref<16x256xbf16, #tpu.memory_space<vmem>>, vector<16x256xbf16>
    tpu.vector_store %arg4[%c0_6, %c0_7], %8 {strides = array<i32>} : memref<16x256xbf16, #tpu.memory_space<vmem>>, vector<16x256xbf16>,
    return
  }
  func.func @transform_0(%arg0: i32) -> (i32, i32) {
    %c0_i32 = arith.constant 0 : i32
    %c0_i32_0 = arith.constant 0 : i32
    return %c0_i32, %arg0 : i32, i32
  }
  func.func @transform_1(%arg0: i32) -> (i32, i32) {
    %c0_i32 = arith.constant 0 : i32
    %c0_i32_0 = arith.constant 0 : i32
    %c0_i32_1 = arith.constant 0 : i32
    return %c0_i32, %c0_i32_0 : i32, i32
  }
  func.func @transform_2(%arg0: i32) -> (i32, i32) {
    %c0_i32 = arith.constant 0 : i32
    %c0_i32_0 = arith.constant 0 : i32
    %c0_i32_1 = arith.constant 0 : i32
    return %c0_i32, %c0_i32_0 : i32, i32
  }
  func.func @transform_3(%arg0: i32) -> (i32, i32) {
    %c0_i32 = arith.constant 0 : i32
    %c0_i32_0 = arith.constant 0 : i32
    return %c0_i32, %arg0 : i32, i32
  }
}

module attributes {stable_mosaic.version = 11 : i64} {
  func.func @_sfam_fused_kernel(%arg0: i32, %arg1: memref<16x2x16xbf16, #tpu.memory_space<vmem>>, %arg2: memref<4x16xf32, #tpu.memory_space<vmem>>, %arg3: memref<4x1xf32, #tpu.memory_space<vmem>>, %arg4: memref<16x4xf32, #tpu.memory_space<vmem>>, %arg5: memref<16x1xf32, #tpu.memory_space<vmem>>, %arg6: memref<16x2x16xf32, #tpu.memory_space<vmem>>) attributes {dimension_semantics = [#tpu.dimension_semantics<arbitrary>], iteration_bounds = array<i64: 1>, scalar_prefetch = 0 : i64, scratch_operands = 0 : i64, tpu.core_type = #tpu.core_type<tc>, window_params = [{pipeline_mode = #tpu.pipeline_mode<synchronous>, transform_indices = @transform_0, window_bounds = array<i64: 16, 2, 16>}, {pipeline_mode = #tpu.pipeline_mode<synchronous>, transform_indices = @transform_1, window_bounds = array<i64: 4, 16>}, {pipeline_mode = #tpu.pipeline_mode<synchronous>, transform_indices = @transform_2, window_bounds = array<i64: 4, 1>}, {pipeline_mode = #tpu.pipeline_mode<synchronous>, transform_indices = @transform_3, window_bounds = array<i64: 16, 4>}, {pipeline_mode = #tpu.pipeline_mode<synchronous>, transform_indices = @transform_4, window_bounds = array<i64: 16, 1>}, {pipeline_mode = #tpu.pipeline_mode<synchronous>, transform_indices = @transform_5, window_bounds = array<i64: 16, 2, 16>}]} {
    %c0 = arith.constant 0 : index
    %c0_0 = arith.constant 0 : index
    %c0_1 = arith.constant 0 : index
    %0 = vector.load %arg1[%c0, %c0_0, %c0_1] : memref<16x2x16xbf16, #tpu.memory_space<vmem>>, vector<16x2x16xbf16>
    %1 = arith.extf %0 : vector<16x2x16xbf16> to vector<16x2x16xf32>
    %cst = arith.constant dense<0.000000e+00> : vector<16x2xf32>
    %2 = vector.multi_reduction <add>, %1, %cst [2] : vector<16x2x16xf32> to vector<16x2xf32>
    %cst_2 = arith.constant 6.250000e-02 : f32
    %3 = vector.broadcast %cst_2 : f32 to vector<16x2xf32>
    %4 = arith.mulf %2, %3 : vector<16x2xf32>
    %c0_3 = arith.constant 0 : index
    %c0_4 = arith.constant 0 : index
    %5 = vector.load %arg2[%c0_3, %c0_4] : memref<4x16xf32, #tpu.memory_space<vmem>>, vector<4x16xf32>
    %cst_5 = arith.constant dense<0.000000e+00> : vector<4x2xf32>
    %6 = tpu.matmul %5, %4, %cst_5 {dimension_numbers = #tpu.dot_dimension_numbers<[1], [0], [0], [1], [0, 0, 1, 1], [], []>} : vector<4x16xf32>, vector<16x2xf32>, vector<4x2xf32> -> vector<4x2xf32>
    %c0_6 = arith.constant 0 : index
    %c0_7 = arith.constant 0 : index
    %7 = vector.load %arg3[%c0_6, %c0_7] : memref<4x1xf32, #tpu.memory_space<vmem>>, vector<4x1xf32>
    %8 = vector.broadcast %7 : vector<4x1xf32> to vector<4x2xf32>
    %9 = arith.addf %6, %8 : vector<4x2xf32>
    %cst_8 = arith.constant 0.000000e+00 : f32
    %10 = vector.broadcast %cst_8 : f32 to vector<4x2xf32>
    %11 = arith.maximumf %9, %10 : vector<4x2xf32>
    %c0_9 = arith.constant 0 : index
    %c0_10 = arith.constant 0 : index
    %12 = vector.load %arg4[%c0_9, %c0_10] : memref<16x4xf32, #tpu.memory_space<vmem>>, vector<16x4xf32>
    %cst_11 = arith.constant dense<0.000000e+00> : vector<16x2xf32>
    %13 = tpu.matmul %12, %11, %cst_11 {dimension_numbers = #tpu.dot_dimension_numbers<[1], [0], [0], [1], [0, 0, 1, 1], [], []>} : vector<16x4xf32>, vector<4x2xf32>, vector<16x2xf32> -> vector<16x2xf32>
    %c0_12 = arith.constant 0 : index
    %c0_13 = arith.constant 0 : index
    %14 = vector.load %arg5[%c0_12, %c0_13] : memref<16x1xf32, #tpu.memory_space<vmem>>, vector<16x1xf32>
    %15 = vector.broadcast %14 : vector<16x1xf32> to vector<16x2xf32>
    %16 = arith.addf %13, %15 : vector<16x2xf32>
    %cst_14 = arith.constant 0.000000e+00 : f32
    %17 = vector.broadcast %cst_14 : f32 to vector<16x2xf32>
    %18 = arith.subf %17, %16 : vector<16x2xf32>
    %19 = math.exp %18 : vector<16x2xf32>
    %cst_15 = arith.constant 1.000000e+00 : f32
    %20 = vector.broadcast %cst_15 : f32 to vector<16x2xf32>
    %21 = arith.addf %20, %19 : vector<16x2xf32>
    %cst_16 = arith.constant 1.000000e+00 : f32
    %22 = vector.broadcast %cst_16 : f32 to vector<16x2xf32>
    %23 = arith.divf %22, %21 : vector<16x2xf32>
    %24 = vector.shape_cast %23 : vector<16x2xf32> to vector<16x2x1xf32>
    %25 = vector.broadcast %24 : vector<16x2x1xf32> to vector<16x2x16xf32>
    %26 = arith.mulf %1, %25 : vector<16x2x16xf32>
    %c0_17 = arith.constant 0 : index
    %c0_18 = arith.constant 0 : index
    %c0_19 = arith.constant 0 : index
    %27 = vector.load %arg6[%c0_17, %c0_18, %c0_19] : memref<16x2x16xf32, #tpu.memory_space<vmem>>, vector<16x2x16xf32>
    tpu.vector_store %arg6[%c0_17, %c0_18, %c0_19], %26 {strides = array<i32>} : memref<16x2x16xf32, #tpu.memory_space<vmem>>, vector<16x2x16xf32>,
    return
  }
  func.func @transform_0(%arg0: i32) -> (i32, i32, i32) {
    %c0_i32 = arith.constant 0 : i32
    %c0_i32_0 = arith.constant 0 : i32
    %c0_i32_1 = arith.constant 0 : i32
    %c0_i32_2 = arith.constant 0 : i32
    return %c0_i32, %c0_i32_0, %c0_i32_1 : i32, i32, i32
  }
  func.func @transform_1(%arg0: i32) -> (i32, i32) {
    %c0_i32 = arith.constant 0 : i32
    %c0_i32_0 = arith.constant 0 : i32
    %c0_i32_1 = arith.constant 0 : i32
    return %c0_i32, %c0_i32_0 : i32, i32
  }
  func.func @transform_2(%arg0: i32) -> (i32, i32) {
    %c0_i32 = arith.constant 0 : i32
    %c0_i32_0 = arith.constant 0 : i32
    %c0_i32_1 = arith.constant 0 : i32
    return %c0_i32, %c0_i32_0 : i32, i32
  }
  func.func @transform_3(%arg0: i32) -> (i32, i32) {
    %c0_i32 = arith.constant 0 : i32
    %c0_i32_0 = arith.constant 0 : i32
    %c0_i32_1 = arith.constant 0 : i32
    return %c0_i32, %c0_i32_0 : i32, i32
  }
  func.func @transform_4(%arg0: i32) -> (i32, i32) {
    %c0_i32 = arith.constant 0 : i32
    %c0_i32_0 = arith.constant 0 : i32
    %c0_i32_1 = arith.constant 0 : i32
    return %c0_i32, %c0_i32_0 : i32, i32
  }
  func.func @transform_5(%arg0: i32) -> (i32, i32, i32) {
    %c0_i32 = arith.constant 0 : i32
    %c0_i32_0 = arith.constant 0 : i32
    %c0_i32_1 = arith.constant 0 : i32
    %c0_i32_2 = arith.constant 0 : i32
    return %c0_i32, %c0_i32_0, %c0_i32_1 : i32, i32, i32
  }
}

module attributes {stable_mosaic.version = 11 : i64} {
  func.func @_sfam_fused_kernel(%arg0: i32, %arg1: memref<16x2x64xbf16, #tpu.memory_space<vmem>>, %arg2: memref<4x16xf32, #tpu.memory_space<vmem>>, %arg3: memref<4x1xf32, #tpu.memory_space<vmem>>, %arg4: memref<16x4xf32, #tpu.memory_space<vmem>>, %arg5: memref<16x1xf32, #tpu.memory_space<vmem>>, %arg6: memref<16x2x64xf32, #tpu.memory_space<vmem>>) attributes {dimension_semantics = [#tpu.dimension_semantics<arbitrary>], iteration_bounds = array<i64: 1>, scalar_prefetch = 0 : i64, scratch_operands = 0 : i64, tpu.core_type = #tpu.core_type<tc>, window_params = [{pipeline_mode = #tpu.pipeline_mode<synchronous>, transform_indices = @transform_0, window_bounds = array<i64: 16, 2, 64>}, {pipeline_mode = #tpu.pipeline_mode<synchronous>, transform_indices = @transform_1, window_bounds = array<i64: 4, 16>}, {pipeline_mode = #tpu.pipeline_mode<synchronous>, transform_indices = @transform_2, window_bounds = array<i64: 4, 1>}, {pipeline_mode = #tpu.pipeline_mode<synchronous>, transform_indices = @transform_3, window_bounds = array<i64: 16, 4>}, {pipeline_mode = #tpu.pipeline_mode<synchronous>, transform_indices = @transform_4, window_bounds = array<i64: 16, 1>}, {pipeline_mode = #tpu.pipeline_mode<synchronous>, transform_indices = @transform_5, window_bounds = array<i64: 16, 2, 64>}]} {
    %c0 = arith.constant 0 : index
    %c0_0 = arith.constant 0 : index
    %c0_1 = arith.constant 0 : index
    %0 = vector.load %arg1[%c0, %c0_0, %c0_1] : memref<16x2x64xbf16, #tpu.memory_space<vmem>>, vector<16x2x64xbf16>
    %1 = arith.extf %0 : vector<16x2x64xbf16> to vector<16x2x64xf32>
    %cst = arith.constant dense<0.000000e+00> : vector<16x2xf32>
    %2 = vector.multi_reduction <add>, %1, %cst [2] : vector<16x2x64xf32> to vector<16x2xf32>
    %cst_2 = arith.constant 1.562500e-02 : f32
    %3 = vector.broadcast %cst_2 : f32 to vector<16x2xf32>
    %4 = arith.mulf %2, %3 : vector<16x2xf32>
    %c0_3 = arith.constant 0 : index
    %c0_4 = arith.constant 0 : index
    %5 = vector.load %arg2[%c0_3, %c0_4] : memref<4x16xf32, #tpu.memory_space<vmem>>, vector<4x16xf32>
    %cst_5 = arith.constant dense<0.000000e+00> : vector<4x2xf32>
    %6 = tpu.matmul %5, %4, %cst_5 {dimension_numbers = #tpu.dot_dimension_numbers<[1], [0], [0], [1], [0, 0, 1, 1], [], []>} : vector<4x16xf32>, vector<16x2xf32>, vector<4x2xf32> -> vector<4x2xf32>
    %c0_6 = arith.constant 0 : index
    %c0_7 = arith.constant 0 : index
    %7 = vector.load %arg3[%c0_6, %c0_7] : memref<4x1xf32, #tpu.memory_space<vmem>>, vector<4x1xf32>
    %8 = vector.broadcast %7 : vector<4x1xf32> to vector<4x2xf32>
    %9 = arith.addf %6, %8 : vector<4x2xf32>
    %cst_8 = arith.constant 0.000000e+00 : f32
    %10 = vector.broadcast %cst_8 : f32 to vector<4x2xf32>
    %11 = arith.maximumf %9, %10 : vector<4x2xf32>
    %c0_9 = arith.constant 0 : index
    %c0_10 = arith.constant 0 : index
    %12 = vector.load %arg4[%c0_9, %c0_10] : memref<16x4xf32, #tpu.memory_space<vmem>>, vector<16x4xf32>
    %cst_11 = arith.constant dense<0.000000e+00> : vector<16x2xf32>
    %13 = tpu.matmul %12, %11, %cst_11 {dimension_numbers = #tpu.dot_dimension_numbers<[1], [0], [0], [1], [0, 0, 1, 1], [], []>} : vector<16x4xf32>, vector<4x2xf32>, vector<16x2xf32> -> vector<16x2xf32>
    %c0_12 = arith.constant 0 : index
    %c0_13 = arith.constant 0 : index
    %14 = vector.load %arg5[%c0_12, %c0_13] : memref<16x1xf32, #tpu.memory_space<vmem>>, vector<16x1xf32>
    %15 = vector.broadcast %14 : vector<16x1xf32> to vector<16x2xf32>
    %16 = arith.addf %13, %15 : vector<16x2xf32>
    %cst_14 = arith.constant 0.000000e+00 : f32
    %17 = vector.broadcast %cst_14 : f32 to vector<16x2xf32>
    %18 = arith.subf %17, %16 : vector<16x2xf32>
    %19 = math.exp %18 : vector<16x2xf32>
    %cst_15 = arith.constant 1.000000e+00 : f32
    %20 = vector.broadcast %cst_15 : f32 to vector<16x2xf32>
    %21 = arith.addf %20, %19 : vector<16x2xf32>
    %cst_16 = arith.constant 1.000000e+00 : f32
    %22 = vector.broadcast %cst_16 : f32 to vector<16x2xf32>
    %23 = arith.divf %22, %21 : vector<16x2xf32>
    %24 = vector.shape_cast %23 : vector<16x2xf32> to vector<16x2x1xf32>
    %25 = vector.broadcast %24 : vector<16x2x1xf32> to vector<16x2x64xf32>
    %26 = arith.mulf %1, %25 : vector<16x2x64xf32>
    %c0_17 = arith.constant 0 : index
    %c0_18 = arith.constant 0 : index
    %c0_19 = arith.constant 0 : index
    %27 = vector.load %arg6[%c0_17, %c0_18, %c0_19] : memref<16x2x64xf32, #tpu.memory_space<vmem>>, vector<16x2x64xf32>
    tpu.vector_store %arg6[%c0_17, %c0_18, %c0_19], %26 {strides = array<i32>} : memref<16x2x64xf32, #tpu.memory_space<vmem>>, vector<16x2x64xf32>,
    return
  }
  func.func @transform_0(%arg0: i32) -> (i32, i32, i32) {
    %c0_i32 = arith.constant 0 : i32
    %c0_i32_0 = arith.constant 0 : i32
    %c0_i32_1 = arith.constant 0 : i32
    %c0_i32_2 = arith.constant 0 : i32
    return %c0_i32, %c0_i32_0, %c0_i32_1 : i32, i32, i32
  }
  func.func @transform_1(%arg0: i32) -> (i32, i32) {
    %c0_i32 = arith.constant 0 : i32
    %c0_i32_0 = arith.constant 0 : i32
    %c0_i32_1 = arith.constant 0 : i32
    return %c0_i32, %c0_i32_0 : i32, i32
  }
  func.func @transform_2(%arg0: i32) -> (i32, i32) {
    %c0_i32 = arith.constant 0 : i32
    %c0_i32_0 = arith.constant 0 : i32
    %c0_i32_1 = arith.constant 0 : i32
    return %c0_i32, %c0_i32_0 : i32, i32
  }
  func.func @transform_3(%arg0: i32) -> (i32, i32) {
    %c0_i32 = arith.constant 0 : i32
    %c0_i32_0 = arith.constant 0 : i32
    %c0_i32_1 = arith.constant 0 : i32
    return %c0_i32, %c0_i32_0 : i32, i32
  }
  func.func @transform_4(%arg0: i32) -> (i32, i32) {
    %c0_i32 = arith.constant 0 : i32
    %c0_i32_0 = arith.constant 0 : i32
    %c0_i32_1 = arith.constant 0 : i32
    return %c0_i32, %c0_i32_0 : i32, i32
  }
  func.func @transform_5(%arg0: i32) -> (i32, i32, i32) {
    %c0_i32 = arith.constant 0 : i32
    %c0_i32_0 = arith.constant 0 : i32
    %c0_i32_1 = arith.constant 0 : i32
    %c0_i32_2 = arith.constant 0 : i32
    return %c0_i32, %c0_i32_0, %c0_i32_1 : i32, i32, i32
  }
}

module attributes {stable_mosaic.version = 11 : i64} {
  func.func @_sfam_fused_kernel(%arg0: i32, %arg1: memref<16x2x256xbf16, #tpu.memory_space<vmem>>, %arg2: memref<4x16xf32, #tpu.memory_space<vmem>>, %arg3: memref<4x1xf32, #tpu.memory_space<vmem>>, %arg4: memref<16x4xf32, #tpu.memory_space<vmem>>, %arg5: memref<16x1xf32, #tpu.memory_space<vmem>>, %arg6: memref<16x2x256xf32, #tpu.memory_space<vmem>>) attributes {dimension_semantics = [#tpu.dimension_semantics<arbitrary>], iteration_bounds = array<i64: 1>, scalar_prefetch = 0 : i64, scratch_operands = 0 : i64, tpu.core_type = #tpu.core_type<tc>, window_params = [{pipeline_mode = #tpu.pipeline_mode<synchronous>, transform_indices = @transform_0, window_bounds = array<i64: 16, 2, 256>}, {pipeline_mode = #tpu.pipeline_mode<synchronous>, transform_indices = @transform_1, window_bounds = array<i64: 4, 16>}, {pipeline_mode = #tpu.pipeline_mode<synchronous>, transform_indices = @transform_2, window_bounds = array<i64: 4, 1>}, {pipeline_mode = #tpu.pipeline_mode<synchronous>, transform_indices = @transform_3, window_bounds = array<i64: 16, 4>}, {pipeline_mode = #tpu.pipeline_mode<synchronous>, transform_indices = @transform_4, window_bounds = array<i64: 16, 1>}, {pipeline_mode = #tpu.pipeline_mode<synchronous>, transform_indices = @transform_5, window_bounds = array<i64: 16, 2, 256>}]} {
    %c0 = arith.constant 0 : index
    %c0_0 = arith.constant 0 : index
    %c0_1 = arith.constant 0 : index
    %0 = vector.load %arg1[%c0, %c0_0, %c0_1] : memref<16x2x256xbf16, #tpu.memory_space<vmem>>, vector<16x2x256xbf16>
    %1 = arith.extf %0 : vector<16x2x256xbf16> to vector<16x2x256xf32>
    %cst = arith.constant dense<0.000000e+00> : vector<16x2xf32>
    %2 = vector.multi_reduction <add>, %1, %cst [2] : vector<16x2x256xf32> to vector<16x2xf32>
    %cst_2 = arith.constant 3.906250e-03 : f32
    %3 = vector.broadcast %cst_2 : f32 to vector<16x2xf32>
    %4 = arith.mulf %2, %3 : vector<16x2xf32>
    %c0_3 = arith.constant 0 : index
    %c0_4 = arith.constant 0 : index
    %5 = vector.load %arg2[%c0_3, %c0_4] : memref<4x16xf32, #tpu.memory_space<vmem>>, vector<4x16xf32>
    %cst_5 = arith.constant dense<0.000000e+00> : vector<4x2xf32>
    %6 = tpu.matmul %5, %4, %cst_5 {dimension_numbers = #tpu.dot_dimension_numbers<[1], [0], [0], [1], [0, 0, 1, 1], [], []>} : vector<4x16xf32>, vector<16x2xf32>, vector<4x2xf32> -> vector<4x2xf32>
    %c0_6 = arith.constant 0 : index
    %c0_7 = arith.constant 0 : index
    %7 = vector.load %arg3[%c0_6, %c0_7] : memref<4x1xf32, #tpu.memory_space<vmem>>, vector<4x1xf32>
    %8 = vector.broadcast %7 : vector<4x1xf32> to vector<4x2xf32>
    %9 = arith.addf %6, %8 : vector<4x2xf32>
    %cst_8 = arith.constant 0.000000e+00 : f32
    %10 = vector.broadcast %cst_8 : f32 to vector<4x2xf32>
    %11 = arith.maximumf %9, %10 : vector<4x2xf32>
    %c0_9 = arith.constant 0 : index
    %c0_10 = arith.constant 0 : index
    %12 = vector.load %arg4[%c0_9, %c0_10] : memref<16x4xf32, #tpu.memory_space<vmem>>, vector<16x4xf32>
    %cst_11 = arith.constant dense<0.000000e+00> : vector<16x2xf32>
    %13 = tpu.matmul %12, %11, %cst_11 {dimension_numbers = #tpu.dot_dimension_numbers<[1], [0], [0], [1], [0, 0, 1, 1], [], []>} : vector<16x4xf32>, vector<4x2xf32>, vector<16x2xf32> -> vector<16x2xf32>
    %c0_12 = arith.constant 0 : index
    %c0_13 = arith.constant 0 : index
    %14 = vector.load %arg5[%c0_12, %c0_13] : memref<16x1xf32, #tpu.memory_space<vmem>>, vector<16x1xf32>
    %15 = vector.broadcast %14 : vector<16x1xf32> to vector<16x2xf32>
    %16 = arith.addf %13, %15 : vector<16x2xf32>
    %cst_14 = arith.constant 0.000000e+00 : f32
    %17 = vector.broadcast %cst_14 : f32 to vector<16x2xf32>
    %18 = arith.subf %17, %16 : vector<16x2xf32>
    %19 = math.exp %18 : vector<16x2xf32>
    %cst_15 = arith.constant 1.000000e+00 : f32
    %20 = vector.broadcast %cst_15 : f32 to vector<16x2xf32>
    %21 = arith.addf %20, %19 : vector<16x2xf32>
    %cst_16 = arith.constant 1.000000e+00 : f32
    %22 = vector.broadcast %cst_16 : f32 to vector<16x2xf32>
    %23 = arith.divf %22, %21 : vector<16x2xf32>
    %24 = vector.shape_cast %23 : vector<16x2xf32> to vector<16x2x1xf32>
    %25 = vector.broadcast %24 : vector<16x2x1xf32> to vector<16x2x256xf32>
    %26 = arith.mulf %1, %25 : vector<16x2x256xf32>
    %c0_17 = arith.constant 0 : index
    %c0_18 = arith.constant 0 : index
    %c0_19 = arith.constant 0 : index
    %27 = vector.load %arg6[%c0_17, %c0_18, %c0_19] : memref<16x2x256xf32, #tpu.memory_space<vmem>>, vector<16x2x256xf32>
    tpu.vector_store %arg6[%c0_17, %c0_18, %c0_19], %26 {strides = array<i32>} : memref<16x2x256xf32, #tpu.memory_space<vmem>>, vector<16x2x256xf32>,
    return
  }
  func.func @transform_0(%arg0: i32) -> (i32, i32, i32) {
    %c0_i32 = arith.constant 0 : i32
    %c0_i32_0 = arith.constant 0 : i32
    %c0_i32_1 = arith.constant 0 : i32
    %c0_i32_2 = arith.constant 0 : i32
    return %c0_i32, %c0_i32_0, %c0_i32_1 : i32, i32, i32
  }
  func.func @transform_1(%arg0: i32) -> (i32, i32) {
    %c0_i32 = arith.constant 0 : i32
    %c0_i32_0 = arith.constant 0 : i32
    %c0_i32_1 = arith.constant 0 : i32
    return %c0_i32, %c0_i32_0 : i32, i32
  }
  func.func @transform_2(%arg0: i32) -> (i32, i32) {
    %c0_i32 = arith.constant 0 : i32
    %c0_i32_0 = arith.constant 0 : i32
    %c0_i32_1 = arith.constant 0 : i32
    return %c0_i32, %c0_i32_0 : i32, i32
  }
  func.func @transform_3(%arg0: i32) -> (i32, i32) {
    %c0_i32 = arith.constant 0 : i32
    %c0_i32_0 = arith.constant 0 : i32
    %c0_i32_1 = arith.constant 0 : i32
    return %c0_i32, %c0_i32_0 : i32, i32
  }
  func.func @transform_4(%arg0: i32) -> (i32, i32) {
    %c0_i32 = arith.constant 0 : i32
    %c0_i32_0 = arith.constant 0 : i32
    %c0_i32_1 = arith.constant 0 : i32
    return %c0_i32, %c0_i32_0 : i32, i32
  }
  func.func @transform_5(%arg0: i32) -> (i32, i32, i32) {
    %c0_i32 = arith.constant 0 : i32
    %c0_i32_0 = arith.constant 0 : i32
    %c0_i32_1 = arith.constant 0 : i32
    %c0_i32_2 = arith.constant 0 : i32
    return %c0_i32, %c0_i32_0, %c0_i32_1 : i32, i32, i32
  }
}

</mosaic_0001>

<llo_original>
// kernel: _lambda_.18
$region0: #{_lambda_.18}
  #allocation0 [shape = 'u32[]', space=smem, size = 0x4, offset = 0x4, fixed_abs, tag = 'smem constant byte address 0x4 - core index']
  #allocation1 [shape = 'u32[144,128]{1,0:T(1,128)}', space=vmem, size = 0x12000, scoped, tag = 'internal scratch']
  %s0 = inlined_call_operand.vmem [shape: bf16[32,512], index: 0, kind: input, shape index: {}]
  %s1 = inlined_call_operand.vmem [shape: bf16[8,32], index: 1, kind: input, shape index: {}]
  %s2 = inlined_call_operand.vmem [shape: f32[8,1], index: 2, kind: input, shape index: {}]
  %s3 = inlined_call_operand.vmem [shape: bf16[8,512], index: 3, kind: output, shape index: {}]
  %s4 = sld [smem:[#allocation0]]
  $region83: #{_lambda_.18} parent=0
    _
  %s6 = ssub.s32 1, %s4
  %s7 = scalar_select 0, %s6, %s4
  $region1: #{_lambda_.18} parent=0
    #allocation2 [shape = 'u8[32768]{0}', space=vmem, size = 0x8000, scoped, tag = 'input window, operand 0']
    loop: start=0, step=1, limit=4
    $region2: #{_lambda_.18} parent=1 // loop_pre_header
      _
    $region3: #{_lambda_.18} parent=1 // loop_header
      %s9 = sphi 0, %s13
      %p10 = scmp.ge.s32.totalorder %s9, 4
      %s19 = sphi 0, %s21
      %s22 = sphi 0, %s19
      %s23 = sphi 0, %s22
      %s39 = sphi 0, %s23
      %s43 = sphi 0, %s43
      %s45 = sphi 0, %s43
      %s46 = sphi 0, %s45
      %s60 = sphi 0, %s46
      %s64 = sphi 0, %s64
      %s66 = sphi 0, %s64
      %s67 = sphi 0, %s66
      %s81 = sphi 0, %s67
      %s87 = sphi 0, %s89
      %s90 = sphi 0, %s87
      %s91 = sphi 0, %s90
      %s107 = sphi 0, %s91
    $region4: #{_lambda_.18} parent=1 // loop_header_branch
      %12 = sbr.rel (%p10) target = $region8
    $region5: #{_lambda_.18} parent=1 // loop_body
      %s14 = ssub.s32 %s9, 1
      %s15 = ssub.s32 %s9, 2
      %s16 = sadd.s32 %s9, 1
      %s17 = ssub.s32 %s9, %s16
      %p18 = scmp.eq.s32.totalorder %s17, 0
      %s20 = sadd.s32 %s19, 1
      %s21 = scalar_select %p18, %s19, %s20
      %p24 = pneg %p18
      %p25 = scmp.eq.s32.totalorder %s9, 1
      %p26 = por %p24, %p25
      %p27 = scmp.ne.s32.totalorder %s19, %s22
      %p28 = scmp.eq.s32.totalorder %s9, 0
      %p29 = por %p27, %p28
      %p30 = scmp.ne.s32.totalorder %s19, %s22
      %p31 = scmp.eq.s32.totalorder %s14, 1
      %p32 = por %p30, %p31
      %p33 = scmp.ne.s32.totalorder %s22, %s23
      %p34 = scmp.eq.s32.totalorder %s14, 0
      %p35 = por %p33, %p34
      %p36 = scmp.ne.s32.totalorder %s22, %s23
      %p37 = scmp.eq.s32.totalorder %s15, 1
      %p38 = por %p36, %p37
      %p40 = scmp.ne.s32.totalorder %s23, %s39
      %p41 = scmp.eq.s32.totalorder %s15, 0
      %p42 = por %p40, %p41
      %s44 = sadd.s32 %s43, 1
      %p47 = scmp.eq.s32.totalorder %s9, 1
      %p48 = scmp.ne.s32.totalorder %s43, %s45
      %p49 = scmp.eq.s32.totalorder %s9, 0
      %p50 = por %p48, %p49
      %p51 = scmp.ne.s32.totalorder %s43, %s45
      %p52 = scmp.eq.s32.totalorder %s14, 1
      %p53 = por %p51, %p52
      %p54 = scmp.ne.s32.totalorder %s45, %s46
      %p55 = scmp.eq.s32.totalorder %s14, 0
      %p56 = por %p54, %p55
      %p57 = scmp.ne.s32.totalorder %s45, %s46
      %p58 = scmp.eq.s32.totalorder %s15, 1
      %p59 = por %p57, %p58
      %p61 = scmp.ne.s32.totalorder %s46, %s60
      %p62 = scmp.eq.s32.totalorder %s15, 0
      %p63 = por %p61, %p62
      %s65 = sadd.s32 %s64, 1
      %p68 = scmp.eq.s32.totalorder %s9, 1
      %p69 = scmp.ne.s32.totalorder %s64, %s66
      %p70 = scmp.eq.s32.totalorder %s9, 0
      %p71 = por %p69, %p70
      %p72 = scmp.ne.s32.totalorder %s64, %s66
      %p73 = scmp.eq.s32.totalorder %s14, 1
      %p74 = por %p72, %p73
      %p75 = scmp.ne.s32.totalorder %s66, %s67
      %p76 = scmp.eq.s32.totalorder %s14, 0
      %p77 = por %p75, %p76
      %p78 = scmp.ne.s32.totalorder %s66, %s67
      %p79 = scmp.eq.s32.totalorder %s15, 1
      %p80 = por %p78, %p79
      %p82 = scmp.ne.s32.totalorder %s67, %s81
      %p83 = scmp.eq.s32.totalorder %s15, 0
      %p84 = por %p82, %p83
      %s85 = ssub.s32 %s9, %s16
      %p86 = scmp.eq.s32.totalorder %s85, 0
      %s88 = sadd.s32 %s87, 1
      %s89 = scalar_select %p86, %s87, %s88
      %p92 = pneg %p86
      %p93 = scmp.eq.s32.totalorder %s9, 1
      %p94 = por %p92, %p93
      %p95 = scmp.ne.s32.totalorder %s87, %s90
      %p96 = scmp.eq.s32.totalorder %s9, 0
      %p97 = por %p95, %p96
      %p98 = scmp.ne.s32.totalorder %s87, %s90
      %p99 = scmp.eq.s32.totalorder %s14, 1
      %p100 = por %p98, %p99
      %p101 = scmp.ne.s32.totalorder %s90, %s91
      %p102 = scmp.eq.s32.totalorder %s14, 0
      %p103 = por %p101, %p102
      %p104 = scmp.ne.s32.totalorder %s90, %s91
      %p105 = scmp.eq.s32.totalorder %s15, 1
      %p106 = por %p104, %p105
      %p108 = scmp.ne.s32.totalorder %s91, %s107
      %p109 = scmp.eq.s32.totalorder %s15, 0
      %p110 = por %p108, %p109
      %p111 = scmp.le.s32.totalorder 1, %s9
      %p112 = scmp.lt.s32.totalorder %s9, 3
      %p113 = pnand %p111, %p112
      %p114 = pneg %p113
      // Predicated region
      $region9: #{_lambda_.18} parent=5 // pred_check
        _
      $region10: #{_lambda_.18} parent=5 // pred_check_branch
        %116 = sbr.rel (%p113) target = $region12
      $region11: #{_lambda_.18} parent=5 // pred_region
        %s117 = ssub.s32 %s9, 1
        // Predicated region
        $region13: #{_lambda_.18} parent=11 // pred_check
          %p118 = pneg %p56
        $region14: #{_lambda_.18} parent=11 // pred_check_branch
          %120 = sbr.rel (%p118) target = $region16
        $region15: #{_lambda_.18} parent=11 // pred_region
          _
        $region16: #{_lambda_.18} parent=11 // pred_fallthru
          _
        // Predicated region
        $region17: #{_lambda_.18} parent=11 // pred_check
          %p121 = pneg %p77
        $region18: #{_lambda_.18} parent=11 // pred_check_branch
          %123 = sbr.rel (%p121) target = $region20
        $region19: #{_lambda_.18} parent=11 // pred_region
          _
        $region20: #{_lambda_.18} parent=11 // pred_fallthru
          _
      $region12: #{_lambda_.18} parent=5 // pred_fallthru
        _
      %p124 = scmp.lt.s32.totalorder %s9, 2
      // Predicated region
      $region21: #{_lambda_.18} parent=5 // pred_check
        %p125 = pneg %p124
      $region22: #{_lambda_.18} parent=5 // pred_check_branch
        %127 = sbr.rel (%p125) target = $region24
      $region23: #{_lambda_.18} parent=5 // pred_region
        // Predicated region
        $region25: #{_lambda_.18} parent=23 // pred_check
          %p128 = pneg %p29
        $region26: #{_lambda_.18} parent=23 // pred_check_branch
          %130 = sbr.rel (%p128) target = $region28
        $region27: #{_lambda_.18} parent=23 // pred_region
          %s131 = sand.u32 %s19, 1
          %s132 = sand.u32 %s19, 1
          %s133 = smul.addr %s132, 32
          %s134 = scalar_lea.vmem [#allocation2], %s133
          %s135 = smul.u32 2, %s9
          %s136 = smul.addr %s135, 4
          %s137 = scalar_lea.vmem %s0, %s136
          // Predicated region
          $region29: #{_lambda_.18} parent=27 // pred_check
            _
          $region30: #{_lambda_.18} parent=27 // pred_check_branch
            %139 = sbr.rel (0) target = $region32
          $region31: #{_lambda_.18} parent=27 // pred_region
            // Predicated region
            $region33: #{_lambda_.18} parent=31 // pred_check
              _
            $region34: #{_lambda_.18} parent=31 // pred_check_branch
              %141 = sbr.rel (0) target = $region36
            $region35: #{_lambda_.18} parent=31 // pred_region
              // Predicated region
              $region48: #{_lambda_.18} parent=35 // pred_check
                _
              $region49: #{_lambda_.18} parent=35 // pred_check_branch
                %162 = sbr.rel (0) target = $region51
              $region50: #{_lambda_.18} parent=35 // pred_region
                loop: start=0, step=1, limit=1
                $region52: #{_lambda_.18} parent=50 // loop_pre_header
                  _
                $region53: #{_lambda_.18} parent=50 // loop_header
                  %s164 = sphi 0, %s168
                  %p165 = scmp.ge.s32.totalorder %s164, 1
                  %s169 = sphi %s137, %s137
                  %s170 = sphi %s134, %s134
                $region54: #{_lambda_.18} parent=50 // loop_header_branch
                  %167 = sbr.rel (%p165) target = $region58
                $region55: #{_lambda_.18} parent=50 // loop_body
                  %v171 = vld [vmem:[%s169] sm:$0xff]
                  %172 = vst [vmem:[%s170] sm:$0xff] %v171
                  %v173 = vld [vmem:[%s169 + $0x10] sm:$0xff]
                  %174 = vst [vmem:[%s170 + $0x8] sm:$0xff] %v173
                  %v175 = vld [vmem:[%s169 + $0x20] sm:$0xff]
                  %176 = vst [vmem:[%s170 + $0x10] sm:$0xff] %v175
                  %v177 = vld [vmem:[%s169 + $0x30] sm:$0xff]
                  %178 = vst [vmem:[%s170 + $0x18] sm:$0xff] %v177
                $region56: #{_lambda_.18} parent=50 // loop_footer
                  %s168 = sadd.s32 1, %s164
                $region57: #{_lambda_.18} parent=50 // loop_footer_branch
                  %163 = sbr.rel target = $region53
                $region58: #{_lambda_.18} parent=50 // loop_exit
                  _
              $region51: #{_lambda_.18} parent=35 // pred_fallthru
                _
              // Predicated region
              $region59: #{_lambda_.18} parent=35 // pred_check
                _
              $region60: #{_lambda_.18} parent=35 // pred_check_branch
                %180 = sbr.rel target = $region62
              $region61: #{_lambda_.18} parent=35 // pred_region
                _
              $region62: #{_lambda_.18} parent=35 // pred_fallthru
                _
            $region36: #{_lambda_.18} parent=31 // pred_fallthru
              _
            // Predicated region
            $region37: #{_lambda_.18} parent=31 // pred_check
              _
            $region38: #{_lambda_.18} parent=31 // pred_check_branch
              %143 = sbr.rel target = $region40
            $region39: #{_lambda_.18} parent=31 // pred_region
              loop: start=0, step=1, limit=1
              $region41: #{_lambda_.18} parent=39 // loop_pre_header
                _
              $region42: #{_lambda_.18} parent=39 // loop_header
                %s146 = sphi 0, %s150
                %p147 = scmp.ge.s32.totalorder %s146, 1
                %s151 = sphi %s137, %s137
                %s152 = sphi %s134, %s134
              $region43: #{_lambda_.18} parent=39 // loop_header_branch
                %149 = sbr.rel (%p147) target = $region47
              $region44: #{_lambda_.18} parent=39 // loop_body
                %v153 = vld [vmem:[%s151] sm:$0xff]
                %154 = vst [vmem:[%s152] sm:$0xff] %v153
                %v155 = vld [vmem:[%s151 + $0x10] sm:$0xff]
                %156 = vst [vmem:[%s152 + $0x8] sm:$0xff] %v155
                %v157 = vld [vmem:[%s151 + $0x20] sm:$0xff]
                %158 = vst [vmem:[%s152 + $0x10] sm:$0xff] %v157
                %v159 = vld [vmem:[%s151 + $0x30] sm:$0xff]
                %160 = vst [vmem:[%s152 + $0x18] sm:$0xff] %v159
              $region45: #{_lambda_.18} parent=39 // loop_footer
                %s150 = sadd.s32 1, %s146
              $region46: #{_lambda_.18} parent=39 // loop_footer_branch
                %145 = sbr.rel target = $region42
              $region47: #{_lambda_.18} parent=39 // loop_exit
                _
            $region40: #{_lambda_.18} parent=31 // pred_fallthru
              _
          $region32: #{_lambda_.18} parent=27 // pred_fallthru
            _
          %181 = vnop
        $region28: #{_lambda_.18} parent=23 // pred_fallthru
          _
      $region24: #{_lambda_.18} parent=5 // pred_fallthru
        _
      %p182 = scmp.le.s32.totalorder 1, %s9
      %p183 = scmp.lt.s32.totalorder %s9, 3
      %p184 = pnand %p182, %p183
      %p185 = pneg %p184
      // Predicated region
      $region63: #{_lambda_.18} parent=5 // pred_check
        _
      $region64: #{_lambda_.18} parent=5 // pred_check_branch
        %187 = sbr.rel (%p184) target = $region66
      $region65: #{_lambda_.18} parent=5 // pred_region
        %s188 = ssub.s32 %s9, 1
        %s189 = sand.u32 %s22, 1
        %s190 = sand.u32 %s22, 1
        %s191 = smul.addr %s190, 32
        %s192 = scalar_lea.vmem [#allocation2], %s191
        // Predicated region
        $region67: #{_lambda_.18} parent=65 // pred_check
          %p193 = pneg %p35
        $region68: #{_lambda_.18} parent=65 // pred_check_branch
          %195 = sbr.rel (%p193) target = $region70
        $region69: #{_lambda_.18} parent=65 // pred_region
          _
        $region70: #{_lambda_.18} parent=65 // pred_fallthru
          _
        %s196 = sand.u32 %s22, 1
        %s197 = sand.u32 %s22, 1
        %s198 = smul.addr %s197, 32
        %s199 = scalar_lea.vmem [#allocation2], %s198
        %p200 = pneg %p35
        %p201 = pneg %p32
        %p202 = pneg %p56
        %p203 = pneg %p53
        %p204 = pneg %p77
        %p205 = pneg %p74
        %p206 = pneg %p103
        %p207 = pneg %p100
        %s208 = smul.u32 2, %s14
        %p209 = scmp.lt.s32.totalorder %s208, 3
        %s210 = scalar_select %p209, %s208, 3
        %s211 = smul.addr %s210, 4
        %s212 = scalar_lea.vmem %s3, %s211
        %s213 = smul.u32 2, %s14
        %s214 = smul.u32 2, %s14
        %p215 = scmp.lt.s32.totalorder %s214, 3
        %s216 = scalar_select %p215, %s214, 3
        %s217 = smul.addr %s216, 4
        %s218 = scalar_lea.vmem %s3, %s217
        %s219 = smul.u32 2, %s14
        %v221 = vld [vmem:[%s1] sm:$0xf]
        %v222 = vld [vmem:[%s192] sm:$0xff]
        %v223 = vld [vmem:[%s192 + $0x8] sm:$0xff]
        %v224 = vld [vmem:[%s192 + $0x10] sm:$0xff]
        %v225 = vld [vmem:[%s192 + $0x18] sm:$0xff]
        %v226 = vld [vmem:[%s2] sm:$0xff]
        %228 = vset.pattern.permute.xlu0 0
        %229 = vperm.xlu0 %228, %v226
        %v230 = vpop.permute.xlu0 %229
        %v236 = vunpack.c.l.b16 %v222
        %v237 = vunpack.c.h.b16 %v222
        %v238 = vunpack.c.l.b16 %v223
        %v239 = vunpack.c.h.b16 %v223
        %v240 = vunpack.c.l.b16 %v224
        %v241 = vunpack.c.h.b16 %v224
        %v242 = vunpack.c.l.b16 %v225
        %v243 = vunpack.c.h.b16 %v225
        %v244 = vpack.c.b16 %v238, %v236
        %v245 = vpack.c.b16 %v239, %v237
        %v246 = vpack.c.b16 %v242, %v240
        %v247 = vpack.c.b16 %v243, %v241
        %vm252 = vcmask 261120
        %v254 = vsel %vm252, %v221, 0
        %256 = vmatprep.subr.bf16.mxu0 %v245
        %257 = vmatpush1.bf16.msra.mxu0 %v244
        %258 = vmatprep.subr.bf16.mxu0 %v247
        %259 = vmatpush1.bf16.msra.mxu0 %v246
        %260 = vmatprep.subr.bf16.mxu0 0
        %261 = vmatpush1.bf16.msra.mxu0 0
        %262 = vmatprep.subr.bf16.mxu0 0
        %263 = vmatpush1.bf16.msra.mxu0 0
        %264 = vmatprep.subr.bf16.mxu0 0
        %265 = vmatpush1.bf16.msra.mxu0 0
        %266 = vmatprep.subr.bf16.mxu0 0
        %267 = vmatpush1.bf16.msra.mxu0 0
        %268 = vmatprep.subr.bf16.mxu0 0
        %269 = vmatpush1.bf16.msra.mxu0 0
        %270 = vmatprep.subr.bf16.mxu0 0
        %271 = vmatpush1.bf16.msra.mxu0 0
        %272 = vmatprep.subr.bf16.mxu0 0
        %273 = vmatpush1.bf16.msra.mxu0 0
        %274 = vmatprep.subr.bf16.mxu0 0
        %275 = vmatpush1.bf16.msra.mxu0 0
        %276 = vmatprep.subr.bf16.mxu0 0
        %277 = vmatpush1.bf16.msra.mxu0 0
        %278 = vmatprep.subr.bf16.mxu0 0
        %279 = vmatpush1.bf16.msra.mxu0 0
        %280 = vmatprep.subr.bf16.mxu0 0
        %281 = vmatpush1.bf16.msra.mxu0 0
        %282 = vmatprep.subr.bf16.mxu0 0
        %283 = vmatpush1.bf16.msra.mxu0 0
        %284 = vmatprep.subr.bf16.mxu0 0
        %285 = vmatpush1.bf16.msra.mxu0 0
        %286 = vmatprep.subr.bf16.mxu0 0
        %287 = vmatpush1.bf16.msra.mxu0 0
        %288 = vmatprep.mubr.bf16.mxu0 0
        %289 = vmatmul.mubr.bf16.gmra.mrb[0].mxu0 %v254
        %v290 = vpop.f32.mrb[0].mxu0
        %v291 = vadd.f32 %v230, %v290
        %v292 = vpop.f32.mrb[0].mxu0
        %v293 = vadd.f32 %v230, %v292
        %v294 = vpop.f32.mrb[0].mxu0
        %v295 = vpop.f32.mrb[0].mxu0
        %296 = vdwg.mxu0
        %v297 = vmax.f32 %v291, 0.0
        %v298 = vmax.f32 %v293, 0.0
        %v299 = vpack.c.bf16 %v297, %v297
        %v300 = vpack.c.bf16 %v298, %v298
        %v303 = vunpack.c.l.b16 %v299
        %v304 = vunpack.c.l.b16 %v300
        %v305 = vpack.c.b16 %v304, %v303
        %307 = vst [vmem:[%s218] sm:$0xff] %v305
        %s308 = smul.u32 2, %s14
        %p309 = scmp.lt.s32.totalorder %s308, 3
        %s310 = scalar_select %p309, %s308, 3
        %s311 = smul.addr %s310, 4
        %s312 = scalar_lea.vmem %s3, %s311
        // Predicated region
        $region71: #{_lambda_.18} parent=65 // pred_check
          %p313 = pneg %p100
        $region72: #{_lambda_.18} parent=65 // pred_check_branch
          %315 = sbr.rel (%p313) target = $region74
        $region73: #{_lambda_.18} parent=65 // pred_region
          %s316 = smul.u32 2, %s14
        $region74: #{_lambda_.18} parent=65 // pred_fallthru
          _
      $region66: #{_lambda_.18} parent=5 // pred_fallthru
        _
      %p317 = scmp.le.s32.totalorder 2, %s9
      // Predicated region
      $region75: #{_lambda_.18} parent=5 // pred_check
        %p318 = pneg %p317
      $region76: #{_lambda_.18} parent=5 // pred_check_branch
        %320 = sbr.rel (%p318) target = $region78
      $region77: #{_lambda_.18} parent=5 // pred_region
        %s321 = ssub.s32 %s9, 2
        // Predicated region
        $region79: #{_lambda_.18} parent=77 // pred_check
          %p322 = pneg %p106
        $region80: #{_lambda_.18} parent=77 // pred_check_branch
          %324 = sbr.rel (%p322) target = $region82
        $region81: #{_lambda_.18} parent=77 // pred_region
          %s325 = smul.u32 2, %s15
          %p326 = scmp.lt.s32.totalorder %s325, 3
          %s327 = scalar_select %p326, %s325, 3
          %s328 = smul.addr %s327, 4
          %s329 = scalar_lea.vmem %s3, %s328
        $region82: #{_lambda_.18} parent=77 // pred_fallthru
          _
      $region78: #{_lambda_.18} parent=5 // pred_fallthru
        _
    $region6: #{_lambda_.18} parent=1 // loop_footer
      %s13 = sadd.s32 1, %s9
    $region7: #{_lambda_.18} parent=1 // loop_footer_branch
      %8 = sbr.rel target = $region3
    $region8: #{_lambda_.18} parent=1 // loop_exit
      _

// kernel: _lambda_.19
$region0: #{_lambda_.19}
  #allocation0 [shape = 'u32[]', space=smem, size = 0x4, offset = 0x4, fixed_abs, tag = 'smem constant byte address 0x4 - core index']
  #allocation1 [shape = 'u32[144,128]{1,0:T(1,128)}', space=vmem, size = 0x12000, scoped, tag = 'internal scratch']
  %s0 = inlined_call_operand.vmem [shape: bf16[72,128], index: 0, kind: input, shape index: {}]
  %s1 = inlined_call_operand.vmem [shape: bf16[16,72], index: 1, kind: input, shape index: {}]
  %s2 = inlined_call_operand.vmem [shape: f32[16,1], index: 2, kind: input, shape index: {}]
  %s3 = inlined_call_operand.vmem [shape: bf16[16,128], index: 3, kind: output, shape index: {}]
  %s4 = sld [smem:[#allocation0]]
  $region22: #{_lambda_.19} parent=0
    _
  %s6 = ssub.s32 1, %s4
  %s7 = scalar_select 0, %s6, %s4
  // Predicated region
  $region2: #{_lambda_.19} parent=0 // pred_check
    _
  $region3: #{_lambda_.19} parent=0 // pred_check_branch
    %9 = sbr.rel (0) target = $region5
  $region4: #{_lambda_.19} parent=0 // pred_region
    _
  $region5: #{_lambda_.19} parent=0 // pred_fallthru
    _
  // Predicated region
  $region6: #{_lambda_.19} parent=0 // pred_check
    _
  $region7: #{_lambda_.19} parent=0 // pred_check_branch
    %11 = sbr.rel (0) target = $region9
  $region8: #{_lambda_.19} parent=0 // pred_region
    _
  $region9: #{_lambda_.19} parent=0 // pred_fallthru
    _
  // Predicated region
  $region10: #{_lambda_.19} parent=0 // pred_check
    _
  $region11: #{_lambda_.19} parent=0 // pred_check_branch
    %13 = sbr.rel (0) target = $region13
  $region12: #{_lambda_.19} parent=0 // pred_region
    _
  $region13: #{_lambda_.19} parent=0 // pred_fallthru
    _
  %v15 = vld [vmem:[%s1] sm:$0xf]
  %v16 = vld [vmem:[%s1 + $0x4] sm:$0xf]
  %v17 = vld [vmem:[%s0] sm:$0xf]
  %v18 = vld [vmem:[%s0 + $0x4] sm:$0xf]
  %v19 = vld [vmem:[%s0 + $0x8] sm:$0xf]
  %v20 = vld [vmem:[%s0 + $0xc] sm:$0xf]
  %v21 = vld [vmem:[%s0 + $0x10] sm:$0xf]
  %v22 = vld [vmem:[%s0 + $0x14] sm:$0xf]
  %v23 = vld [vmem:[%s0 + $0x18] sm:$0xf]
  %v24 = vld [vmem:[%s0 + $0x1c] sm:$0xf]
  %v25 = vld [vmem:[%s0 + $0x20] sm:$0xf]
  %v26 = vld [vmem:[%s2] sm:$0xff]
  %v27 = vld [vmem:[%s2 + $0x8] sm:$0xff]
  %29 = vset.pattern.permute.xlu0 0
  %30 = vperm.xlu0 %29, %v26
  %v31 = vpop.permute.xlu0 %30
  %34 = vset.pattern.permute.xlu0 0
  %35 = vperm.xlu0 %34, %v27
  %v36 = vpop.permute.xlu0 %35
  %v40 = vunpack.c.l.b16 %v15
  %v41 = vunpack.c.l.b16 %v16
  %v42 = vpack.c.b16 %v41, %v40
  %v52 = vunpack.c.l.b16 %v17
  %v53 = vunpack.c.l.b16 %v18
  %v54 = vunpack.c.l.b16 %v19
  %v55 = vunpack.c.l.b16 %v20
  %v56 = vunpack.c.l.b16 %v21
  %v57 = vunpack.c.l.b16 %v22
  %v58 = vunpack.c.l.b16 %v23
  %v59 = vunpack.c.l.b16 %v24
  %v60 = vunpack.c.l.b16 %v25
  %v61 = vpack.c.b16 %v53, %v52
  %v62 = vpack.c.b16 %v55, %v54
  %v63 = vpack.c.b16 %v57, %v56
  %v64 = vpack.c.b16 %v59, %v58
  %v65 = vpack.c.b16 %v60, %v60
  %vm70 = vcmask 588800
  %v72 = vsel %vm70, %v42, 0
  %vm74 = vcmask 1043456
  %v76 = vsel %vm74, %v65, 0
  %78 = vmatprep.subr.bf16.mxu0 0
  %79 = vmatpush1.bf16.msra.mxu0 %v61
  %80 = vmatprep.subr.bf16.mxu0 0
  %81 = vmatpush1.bf16.msra.mxu0 %v62
  %82 = vmatprep.subr.bf16.mxu0 0
  %83 = vmatpush1.bf16.msra.mxu0 %v63
  %84 = vmatprep.subr.bf16.mxu0 0
  %85 = vmatpush1.bf16.msra.mxu0 %v64
  %86 = vmatprep.subr.bf16.mxu0 0
  %87 = vmatpush1.bf16.msra.mxu0 %v76
  %88 = vmatprep.subr.bf16.mxu0 0
  %89 = vmatpush1.bf16.msra.mxu0 0
  %90 = vmatprep.subr.bf16.mxu0 0
  %91 = vmatpush1.bf16.msra.mxu0 0
  %92 = vmatprep.subr.bf16.mxu0 0
  %93 = vmatpush1.bf16.msra.mxu0 0
  %94 = vmatprep.subr.bf16.mxu0 0
  %95 = vmatpush1.bf16.msra.mxu0 0
  %96 = vmatprep.subr.bf16.mxu0 0
  %97 = vmatpush1.bf16.msra.mxu0 0
  %98 = vmatprep.subr.bf16.mxu0 0
  %99 = vmatpush1.bf16.msra.mxu0 0
  %100 = vmatprep.subr.bf16.mxu0 0
  %101 = vmatpush1.bf16.msra.mxu0 0
  %102 = vmatprep.subr.bf16.mxu0 0
  %103 = vmatpush1.bf16.msra.mxu0 0
  %104 = vmatprep.subr.bf16.mxu0 0
  %105 = vmatpush1.bf16.msra.mxu0 0
  %106 = vmatprep.subr.bf16.mxu0 0
  %107 = vmatpush1.bf16.msra.mxu0 0
  %108 = vmatprep.subr.bf16.mxu0 0
  %109 = vmatpush1.bf16.msra.mxu0 0
  %110 = vmatprep.mubr.bf16.mxu0 0
  %111 = vmatmul.mubr.bf16.gmra.mrb[0].mxu0 %v72
  %v112 = vpop.f32.mrb[0].mxu0
  %v113 = vadd.f32 %v31, %v112
  %v114 = vpop.f32.mrb[0].mxu0
  %v115 = vpop.f32.mrb[0].mxu0
  %v116 = vadd.f32 %v36, %v115
  %v117 = vpop.f32.mrb[0].mxu0
  %118 = vdwg.mxu0
  %v119 = vmax.f32 %v113, 0.0
  %v120 = vmax.f32 %v116, 0.0
  %v121 = vpack.c.bf16 %v120, %v119
  %v123 = vunpack.c.l.b16 %v121
  %v124 = vunpack.c.h.b16 %v121
  %v125 = vpack.c.b16 %v123, %v123
  %v126 = vpack.c.b16 %v124, %v124
  %129 = vst [vmem:[%s3] sm:$0xf] %v125
  %130 = vst [vmem:[%s3 + $0x4] sm:$0xf] %v126
  // Predicated region
  $region14: #{_lambda_.19} parent=0 // pred_check
    _
  $region15: #{_lambda_.19} parent=0 // pred_check_branch
    %132 = sbr.rel (0) target = $region17
  $region16: #{_lambda_.19} parent=0 // pred_region
    _
  $region17: #{_lambda_.19} parent=0 // pred_fallthru
    _
  // Predicated region
  $region18: #{_lambda_.19} parent=0 // pred_check
    _
  $region19: #{_lambda_.19} parent=0 // pred_check_branch
    %134 = sbr.rel (0) target = $region21
  $region20: #{_lambda_.19} parent=0 // pred_region
    _
  $region21: #{_lambda_.19} parent=0 // pred_fallthru
    _

// kernel: _lambda_.21
$region0: #{_lambda_.21}
  #allocation0 [shape = 'u32[]', space=smem, size = 0x4, offset = 0x4, fixed_abs, tag = 'smem constant byte address 0x4 - core index']
  #allocation1 [shape = 'u32[144,128]{1,0:T(1,128)}', space=vmem, size = 0x12000, scoped, tag = 'internal scratch']
  %s0 = inlined_call_operand.vmem [shape: bf16[16,128], index: 0, kind: input, shape index: {}]
  %s1 = inlined_call_operand.vmem [shape: bf16[16,16], index: 1, kind: input, shape index: {}]
  %s2 = inlined_call_operand.vmem [shape: f32[16,1], index: 2, kind: input, shape index: {}]
  %s3 = inlined_call_operand.vmem [shape: bf16[16,128], index: 3, kind: output, shape index: {}]
  %s4 = sld [smem:[#allocation0]]
  $region22: #{_lambda_.21} parent=0
    _
  %s6 = ssub.s32 1, %s4
  %s7 = scalar_select 0, %s6, %s4
  // Predicated region
  $region2: #{_lambda_.21} parent=0 // pred_check
    _
  $region3: #{_lambda_.21} parent=0 // pred_check_branch
    %9 = sbr.rel (0) target = $region5
  $region4: #{_lambda_.21} parent=0 // pred_region
    _
  $region5: #{_lambda_.21} parent=0 // pred_fallthru
    _
  // Predicated region
  $region6: #{_lambda_.21} parent=0 // pred_check
    _
  $region7: #{_lambda_.21} parent=0 // pred_check_branch
    %11 = sbr.rel (0) target = $region9
  $region8: #{_lambda_.21} parent=0 // pred_region
    _
  $region9: #{_lambda_.21} parent=0 // pred_fallthru
    _
  // Predicated region
  $region10: #{_lambda_.21} parent=0 // pred_check
    _
  $region11: #{_lambda_.21} parent=0 // pred_check_branch
    %13 = sbr.rel (0) target = $region13
  $region12: #{_lambda_.21} parent=0 // pred_region
    _
  $region13: #{_lambda_.21} parent=0 // pred_fallthru
    _
  %v15 = vld [vmem:[%s1] sm:$0xf]
  %v16 = vld [vmem:[%s1 + $0x4] sm:$0xf]
  %v17 = vld [vmem:[%s0] sm:$0xf]
  %v18 = vld [vmem:[%s0 + $0x4] sm:$0xf]
  %v19 = vld [vmem:[%s2] sm:$0xff]
  %v20 = vld [vmem:[%s2 + $0x8] sm:$0xff]
  %22 = vset.pattern.permute.xlu0 0
  %23 = vperm.xlu0 %22, %v19
  %v24 = vpop.permute.xlu0 %23
  %27 = vset.pattern.permute.xlu0 0
  %28 = vperm.xlu0 %27, %v20
  %v29 = vpop.permute.xlu0 %28
  %v33 = vunpack.c.l.b16 %v15
  %v34 = vunpack.c.l.b16 %v16
  %v35 = vpack.c.b16 %v34, %v33
  %v38 = vunpack.c.l.b16 %v17
  %v39 = vunpack.c.l.b16 %v18
  %v40 = vpack.c.b16 %v39, %v38
  %vm42 = vcmask 130048
  %v44 = vsel %vm42, %v35, 0
  %46 = vmatprep.subr.bf16.mxu0 0
  %47 = vmatpush1.bf16.msra.mxu0 %v40
  %48 = vmatprep.subr.bf16.mxu0 0
  %49 = vmatpush1.bf16.msra.mxu0 0
  %50 = vmatprep.subr.bf16.mxu0 0
  %51 = vmatpush1.bf16.msra.mxu0 0
  %52 = vmatprep.subr.bf16.mxu0 0
  %53 = vmatpush1.bf16.msra.mxu0 0
  %54 = vmatprep.subr.bf16.mxu0 0
  %55 = vmatpush1.bf16.msra.mxu0 0
  %56 = vmatprep.subr.bf16.mxu0 0
  %57 = vmatpush1.bf16.msra.mxu0 0
  %58 = vmatprep.subr.bf16.mxu0 0
  %59 = vmatpush1.bf16.msra.mxu0 0
  %60 = vmatprep.subr.bf16.mxu0 0
  %61 = vmatpush1.bf16.msra.mxu0 0
  %62 = vmatprep.subr.bf16.mxu0 0
  %63 = vmatpush1.bf16.msra.mxu0 0
  %64 = vmatprep.subr.bf16.mxu0 0
  %65 = vmatpush1.bf16.msra.mxu0 0
  %66 = vmatprep.subr.bf16.mxu0 0
  %67 = vmatpush1.bf16.msra.mxu0 0
  %68 = vmatprep.subr.bf16.mxu0 0
  %69 = vmatpush1.bf16.msra.mxu0 0
  %70 = vmatprep.subr.bf16.mxu0 0
  %71 = vmatpush1.bf16.msra.mxu0 0
  %72 = vmatprep.subr.bf16.mxu0 0
  %73 = vmatpush1.bf16.msra.mxu0 0
  %74 = vmatprep.subr.bf16.mxu0 0
  %75 = vmatpush1.bf16.msra.mxu0 0
  %76 = vmatprep.subr.bf16.mxu0 0
  %77 = vmatpush1.bf16.msra.mxu0 0
  %78 = vmatprep.mubr.bf16.mxu0 0
  %79 = vmatmul.mubr.bf16.gmra.mrb[0].mxu0 %v44
  %v80 = vpop.f32.mrb[0].mxu0
  %v81 = vadd.f32 %v24, %v80
  %v82 = vpop.f32.mrb[0].mxu0
  %v83 = vpop.f32.mrb[0].mxu0
  %v84 = vadd.f32 %v29, %v83
  %v85 = vpop.f32.mrb[0].mxu0
  %86 = vdwg.mxu0
  %v87 = vmax.f32 %v81, 0.0
  %v88 = vmax.f32 %v84, 0.0
  %v89 = vpack.c.bf16 %v88, %v87
  %v91 = vunpack.c.l.b16 %v89
  %v92 = vunpack.c.h.b16 %v89
  %v93 = vpack.c.b16 %v91, %v91
  %v94 = vpack.c.b16 %v92, %v92
  %97 = vst [vmem:[%s3] sm:$0xf] %v93
  %98 = vst [vmem:[%s3 + $0x4] sm:$0xf] %v94
  // Predicated region
  $region14: #{_lambda_.21} parent=0 // pred_check
    _
  $region15: #{_lambda_.21} parent=0 // pred_check_branch
    %100 = sbr.rel (0) target = $region17
  $region16: #{_lambda_.21} parent=0 // pred_region
    _
  $region17: #{_lambda_.21} parent=0 // pred_fallthru
    _
  // Predicated region
  $region18: #{_lambda_.21} parent=0 // pred_check
    _
  $region19: #{_lambda_.21} parent=0 // pred_check_branch
    %102 = sbr.rel (0) target = $region21
  $region20: #{_lambda_.21} parent=0 // pred_region
    _
  $region21: #{_lambda_.21} parent=0 // pred_fallthru
    _

// kernel: _lambda_.20
$region0: #{_lambda_.20}
  #allocation0 [shape = 'u32[]', space=smem, size = 0x4, offset = 0x4, fixed_abs, tag = 'smem constant byte address 0x4 - core index']
  #allocation1 [shape = 'u32[144,128]{1,0:T(1,128)}', space=vmem, size = 0x12000, scoped, tag = 'internal scratch']
  %s0 = inlined_call_operand.vmem [shape: bf16[8,512], index: 0, kind: input, shape index: {}]
  %s1 = inlined_call_operand.vmem [shape: bf16[8,8], index: 1, kind: input, shape index: {}]
  %s2 = inlined_call_operand.vmem [shape: f32[8,1], index: 2, kind: input, shape index: {}]
  %s3 = inlined_call_operand.vmem [shape: bf16[8,512], index: 3, kind: output, shape index: {}]
  %s4 = sld [smem:[#allocation0]]
  $region45: #{_lambda_.20} parent=0
    _
  %s6 = ssub.s32 1, %s4
  %s7 = scalar_select 0, %s6, %s4
  loop: start=0, step=1, limit=4
  $region2: #{_lambda_.20} parent=0 // loop_pre_header
    _
  $region3: #{_lambda_.20} parent=0 // loop_header
    %s9 = sphi 0, %s13
    %p10 = scmp.ge.s32.totalorder %s9, 4
    %s19 = sphi 0, %s21
    %s22 = sphi 0, %s19
    %s23 = sphi 0, %s22
    %s39 = sphi 0, %s23
    %s43 = sphi 0, %s43
    %s45 = sphi 0, %s43
    %s46 = sphi 0, %s45
    %s60 = sphi 0, %s46
    %s64 = sphi 0, %s64
    %s66 = sphi 0, %s64
    %s67 = sphi 0, %s66
    %s81 = sphi 0, %s67
    %s87 = sphi 0, %s89
    %s90 = sphi 0, %s87
    %s91 = sphi 0, %s90
    %s107 = sphi 0, %s91
  $region4: #{_lambda_.20} parent=0 // loop_header_branch
    %12 = sbr.rel (%p10) target = $region8
  $region5: #{_lambda_.20} parent=0 // loop_body
    %s14 = ssub.s32 %s9, 1
    %s15 = ssub.s32 %s9, 2
    %s16 = sadd.s32 %s9, 1
    %s17 = ssub.s32 %s9, %s16
    %p18 = scmp.eq.s32.totalorder %s17, 0
    %s20 = sadd.s32 %s19, 1
    %s21 = scalar_select %p18, %s19, %s20
    %p24 = pneg %p18
    %p25 = scmp.eq.s32.totalorder %s9, 1
    %p26 = por %p24, %p25
    %p27 = scmp.ne.s32.totalorder %s19, %s22
    %p28 = scmp.eq.s32.totalorder %s9, 0
    %p29 = por %p27, %p28
    %p30 = scmp.ne.s32.totalorder %s19, %s22
    %p31 = scmp.eq.s32.totalorder %s14, 1
    %p32 = por %p30, %p31
    %p33 = scmp.ne.s32.totalorder %s22, %s23
    %p34 = scmp.eq.s32.totalorder %s14, 0
    %p35 = por %p33, %p34
    %p36 = scmp.ne.s32.totalorder %s22, %s23
    %p37 = scmp.eq.s32.totalorder %s15, 1
    %p38 = por %p36, %p37
    %p40 = scmp.ne.s32.totalorder %s23, %s39
    %p41 = scmp.eq.s32.totalorder %s15, 0
    %p42 = por %p40, %p41
    %s44 = sadd.s32 %s43, 1
    %p47 = scmp.eq.s32.totalorder %s9, 1
    %p48 = scmp.ne.s32.totalorder %s43, %s45
    %p49 = scmp.eq.s32.totalorder %s9, 0
    %p50 = por %p48, %p49
    %p51 = scmp.ne.s32.totalorder %s43, %s45
    %p52 = scmp.eq.s32.totalorder %s14, 1
    %p53 = por %p51, %p52
    %p54 = scmp.ne.s32.totalorder %s45, %s46
    %p55 = scmp.eq.s32.totalorder %s14, 0
    %p56 = por %p54, %p55
    %p57 = scmp.ne.s32.totalorder %s45, %s46
    %p58 = scmp.eq.s32.totalorder %s15, 1
    %p59 = por %p57, %p58
    %p61 = scmp.ne.s32.totalorder %s46, %s60
    %p62 = scmp.eq.s32.totalorder %s15, 0
    %p63 = por %p61, %p62
    %s65 = sadd.s32 %s64, 1
    %p68 = scmp.eq.s32.totalorder %s9, 1
    %p69 = scmp.ne.s32.totalorder %s64, %s66
    %p70 = scmp.eq.s32.totalorder %s9, 0
    %p71 = por %p69, %p70
    %p72 = scmp.ne.s32.totalorder %s64, %s66
    %p73 = scmp.eq.s32.totalorder %s14, 1
    %p74 = por %p72, %p73
    %p75 = scmp.ne.s32.totalorder %s66, %s67
    %p76 = scmp.eq.s32.totalorder %s14, 0
    %p77 = por %p75, %p76
    %p78 = scmp.ne.s32.totalorder %s66, %s67
    %p79 = scmp.eq.s32.totalorder %s15, 1
    %p80 = por %p78, %p79
    %p82 = scmp.ne.s32.totalorder %s67, %s81
    %p83 = scmp.eq.s32.totalorder %s15, 0
    %p84 = por %p82, %p83
    %s85 = ssub.s32 %s9, %s16
    %p86 = scmp.eq.s32.totalorder %s85, 0
    %s88 = sadd.s32 %s87, 1
    %s89 = scalar_select %p86, %s87, %s88
    %p92 = pneg %p86
    %p93 = scmp.eq.s32.totalorder %s9, 1
    %p94 = por %p92, %p93
    %p95 = scmp.ne.s32.totalorder %s87, %s90
    %p96 = scmp.eq.s32.totalorder %s9, 0
    %p97 = por %p95, %p96
    %p98 = scmp.ne.s32.totalorder %s87, %s90
    %p99 = scmp.eq.s32.totalorder %s14, 1
    %p100 = por %p98, %p99
    %p101 = scmp.ne.s32.totalorder %s90, %s91
    %p102 = scmp.eq.s32.totalorder %s14, 0
    %p103 = por %p101, %p102
    %p104 = scmp.ne.s32.totalorder %s90, %s91
    %p105 = scmp.eq.s32.totalorder %s15, 1
    %p106 = por %p104, %p105
    %p108 = scmp.ne.s32.totalorder %s91, %s107
    %p109 = scmp.eq.s32.totalorder %s15, 0
    %p110 = por %p108, %p109
    %p111 = scmp.le.s32.totalorder 1, %s9
    %p112 = scmp.lt.s32.totalorder %s9, 3
    %p113 = pnand %p111, %p112
    %p114 = pneg %p113
    // Predicated region
    $region9: #{_lambda_.20} parent=5 // pred_check
      _
    $region10: #{_lambda_.20} parent=5 // pred_check_branch
      %116 = sbr.rel (%p113) target = $region12
    $region11: #{_lambda_.20} parent=5 // pred_region
      %s117 = ssub.s32 %s9, 1
      // Predicated region
      $region13: #{_lambda_.20} parent=11 // pred_check
        %p118 = pneg %p56
      $region14: #{_lambda_.20} parent=11 // pred_check_branch
        %120 = sbr.rel (%p118) target = $region16
      $region15: #{_lambda_.20} parent=11 // pred_region
        _
      $region16: #{_lambda_.20} parent=11 // pred_fallthru
        _
      // Predicated region
      $region17: #{_lambda_.20} parent=11 // pred_check
        %p121 = pneg %p77
      $region18: #{_lambda_.20} parent=11 // pred_check_branch
        %123 = sbr.rel (%p121) target = $region20
      $region19: #{_lambda_.20} parent=11 // pred_region
        _
      $region20: #{_lambda_.20} parent=11 // pred_fallthru
        _
    $region12: #{_lambda_.20} parent=5 // pred_fallthru
      _
    %p124 = scmp.lt.s32.totalorder %s9, 2
    // Predicated region
    $region21: #{_lambda_.20} parent=5 // pred_check
      %p125 = pneg %p124
    $region22: #{_lambda_.20} parent=5 // pred_check_branch
      %127 = sbr.rel (%p125) target = $region24
    $region23: #{_lambda_.20} parent=5 // pred_region
      // Predicated region
      $region25: #{_lambda_.20} parent=23 // pred_check
        %p128 = pneg %p29
      $region26: #{_lambda_.20} parent=23 // pred_check_branch
        %130 = sbr.rel (%p128) target = $region28
      $region27: #{_lambda_.20} parent=23 // pred_region
        %s131 = smul.u32 2, %s9
        %p132 = scmp.lt.s32.totalorder %s131, 3
        %s133 = scalar_select %p132, %s131, 3
        %s134 = smul.addr %s133, 4
        %s135 = scalar_lea.vmem %s0, %s134
        %s136 = smul.u32 2, %s9
      $region28: #{_lambda_.20} parent=23 // pred_fallthru
        _
    $region24: #{_lambda_.20} parent=5 // pred_fallthru
      _
    %p137 = scmp.le.s32.totalorder 1, %s9
    %p138 = scmp.lt.s32.totalorder %s9, 3
    %p139 = pnand %p137, %p138
    %p140 = pneg %p139
    // Predicated region
    $region29: #{_lambda_.20} parent=5 // pred_check
      _
    $region30: #{_lambda_.20} parent=5 // pred_check_branch
      %142 = sbr.rel (%p139) target = $region32
    $region31: #{_lambda_.20} parent=5 // pred_region
      %s143 = ssub.s32 %s9, 1
      %s144 = smul.u32 2, %s14
      %p145 = scmp.lt.s32.totalorder %s144, 3
      %s146 = scalar_select %p145, %s144, 3
      %s147 = smul.addr %s146, 4
      %s148 = scalar_lea.vmem %s0, %s147
      %p149 = pneg %p35
      %p150 = pneg %p32
      %p151 = pneg %p56
      %p152 = pneg %p53
      %p153 = pneg %p77
      %p154 = pneg %p74
      %p155 = pneg %p103
      %p156 = pneg %p100
      %s157 = smul.u32 2, %s14
      %p158 = scmp.lt.s32.totalorder %s157, 3
      %s159 = scalar_select %p158, %s157, 3
      %s160 = smul.addr %s159, 4
      %s161 = scalar_lea.vmem %s3, %s160
      %s162 = smul.u32 2, %s14
      %p163 = scmp.lt.s32.totalorder %s162, 3
      %s164 = scalar_select %p163, %s162, 3
      %s165 = smul.addr %s164, 4
      %s166 = scalar_lea.vmem %s0, %s165
      %s167 = smul.u32 2, %s14
      %s168 = smul.u32 2, %s14
      %p169 = scmp.lt.s32.totalorder %s168, 3
      %s170 = scalar_select %p169, %s168, 3
      %s171 = smul.addr %s170, 4
      %s172 = scalar_lea.vmem %s3, %s171
      %s173 = smul.u32 2, %s14
      %v175 = vld [vmem:[%s1] sm:$0xf]
      %v176 = vld [vmem:[%s166] sm:$0xff]
      %v177 = vld [vmem:[%s2] sm:$0xff]
      %179 = vset.pattern.permute.xlu0 0
      %180 = vperm.xlu0 %179, %v177
      %v181 = vpop.permute.xlu0 %180
      %v184 = vunpack.c.l.b16 %v176
      %v185 = vunpack.c.h.b16 %v176
      %v186 = vpack.c.b16 %v184, %v184
      %v187 = vpack.c.b16 %v185, %v185
      %vm188 = vcmask 64512
      %v190 = vsel %vm188, %v175, 0
      %vm192 = vcmask 1043456
      %v194 = vsel %vm192, %v186, 0
      %v197 = vsel %vm192, %v187, 0
      %199 = vmatprep.subr.bf16.mxu0 %v197
      %200 = vmatpush1.bf16.msra.mxu0 %v194
      %201 = vmatprep.subr.bf16.mxu0 0
      %202 = vmatpush1.bf16.msra.mxu0 0
      %203 = vmatprep.subr.bf16.mxu0 0
      %204 = vmatpush1.bf16.msra.mxu0 0
      %205 = vmatprep.subr.bf16.mxu0 0
      %206 = vmatpush1.bf16.msra.mxu0 0
      %207 = vmatprep.subr.bf16.mxu0 0
      %208 = vmatpush1.bf16.msra.mxu0 0
      %209 = vmatprep.subr.bf16.mxu0 0
      %210 = vmatpush1.bf16.msra.mxu0 0
      %211 = vmatprep.subr.bf16.mxu0 0
      %212 = vmatpush1.bf16.msra.mxu0 0
      %213 = vmatprep.subr.bf16.mxu0 0
      %214 = vmatpush1.bf16.msra.mxu0 0
      %215 = vmatprep.subr.bf16.mxu0 0
      %216 = vmatpush1.bf16.msra.mxu0 0
      %217 = vmatprep.subr.bf16.mxu0 0
      %218 = vmatpush1.bf16.msra.mxu0 0
      %219 = vmatprep.subr.bf16.mxu0 0
      %220 = vmatpush1.bf16.msra.mxu0 0
      %221 = vmatprep.subr.bf16.mxu0 0
      %222 = vmatpush1.bf16.msra.mxu0 0
      %223 = vmatprep.subr.bf16.mxu0 0
      %224 = vmatpush1.bf16.msra.mxu0 0
      %225 = vmatprep.subr.bf16.mxu0 0
      %226 = vmatpush1.bf16.msra.mxu0 0
      %227 = vmatprep.subr.bf16.mxu0 0
      %228 = vmatpush1.bf16.msra.mxu0 0
      %229 = vmatprep.subr.bf16.mxu0 0
      %230 = vmatpush1.bf16.msra.mxu0 0
      %231 = vmatprep.mubr.bf16.mxu0 0
      %232 = vmatmul.mubr.bf16.gmra.mrb[0].mxu0 %v190
      %v233 = vpop.f32.mrb[0].mxu0
      %v234 = vadd.f32 %v181, %v233
      %v235 = vpop.f32.mrb[0].mxu0
      %v236 = vadd.f32 %v181, %v235
      %v237 = vpop.f32.mrb[0].mxu0
      %v238 = vpop.f32.mrb[0].mxu0
      %239 = vdwg.mxu0
      %v240 = vmax.f32 %v234, 0.0
      %v241 = vmax.f32 %v236, 0.0
      %v242 = vpack.c.bf16 %v240, %v240
      %v243 = vpack.c.bf16 %v241, %v241
      %v246 = vunpack.c.l.b16 %v242
      %v247 = vunpack.c.l.b16 %v243
      %v248 = vpack.c.b16 %v247, %v246
      %250 = vst [vmem:[%s172] sm:$0xff] %v248
      %s251 = smul.u32 2, %s14
      %p252 = scmp.lt.s32.totalorder %s251, 3
      %s253 = scalar_select %p252, %s251, 3
      %s254 = smul.addr %s253, 4
      %s255 = scalar_lea.vmem %s3, %s254
      // Predicated region
      $region33: #{_lambda_.20} parent=31 // pred_check
        %p256 = pneg %p100
      $region34: #{_lambda_.20} parent=31 // pred_check_branch
        %258 = sbr.rel (%p256) target = $region36
      $region35: #{_lambda_.20} parent=31 // pred_region
        %s259 = smul.u32 2, %s14
      $region36: #{_lambda_.20} parent=31 // pred_fallthru
        _
    $region32: #{_lambda_.20} parent=5 // pred_fallthru
      _
    %p260 = scmp.le.s32.totalorder 2, %s9
    // Predicated region
    $region37: #{_lambda_.20} parent=5 // pred_check
      %p261 = pneg %p260
    $region38: #{_lambda_.20} parent=5 // pred_check_branch
      %263 = sbr.rel (%p261) target = $region40
    $region39: #{_lambda_.20} parent=5 // pred_region
      %s264 = ssub.s32 %s9, 2
      // Predicated region
      $region41: #{_lambda_.20} parent=39 // pred_check
        %p265 = pneg %p106
      $region42: #{_lambda_.20} parent=39 // pred_check_branch
        %267 = sbr.rel (%p265) target = $region44
      $region43: #{_lambda_.20} parent=39 // pred_region
        %s268 = smul.u32 2, %s15
        %p269 = scmp.lt.s32.totalorder %s268, 3
        %s270 = scalar_select %p269, %s268, 3
        %s271 = smul.addr %s270, 4
        %s272 = scalar_lea.vmem %s3, %s271
      $region44: #{_lambda_.20} parent=39 // pred_fallthru
        _
    $region40: #{_lambda_.20} parent=5 // pred_fallthru
      _
  $region6: #{_lambda_.20} parent=0 // loop_footer
    %s13 = sadd.s32 1, %s9
  $region7: #{_lambda_.20} parent=0 // loop_footer_branch
    %8 = sbr.rel target = $region3
  $region8: #{_lambda_.20} parent=0 // loop_exit
    _

// kernel: _lambda_.22
$region0: #{_lambda_.22}
  #allocation0 [shape = 'u32[]', space=smem, size = 0x4, offset = 0x4, fixed_abs, tag = 'smem constant byte address 0x4 - core index']
  #allocation1 [shape = 'u32[144,128]{1,0:T(1,128)}', space=vmem, size = 0x12000, scoped, tag = 'internal scratch']
  %s0 = inlined_call_operand.vmem [shape: bf16[216,128], index: 0, kind: input, shape index: {}]
  %s1 = inlined_call_operand.vmem [shape: bf16[16,216], index: 1, kind: input, shape index: {}]
  %s2 = inlined_call_operand.vmem [shape: f32[16,1], index: 2, kind: input, shape index: {}]
  %s3 = inlined_call_operand.vmem [shape: bf16[16,128], index: 3, kind: output, shape index: {}]
  %s4 = sld [smem:[#allocation0]]
  $region22: #{_lambda_.22} parent=0
    _
  %s6 = ssub.s32 1, %s4
  %s7 = scalar_select 0, %s6, %s4
  // Predicated region
  $region2: #{_lambda_.22} parent=0 // pred_check
    _
  $region3: #{_lambda_.22} parent=0 // pred_check_branch
    %9 = sbr.rel (0) target = $region5
  $region4: #{_lambda_.22} parent=0 // pred_region
    _
  $region5: #{_lambda_.22} parent=0 // pred_fallthru
    _
  // Predicated region
  $region6: #{_lambda_.22} parent=0 // pred_check
    _
  $region7: #{_lambda_.22} parent=0 // pred_check_branch
    %11 = sbr.rel (0) target = $region9
  $region8: #{_lambda_.22} parent=0 // pred_region
    _
  $region9: #{_lambda_.22} parent=0 // pred_fallthru
    _
  // Predicated region
  $region10: #{_lambda_.22} parent=0 // pred_check
    _
  $region11: #{_lambda_.22} parent=0 // pred_check_branch
    %13 = sbr.rel (0) target = $region13
  $region12: #{_lambda_.22} parent=0 // pred_region
    _
  $region13: #{_lambda_.22} parent=0 // pred_fallthru
    _
  %v15 = vld [vmem:[%s1] sm:$0xff]
  %v16 = vld [vmem:[%s1 + $0x8] sm:$0xff]
  %v17 = vld [vmem:[%s0] sm:$0xf]
  %v18 = vld [vmem:[%s0 + $0x4] sm:$0xf]
  %v19 = vld [vmem:[%s0 + $0x8] sm:$0xf]
  %v20 = vld [vmem:[%s0 + $0xc] sm:$0xf]
  %v21 = vld [vmem:[%s0 + $0x10] sm:$0xf]
  %v22 = vld [vmem:[%s0 + $0x14] sm:$0xf]
  %v23 = vld [vmem:[%s0 + $0x18] sm:$0xf]
  %v24 = vld [vmem:[%s0 + $0x1c] sm:$0xf]
  %v25 = vld [vmem:[%s0 + $0x20] sm:$0xf]
  %v26 = vld [vmem:[%s0 + $0x24] sm:$0xf]
  %v27 = vld [vmem:[%s0 + $0x28] sm:$0xf]
  %v28 = vld [vmem:[%s0 + $0x2c] sm:$0xf]
  %v29 = vld [vmem:[%s0 + $0x30] sm:$0xf]
  %v30 = vld [vmem:[%s0 + $0x34] sm:$0xf]
  %v31 = vld [vmem:[%s0 + $0x38] sm:$0xf]
  %v32 = vld [vmem:[%s0 + $0x3c] sm:$0xf]
  %v33 = vld [vmem:[%s0 + $0x40] sm:$0xf]
  %v34 = vld [vmem:[%s0 + $0x44] sm:$0xf]
  %v35 = vld [vmem:[%s0 + $0x48] sm:$0xf]
  %v36 = vld [vmem:[%s0 + $0x4c] sm:$0xf]
  %v37 = vld [vmem:[%s0 + $0x50] sm:$0xf]
  %v38 = vld [vmem:[%s0 + $0x54] sm:$0xf]
  %v39 = vld [vmem:[%s0 + $0x58] sm:$0xf]
  %v40 = vld [vmem:[%s0 + $0x5c] sm:$0xf]
  %v41 = vld [vmem:[%s0 + $0x60] sm:$0xf]
  %v42 = vld [vmem:[%s0 + $0x64] sm:$0xf]
  %v43 = vld [vmem:[%s0 + $0x68] sm:$0xf]
  %v44 = vld [vmem:[%s2] sm:$0xff]
  %v45 = vld [vmem:[%s2 + $0x8] sm:$0xff]
  %47 = vset.pattern.permute.xlu0 0
  %48 = vperm.xlu0 %47, %v44
  %v49 = vpop.permute.xlu0 %48
  %52 = vset.pattern.permute.xlu0 0
  %53 = vperm.xlu0 %52, %v45
  %v54 = vpop.permute.xlu0 %53
  %v58 = vunpack.c.l.b16 %v15
  %v59 = vunpack.c.h.b16 %v15
  %v60 = vunpack.c.l.b16 %v16
  %v61 = vunpack.c.h.b16 %v16
  %v62 = vpack.c.b16 %v60, %v58
  %v63 = vpack.c.b16 %v61, %v59
  %v92 = vunpack.c.l.b16 %v17
  %v93 = vunpack.c.l.b16 %v18
  %v94 = vunpack.c.l.b16 %v19
  %v95 = vunpack.c.l.b16 %v20
  %v96 = vunpack.c.l.b16 %v21
  %v97 = vunpack.c.l.b16 %v22
  %v98 = vunpack.c.l.b16 %v23
  %v99 = vunpack.c.l.b16 %v24
  %v100 = vunpack.c.l.b16 %v25
  %v101 = vunpack.c.l.b16 %v26
  %v102 = vunpack.c.l.b16 %v27
  %v103 = vunpack.c.l.b16 %v28
  %v104 = vunpack.c.l.b16 %v29
  %v105 = vunpack.c.l.b16 %v30
  %v106 = vunpack.c.l.b16 %v31
  %v107 = vunpack.c.l.b16 %v32
  %v108 = vunpack.c.l.b16 %v33
  %v109 = vunpack.c.l.b16 %v34
  %v110 = vunpack.c.l.b16 %v35
  %v111 = vunpack.c.l.b16 %v36
  %v112 = vunpack.c.l.b16 %v37
  %v113 = vunpack.c.l.b16 %v38
  %v114 = vunpack.c.l.b16 %v39
  %v115 = vunpack.c.l.b16 %v40
  %v116 = vunpack.c.l.b16 %v41
  %v117 = vunpack.c.l.b16 %v42
  %v118 = vunpack.c.l.b16 %v43
  %v119 = vpack.c.b16 %v93, %v92
  %v120 = vpack.c.b16 %v95, %v94
  %v121 = vpack.c.b16 %v97, %v96
  %v122 = vpack.c.b16 %v99, %v98
  %v123 = vpack.c.b16 %v101, %v100
  %v124 = vpack.c.b16 %v103, %v102
  %v125 = vpack.c.b16 %v105, %v104
  %v126 = vpack.c.b16 %v107, %v106
  %v127 = vpack.c.b16 %v109, %v108
  %v128 = vpack.c.b16 %v111, %v110
  %v129 = vpack.c.b16 %v113, %v112
  %v130 = vpack.c.b16 %v115, %v114
  %v131 = vpack.c.b16 %v117, %v116
  %v132 = vpack.c.b16 %v118, %v118
  %vm146 = vcmask 719872
  %v148 = vsel %vm146, %v63, 0
  %vm150 = vcmask 1043456
  %v152 = vsel %vm150, %v132, 0
  %154 = vmatprep.subr.bf16.mxu0 0
  %155 = vmatpush1.bf16.msra.mxu0 %v119
  %156 = vmatprep.subr.bf16.mxu0 0
  %157 = vmatpush1.bf16.msra.mxu0 %v120
  %158 = vmatprep.subr.bf16.mxu0 0
  %159 = vmatpush1.bf16.msra.mxu0 %v121
  %160 = vmatprep.subr.bf16.mxu0 0
  %161 = vmatpush1.bf16.msra.mxu0 %v122
  %162 = vmatprep.subr.bf16.mxu0 0
  %163 = vmatpush1.bf16.msra.mxu0 %v123
  %164 = vmatprep.subr.bf16.mxu0 0
  %165 = vmatpush1.bf16.msra.mxu0 %v124
  %166 = vmatprep.subr.bf16.mxu0 0
  %167 = vmatpush1.bf16.msra.mxu0 %v125
  %168 = vmatprep.subr.bf16.mxu0 0
  %169 = vmatpush1.bf16.msra.mxu0 %v126
  %170 = vmatprep.subr.bf16.mxu0 0
  %171 = vmatpush1.bf16.msra.mxu0 %v127
  %172 = vmatprep.subr.bf16.mxu0 0
  %173 = vmatpush1.bf16.msra.mxu0 %v128
  %174 = vmatprep.subr.bf16.mxu0 0
  %175 = vmatpush1.bf16.msra.mxu0 %v129
  %176 = vmatprep.subr.bf16.mxu0 0
  %177 = vmatpush1.bf16.msra.mxu0 %v130
  %178 = vmatprep.subr.bf16.mxu0 0
  %179 = vmatpush1.bf16.msra.mxu0 %v131
  %180 = vmatprep.subr.bf16.mxu0 0
  %181 = vmatpush1.bf16.msra.mxu0 %v152
  %182 = vmatprep.subr.bf16.mxu0 0
  %183 = vmatpush1.bf16.msra.mxu0 0
  %184 = vmatprep.subr.bf16.mxu0 0
  %185 = vmatpush1.bf16.msra.mxu0 0
  %186 = vmatprep.mubr.bf16.mxu0 %v148
  %187 = vmatmul.mubr.bf16.gmra.mrb[0].mxu0 %v62
  %v188 = vpop.f32.mrb[0].mxu0
  %v189 = vadd.f32 %v49, %v188
  %v190 = vpop.f32.mrb[0].mxu0
  %v191 = vpop.f32.mrb[0].mxu0
  %v192 = vadd.f32 %v54, %v191
  %v193 = vpop.f32.mrb[0].mxu0
  %194 = vdwg.mxu0
  %v195 = vmax.f32 %v189, 0.0
  %v196 = vmax.f32 %v192, 0.0
  %v197 = vpack.c.bf16 %v196, %v195
  %v199 = vunpack.c.l.b16 %v197
  %v200 = vunpack.c.h.b16 %v197
  %v201 = vpack.c.b16 %v199, %v199
  %v202 = vpack.c.b16 %v200, %v200
  %205 = vst [vmem:[%s3] sm:$0xf] %v201
  %206 = vst [vmem:[%s3 + $0x4] sm:$0xf] %v202
  // Predicated region
  $region14: #{_lambda_.22} parent=0 // pred_check
    _
  $region15: #{_lambda_.22} parent=0 // pred_check_branch
    %208 = sbr.rel (0) target = $region17
  $region16: #{_lambda_.22} parent=0 // pred_region
    _
  $region17: #{_lambda_.22} parent=0 // pred_fallthru
    _
  // Predicated region
  $region18: #{_lambda_.22} parent=0 // pred_check
    _
  $region19: #{_lambda_.22} parent=0 // pred_check_branch
    %210 = sbr.rel (0) target = $region21
  $region20: #{_lambda_.22} parent=0 // pred_region
    _
  $region21: #{_lambda_.22} parent=0 // pred_fallthru
    _

// kernel: _lambda_.24
$region0: #{_lambda_.24}
  #allocation0 [shape = 'u32[]', space=smem, size = 0x4, offset = 0x4, fixed_abs, tag = 'smem constant byte address 0x4 - core index']
  #allocation1 [shape = 'u32[144,128]{1,0:T(1,128)}', space=vmem, size = 0x12000, scoped, tag = 'internal scratch']
  %s0 = inlined_call_operand.vmem [shape: bf16[16,32], index: 0, kind: input, shape index: {}]
  %s1 = inlined_call_operand.vmem [shape: bf16[24,16], index: 1, kind: input, shape index: {}]
  %s2 = inlined_call_operand.vmem [shape: f32[24,1], index: 2, kind: input, shape index: {}]
  %s3 = inlined_call_operand.vmem [shape: bf16[24,32], index: 3, kind: output, shape index: {}]
  %s4 = sld [smem:[#allocation0]]
  $region22: #{_lambda_.24} parent=0
    _
  %s6 = ssub.s32 1, %s4
  %s7 = scalar_select 0, %s6, %s4
  // Predicated region
  $region2: #{_lambda_.24} parent=0 // pred_check
    _
  $region3: #{_lambda_.24} parent=0 // pred_check_branch
    %9 = sbr.rel (0) target = $region5
  $region4: #{_lambda_.24} parent=0 // pred_region
    _
  $region5: #{_lambda_.24} parent=0 // pred_fallthru
    _
  // Predicated region
  $region6: #{_lambda_.24} parent=0 // pred_check
    _
  $region7: #{_lambda_.24} parent=0 // pred_check_branch
    %11 = sbr.rel (0) target = $region9
  $region8: #{_lambda_.24} parent=0 // pred_region
    _
  $region9: #{_lambda_.24} parent=0 // pred_fallthru
    _
  // Predicated region
  $region10: #{_lambda_.24} parent=0 // pred_check
    _
  $region11: #{_lambda_.24} parent=0 // pred_check_branch
    %13 = sbr.rel (0) target = $region13
  $region12: #{_lambda_.24} parent=0 // pred_region
    _
  $region13: #{_lambda_.24} parent=0 // pred_fallthru
    _
  %v15 = vld [vmem:[%s1] sm:$0xf]
  %v16 = vld [vmem:[%s1 + $0x4] sm:$0xf]
  %v17 = vld [vmem:[%s1 + $0x8] sm:$0xf]
  %v18 = vld [vmem:[%s0] sm:$0xf]
  %v19 = vld [vmem:[%s0 + $0x4] sm:$0xf]
  %v20 = vld [vmem:[%s2] sm:$0xff]
  %v21 = vld [vmem:[%s2 + $0x8] sm:$0xff]
  %v22 = vld [vmem:[%s2 + $0x10] sm:$0xff]
  %24 = vset.pattern.permute.xlu0 0
  %25 = vperm.xlu0 %24, %v20
  %v26 = vpop.permute.xlu0 %25
  %29 = vset.pattern.permute.xlu0 0
  %30 = vperm.xlu0 %29, %v21
  %v31 = vpop.permute.xlu0 %30
  %34 = vset.pattern.permute.xlu0 0
  %35 = vperm.xlu0 %34, %v22
  %v36 = vpop.permute.xlu0 %35
  %v41 = vunpack.c.l.b16 %v15
  %v42 = vunpack.c.l.b16 %v16
  %v43 = vunpack.c.l.b16 %v17
  %v44 = vpack.c.b16 %v42, %v41
  %v45 = vpack.c.b16 %v43, %v43
  %v48 = vunpack.c.l.b16 %v18
  %v49 = vunpack.c.l.b16 %v19
  %v50 = vpack.c.b16 %v49, %v48
  %vm52 = vcmask 130048
  %v54 = vsel %vm52, %v44, 0
  %v57 = vsel %vm52, %v45, 0
  %59 = vmatprep.subr.bf16.mxu0 0
  %60 = vmatpush1.bf16.msra.mxu0 %v50
  %61 = vmatprep.subr.bf16.mxu0 0
  %62 = vmatpush1.bf16.msra.mxu0 0
  %63 = vmatprep.subr.bf16.mxu0 0
  %64 = vmatpush1.bf16.msra.mxu0 0
  %65 = vmatprep.subr.bf16.mxu0 0
  %66 = vmatpush1.bf16.msra.mxu0 0
  %67 = vmatprep.subr.bf16.mxu0 0
  %68 = vmatpush1.bf16.msra.mxu0 0
  %69 = vmatprep.subr.bf16.mxu0 0
  %70 = vmatpush1.bf16.msra.mxu0 0
  %71 = vmatprep.subr.bf16.mxu0 0
  %72 = vmatpush1.bf16.msra.mxu0 0
  %73 = vmatprep.subr.bf16.mxu0 0
  %74 = vmatpush1.bf16.msra.mxu0 0
  %75 = vmatprep.subr.bf16.mxu0 0
  %76 = vmatpush1.bf16.msra.mxu0 0
  %77 = vmatprep.subr.bf16.mxu0 0
  %78 = vmatpush1.bf16.msra.mxu0 0
  %79 = vmatprep.subr.bf16.mxu0 0
  %80 = vmatpush1.bf16.msra.mxu0 0
  %81 = vmatprep.subr.bf16.mxu0 0
  %82 = vmatpush1.bf16.msra.mxu0 0
  %83 = vmatprep.subr.bf16.mxu0 0
  %84 = vmatpush1.bf16.msra.mxu0 0
  %85 = vmatprep.subr.bf16.mxu0 0
  %86 = vmatpush1.bf16.msra.mxu0 0
  %87 = vmatprep.subr.bf16.mxu0 0
  %88 = vmatpush1.bf16.msra.mxu0 0
  %89 = vmatprep.subr.bf16.mxu0 0
  %90 = vmatpush1.bf16.msra.mxu0 0
  %91 = vmatprep.mubr.bf16.mxu0 0
  %92 = vmatmul.mubr.bf16.gmra.mrb[0].mxu0 %v54
  %v93 = vpop.f32.mrb[0].mxu0
  %v94 = vadd.f32 %v26, %v93
  %v95 = vpop.f32.mrb[0].mxu0
  %v96 = vpop.f32.mrb[0].mxu0
  %v97 = vadd.f32 %v31, %v96
  %v98 = vpop.f32.mrb[0].mxu0
  %99 = vmatprep.mubr.bf16.mxu0 0
  %100 = vmatmul.mubr.bf16.gmra.mrb[0].mxu0 %v57
  %v101 = vpop.f32.mrb[0].mxu0
  %v102 = vadd.f32 %v36, %v101
  %v103 = vpop.f32.mrb[0].mxu0
  %v104 = vpop.f32.mrb[0].mxu0
  %v105 = vpop.f32.mrb[0].mxu0
  %106 = vdwg.mxu0
  %v107 = vmax.f32 %v94, 0.0
  %v108 = vmax.f32 %v97, 0.0
  %v109 = vmax.f32 %v102, 0.0
  %v110 = vpack.c.bf16 %v108, %v107
  %v111 = vpack.c.bf16 %v109, %v109
  %v114 = vunpack.c.l.b16 %v110
  %v115 = vunpack.c.h.b16 %v110
  %v116 = vunpack.c.l.b16 %v111
  %v117 = vpack.c.b16 %v114, %v114
  %v118 = vpack.c.b16 %v115, %v115
  %v119 = vpack.c.b16 %v116, %v116
  %vm123 = vcmask 257024
  %124 = vst.msk [vmem:[%s3] sm:$0xf] %vm123, %v117
  %125 = vst.msk [vmem:[%s3 + $0x4] sm:$0xf] %vm123, %v118
  %126 = vst.msk [vmem:[%s3 + $0x8] sm:$0xf] %vm123, %v119
  // Predicated region
  $region14: #{_lambda_.24} parent=0 // pred_check
    _
  $region15: #{_lambda_.24} parent=0 // pred_check_branch
    %128 = sbr.rel (0) target = $region17
  $region16: #{_lambda_.24} parent=0 // pred_region
    _
  $region17: #{_lambda_.24} parent=0 // pred_fallthru
    _
  // Predicated region
  $region18: #{_lambda_.24} parent=0 // pred_check
    _
  $region19: #{_lambda_.24} parent=0 // pred_check_branch
    %130 = sbr.rel (0) target = $region21
  $region20: #{_lambda_.24} parent=0 // pred_region
    _
  $region21: #{_lambda_.24} parent=0 // pred_fallthru
    _

// kernel: _lambda_.23
$region0: #{_lambda_.23}
  #allocation0 [shape = 'u32[]', space=smem, size = 0x4, offset = 0x4, fixed_abs, tag = 'smem constant byte address 0x4 - core index']
  #allocation1 [shape = 'u32[144,128]{1,0:T(1,128)}', space=vmem, size = 0x12000, scoped, tag = 'internal scratch']
  %s0 = inlined_call_operand.vmem [shape: bf16[144,32], index: 0, kind: input, shape index: {}]
  %s1 = inlined_call_operand.vmem [shape: bf16[16,144], index: 1, kind: input, shape index: {}]
  %s2 = inlined_call_operand.vmem [shape: f32[16,1], index: 2, kind: input, shape index: {}]
  %s3 = inlined_call_operand.vmem [shape: bf16[16,32], index: 3, kind: output, shape index: {}]
  %s4 = sld [smem:[#allocation0]]
  $region22: #{_lambda_.23} parent=0
    _
  %s6 = ssub.s32 1, %s4
  %s7 = scalar_select 0, %s6, %s4
  // Predicated region
  $region2: #{_lambda_.23} parent=0 // pred_check
    _
  $region3: #{_lambda_.23} parent=0 // pred_check_branch
    %9 = sbr.rel (0) target = $region5
  $region4: #{_lambda_.23} parent=0 // pred_region
    _
  $region5: #{_lambda_.23} parent=0 // pred_fallthru
    _
  // Predicated region
  $region6: #{_lambda_.23} parent=0 // pred_check
    _
  $region7: #{_lambda_.23} parent=0 // pred_check_branch
    %11 = sbr.rel (0) target = $region9
  $region8: #{_lambda_.23} parent=0 // pred_region
    _
  $region9: #{_lambda_.23} parent=0 // pred_fallthru
    _
  // Predicated region
  $region10: #{_lambda_.23} parent=0 // pred_check
    _
  $region11: #{_lambda_.23} parent=0 // pred_check_branch
    %13 = sbr.rel (0) target = $region13
  $region12: #{_lambda_.23} parent=0 // pred_region
    _
  $region13: #{_lambda_.23} parent=0 // pred_fallthru
    _
  %v15 = vld [vmem:[%s1] sm:$0xff]
  %v16 = vld [vmem:[%s1 + $0x8] sm:$0xff]
  %v17 = vld [vmem:[%s0] sm:$0xf]
  %v18 = vld [vmem:[%s0 + $0x4] sm:$0xf]
  %v19 = vld [vmem:[%s0 + $0x8] sm:$0xf]
  %v20 = vld [vmem:[%s0 + $0xc] sm:$0xf]
  %v21 = vld [vmem:[%s0 + $0x10] sm:$0xf]
  %v22 = vld [vmem:[%s0 + $0x14] sm:$0xf]
  %v23 = vld [vmem:[%s0 + $0x18] sm:$0xf]
  %v24 = vld [vmem:[%s0 + $0x1c] sm:$0xf]
  %v25 = vld [vmem:[%s0 + $0x20] sm:$0xf]
  %v26 = vld [vmem:[%s0 + $0x24] sm:$0xf]
  %v27 = vld [vmem:[%s0 + $0x28] sm:$0xf]
  %v28 = vld [vmem:[%s0 + $0x2c] sm:$0xf]
  %v29 = vld [vmem:[%s0 + $0x30] sm:$0xf]
  %v30 = vld [vmem:[%s0 + $0x34] sm:$0xf]
  %v31 = vld [vmem:[%s0 + $0x38] sm:$0xf]
  %v32 = vld [vmem:[%s0 + $0x3c] sm:$0xf]
  %v33 = vld [vmem:[%s0 + $0x40] sm:$0xf]
  %v34 = vld [vmem:[%s0 + $0x44] sm:$0xf]
  %v35 = vld [vmem:[%s2] sm:$0xff]
  %v36 = vld [vmem:[%s2 + $0x8] sm:$0xff]
  %38 = vset.pattern.permute.xlu0 0
  %39 = vperm.xlu0 %38, %v35
  %v40 = vpop.permute.xlu0 %39
  %43 = vset.pattern.permute.xlu0 0
  %44 = vperm.xlu0 %43, %v36
  %v45 = vpop.permute.xlu0 %44
  %v49 = vunpack.c.l.b16 %v15
  %v50 = vunpack.c.h.b16 %v15
  %v51 = vunpack.c.l.b16 %v16
  %v52 = vunpack.c.h.b16 %v16
  %v53 = vpack.c.b16 %v51, %v49
  %v54 = vpack.c.b16 %v52, %v50
  %v74 = vunpack.c.l.b16 %v17
  %v75 = vunpack.c.l.b16 %v18
  %v76 = vunpack.c.l.b16 %v19
  %v77 = vunpack.c.l.b16 %v20
  %v78 = vunpack.c.l.b16 %v21
  %v79 = vunpack.c.l.b16 %v22
  %v80 = vunpack.c.l.b16 %v23
  %v81 = vunpack.c.l.b16 %v24
  %v82 = vunpack.c.l.b16 %v25
  %v83 = vunpack.c.l.b16 %v26
  %v84 = vunpack.c.l.b16 %v27
  %v85 = vunpack.c.l.b16 %v28
  %v86 = vunpack.c.l.b16 %v29
  %v87 = vunpack.c.l.b16 %v30
  %v88 = vunpack.c.l.b16 %v31
  %v89 = vunpack.c.l.b16 %v32
  %v90 = vunpack.c.l.b16 %v33
  %v91 = vunpack.c.l.b16 %v34
  %v92 = vpack.c.b16 %v75, %v74
  %v93 = vpack.c.b16 %v77, %v76
  %v94 = vpack.c.b16 %v79, %v78
  %v95 = vpack.c.b16 %v81, %v80
  %v96 = vpack.c.b16 %v83, %v82
  %v97 = vpack.c.b16 %v85, %v84
  %v98 = vpack.c.b16 %v87, %v86
  %v99 = vpack.c.b16 %v89, %v88
  %v100 = vpack.c.b16 %v91, %v90
  %vm110 = vcmask 130048
  %v112 = vsel %vm110, %v54, 0
  %114 = vmatprep.subr.bf16.mxu0 0
  %115 = vmatpush1.bf16.msra.mxu0 %v92
  %116 = vmatprep.subr.bf16.mxu0 0
  %117 = vmatpush1.bf16.msra.mxu0 %v93
  %118 = vmatprep.subr.bf16.mxu0 0
  %119 = vmatpush1.bf16.msra.mxu0 %v94
  %120 = vmatprep.subr.bf16.mxu0 0
  %121 = vmatpush1.bf16.msra.mxu0 %v95
  %122 = vmatprep.subr.bf16.mxu0 0
  %123 = vmatpush1.bf16.msra.mxu0 %v96
  %124 = vmatprep.subr.bf16.mxu0 0
  %125 = vmatpush1.bf16.msra.mxu0 %v97
  %126 = vmatprep.subr.bf16.mxu0 0
  %127 = vmatpush1.bf16.msra.mxu0 %v98
  %128 = vmatprep.subr.bf16.mxu0 0
  %129 = vmatpush1.bf16.msra.mxu0 %v99
  %130 = vmatprep.subr.bf16.mxu0 0
  %131 = vmatpush1.bf16.msra.mxu0 %v100
  %132 = vmatprep.subr.bf16.mxu0 0
  %133 = vmatpush1.bf16.msra.mxu0 0
  %134 = vmatprep.subr.bf16.mxu0 0
  %135 = vmatpush1.bf16.msra.mxu0 0
  %136 = vmatprep.subr.bf16.mxu0 0
  %137 = vmatpush1.bf16.msra.mxu0 0
  %138 = vmatprep.subr.bf16.mxu0 0
  %139 = vmatpush1.bf16.msra.mxu0 0
  %140 = vmatprep.subr.bf16.mxu0 0
  %141 = vmatpush1.bf16.msra.mxu0 0
  %142 = vmatprep.subr.bf16.mxu0 0
  %143 = vmatpush1.bf16.msra.mxu0 0
  %144 = vmatprep.subr.bf16.mxu0 0
  %145 = vmatpush1.bf16.msra.mxu0 0
  %146 = vmatprep.mubr.bf16.mxu0 %v112
  %147 = vmatmul.mubr.bf16.gmra.mrb[0].mxu0 %v53
  %v148 = vpop.f32.mrb[0].mxu0
  %v149 = vadd.f32 %v40, %v148
  %v150 = vpop.f32.mrb[0].mxu0
  %v151 = vpop.f32.mrb[0].mxu0
  %v152 = vadd.f32 %v45, %v151
  %v153 = vpop.f32.mrb[0].mxu0
  %154 = vdwg.mxu0
  %v155 = vmax.f32 %v149, 0.0
  %v156 = vmax.f32 %v152, 0.0
  %v157 = vpack.c.bf16 %v156, %v155
  %v159 = vunpack.c.l.b16 %v157
  %v160 = vunpack.c.h.b16 %v157
  %v161 = vpack.c.b16 %v159, %v159
  %v162 = vpack.c.b16 %v160, %v160
  %vm165 = vcmask 257024
  %166 = vst.msk [vmem:[%s3] sm:$0xf] %vm165, %v161
  %167 = vst.msk [vmem:[%s3 + $0x4] sm:$0xf] %vm165, %v162
  // Predicated region
  $region14: #{_lambda_.23} parent=0 // pred_check
    _
  $region15: #{_lambda_.23} parent=0 // pred_check_branch
    %169 = sbr.rel (0) target = $region17
  $region16: #{_lambda_.23} parent=0 // pred_region
    _
  $region17: #{_lambda_.23} parent=0 // pred_fallthru
    _
  // Predicated region
  $region18: #{_lambda_.23} parent=0 // pred_check
    _
  $region19: #{_lambda_.23} parent=0 // pred_check_branch
    %171 = sbr.rel (0) target = $region21
  $region20: #{_lambda_.23} parent=0 // pred_region
    _
  $region21: #{_lambda_.23} parent=0 // pred_fallthru
    _

// kernel: _lambda_.25
$region0: #{_lambda_.25}
  #allocation0 [shape = 'u32[]', space=smem, size = 0x4, offset = 0x4, fixed_abs, tag = 'smem constant byte address 0x4 - core index']
  #allocation1 [shape = 'u32[144,128]{1,0:T(1,128)}', space=vmem, size = 0x12000, scoped, tag = 'internal scratch']
  %s0 = inlined_call_operand.vmem [shape: bf16[16,128], index: 0, kind: input, shape index: {}]
  %s1 = inlined_call_operand.vmem [shape: bf16[32,16], index: 1, kind: input, shape index: {}]
  %s2 = inlined_call_operand.vmem [shape: f32[32,1], index: 2, kind: input, shape index: {}]
  %s3 = inlined_call_operand.vmem [shape: bf16[32,128], index: 3, kind: output, shape index: {}]
  %s4 = sld [smem:[#allocation0]]
  $region22: #{_lambda_.25} parent=0
    _
  %s6 = ssub.s32 1, %s4
  %s7 = scalar_select 0, %s6, %s4
  // Predicated region
  $region2: #{_lambda_.25} parent=0 // pred_check
    _
  $region3: #{_lambda_.25} parent=0 // pred_check_branch
    %9 = sbr.rel (0) target = $region5
  $region4: #{_lambda_.25} parent=0 // pred_region
    _
  $region5: #{_lambda_.25} parent=0 // pred_fallthru
    _
  // Predicated region
  $region6: #{_lambda_.25} parent=0 // pred_check
    _
  $region7: #{_lambda_.25} parent=0 // pred_check_branch
    %11 = sbr.rel (0) target = $region9
  $region8: #{_lambda_.25} parent=0 // pred_region
    _
  $region9: #{_lambda_.25} parent=0 // pred_fallthru
    _
  // Predicated region
  $region10: #{_lambda_.25} parent=0 // pred_check
    _
  $region11: #{_lambda_.25} parent=0 // pred_check_branch
    %13 = sbr.rel (0) target = $region13
  $region12: #{_lambda_.25} parent=0 // pred_region
    _
  $region13: #{_lambda_.25} parent=0 // pred_fallthru
    _
  %v15 = vld [vmem:[%s1] sm:$0xf]
  %v16 = vld [vmem:[%s1 + $0x4] sm:$0xf]
  %v17 = vld [vmem:[%s1 + $0x8] sm:$0xf]
  %v18 = vld [vmem:[%s1 + $0xc] sm:$0xf]
  %v19 = vld [vmem:[%s0] sm:$0xf]
  %v20 = vld [vmem:[%s0 + $0x4] sm:$0xf]
  %v21 = vld [vmem:[%s2] sm:$0xff]
  %v22 = vld [vmem:[%s2 + $0x8] sm:$0xff]
  %v23 = vld [vmem:[%s2 + $0x10] sm:$0xff]
  %v24 = vld [vmem:[%s2 + $0x18] sm:$0xff]
  %26 = vset.pattern.permute.xlu0 0
  %27 = vperm.xlu0 %26, %v21
  %v28 = vpop.permute.xlu0 %27
  %31 = vset.pattern.permute.xlu0 0
  %32 = vperm.xlu0 %31, %v22
  %v33 = vpop.permute.xlu0 %32
  %36 = vset.pattern.permute.xlu0 0
  %37 = vperm.xlu0 %36, %v23
  %v38 = vpop.permute.xlu0 %37
  %41 = vset.pattern.permute.xlu0 0
  %42 = vperm.xlu0 %41, %v24
  %v43 = vpop.permute.xlu0 %42
  %v49 = vunpack.c.l.b16 %v15
  %v50 = vunpack.c.l.b16 %v16
  %v51 = vunpack.c.l.b16 %v17
  %v52 = vunpack.c.l.b16 %v18
  %v53 = vpack.c.b16 %v50, %v49
  %v54 = vpack.c.b16 %v52, %v51
  %v57 = vunpack.c.l.b16 %v19
  %v58 = vunpack.c.l.b16 %v20
  %v59 = vpack.c.b16 %v58, %v57
  %vm61 = vcmask 130048
  %v63 = vsel %vm61, %v53, 0
  %v66 = vsel %vm61, %v54, 0
  %68 = vmatprep.subr.bf16.mxu0 0
  %69 = vmatpush1.bf16.msra.mxu0 %v59
  %70 = vmatprep.subr.bf16.mxu0 0
  %71 = vmatpush1.bf16.msra.mxu0 0
  %72 = vmatprep.subr.bf16.mxu0 0
  %73 = vmatpush1.bf16.msra.mxu0 0
  %74 = vmatprep.subr.bf16.mxu0 0
  %75 = vmatpush1.bf16.msra.mxu0 0
  %76 = vmatprep.subr.bf16.mxu0 0
  %77 = vmatpush1.bf16.msra.mxu0 0
  %78 = vmatprep.subr.bf16.mxu0 0
  %79 = vmatpush1.bf16.msra.mxu0 0
  %80 = vmatprep.subr.bf16.mxu0 0
  %81 = vmatpush1.bf16.msra.mxu0 0
  %82 = vmatprep.subr.bf16.mxu0 0
  %83 = vmatpush1.bf16.msra.mxu0 0
  %84 = vmatprep.subr.bf16.mxu0 0
  %85 = vmatpush1.bf16.msra.mxu0 0
  %86 = vmatprep.subr.bf16.mxu0 0
  %87 = vmatpush1.bf16.msra.mxu0 0
  %88 = vmatprep.subr.bf16.mxu0 0
  %89 = vmatpush1.bf16.msra.mxu0 0
  %90 = vmatprep.subr.bf16.mxu0 0
  %91 = vmatpush1.bf16.msra.mxu0 0
  %92 = vmatprep.subr.bf16.mxu0 0
  %93 = vmatpush1.bf16.msra.mxu0 0
  %94 = vmatprep.subr.bf16.mxu0 0
  %95 = vmatpush1.bf16.msra.mxu0 0
  %96 = vmatprep.subr.bf16.mxu0 0
  %97 = vmatpush1.bf16.msra.mxu0 0
  %98 = vmatprep.subr.bf16.mxu0 0
  %99 = vmatpush1.bf16.msra.mxu0 0
  %100 = vmatprep.mubr.bf16.mxu0 0
  %101 = vmatmul.mubr.bf16.gmra.mrb[0].mxu0 %v63
  %v102 = vpop.f32.mrb[0].mxu0
  %v103 = vadd.f32 %v28, %v102
  %v104 = vpop.f32.mrb[0].mxu0
  %v105 = vpop.f32.mrb[0].mxu0
  %v106 = vadd.f32 %v33, %v105
  %v107 = vpop.f32.mrb[0].mxu0
  %108 = vmatprep.mubr.bf16.mxu0 0
  %109 = vmatmul.mubr.bf16.gmra.mrb[0].mxu0 %v66
  %v110 = vpop.f32.mrb[0].mxu0
  %v111 = vadd.f32 %v38, %v110
  %v112 = vpop.f32.mrb[0].mxu0
  %v113 = vpop.f32.mrb[0].mxu0
  %v114 = vadd.f32 %v43, %v113
  %v115 = vpop.f32.mrb[0].mxu0
  %116 = vdwg.mxu0
  %v117 = vmax.f32 %v103, 0.0
  %v118 = vmax.f32 %v106, 0.0
  %v119 = vmax.f32 %v111, 0.0
  %v120 = vmax.f32 %v114, 0.0
  %v121 = vpack.c.bf16 %v118, %v117
  %v122 = vpack.c.bf16 %v120, %v119
  %v125 = vunpack.c.l.b16 %v121
  %v126 = vunpack.c.h.b16 %v121
  %v127 = vunpack.c.l.b16 %v122
  %v128 = vunpack.c.h.b16 %v122
  %v129 = vpack.c.b16 %v125, %v125
  %v130 = vpack.c.b16 %v126, %v126
  %v131 = vpack.c.b16 %v127, %v127
  %v132 = vpack.c.b16 %v128, %v128
  %137 = vst [vmem:[%s3] sm:$0xf] %v129
  %138 = vst [vmem:[%s3 + $0x4] sm:$0xf] %v130
  %139 = vst [vmem:[%s3 + $0x8] sm:$0xf] %v131
  %140 = vst [vmem:[%s3 + $0xc] sm:$0xf] %v132
  // Predicated region
  $region14: #{_lambda_.25} parent=0 // pred_check
    _
  $region15: #{_lambda_.25} parent=0 // pred_check_branch
    %142 = sbr.rel (0) target = $region17
  $region16: #{_lambda_.25} parent=0 // pred_region
    _
  $region17: #{_lambda_.25} parent=0 // pred_fallthru
    _
  // Predicated region
  $region18: #{_lambda_.25} parent=0 // pred_check
    _
  $region19: #{_lambda_.25} parent=0 // pred_check_branch
    %144 = sbr.rel (0) target = $region21
  $region20: #{_lambda_.25} parent=0 // pred_region
    _
  $region21: #{_lambda_.25} parent=0 // pred_fallthru
    _

// kernel: _lambda_.26
$region0: #{_lambda_.26}
  #allocation0 [shape = 'u32[]', space=smem, size = 0x4, offset = 0x4, fixed_abs, tag = 'smem constant byte address 0x4 - core index']
  #allocation1 [shape = 'u32[144,128]{1,0:T(1,128)}', space=vmem, size = 0x12000, scoped, tag = 'internal scratch']
  %s0 = inlined_call_operand.vmem [shape: bf16[24,512], index: 0, kind: input, shape index: {}]
  %s1 = inlined_call_operand.vmem [shape: bf16[8,24], index: 1, kind: input, shape index: {}]
  %s2 = inlined_call_operand.vmem [shape: f32[8,1], index: 2, kind: input, shape index: {}]
  %s3 = inlined_call_operand.vmem [shape: bf16[8,512], index: 3, kind: output, shape index: {}]
  %s4 = sld [smem:[#allocation0]]
  $region83: #{_lambda_.26} parent=0
    _
  %s6 = ssub.s32 1, %s4
  %s7 = scalar_select 0, %s6, %s4
  $region1: #{_lambda_.26} parent=0
    #allocation2 [shape = 'u8[24576]{0}', space=vmem, size = 0x6000, scoped, tag = 'input window, operand 0']
    loop: start=0, step=1, limit=4
    $region2: #{_lambda_.26} parent=1 // loop_pre_header
      _
    $region3: #{_lambda_.26} parent=1 // loop_header
      %s9 = sphi 0, %s13
      %p10 = scmp.ge.s32.totalorder %s9, 4
      %s19 = sphi 0, %s21
      %s22 = sphi 0, %s19
      %s23 = sphi 0, %s22
      %s39 = sphi 0, %s23
      %s43 = sphi 0, %s43
      %s45 = sphi 0, %s43
      %s46 = sphi 0, %s45
      %s60 = sphi 0, %s46
      %s64 = sphi 0, %s64
      %s66 = sphi 0, %s64
      %s67 = sphi 0, %s66
      %s81 = sphi 0, %s67
      %s87 = sphi 0, %s89
      %s90 = sphi 0, %s87
      %s91 = sphi 0, %s90
      %s107 = sphi 0, %s91
    $region4: #{_lambda_.26} parent=1 // loop_header_branch
      %12 = sbr.rel (%p10) target = $region8
    $region5: #{_lambda_.26} parent=1 // loop_body
      %s14 = ssub.s32 %s9, 1
      %s15 = ssub.s32 %s9, 2
      %s16 = sadd.s32 %s9, 1
      %s17 = ssub.s32 %s9, %s16
      %p18 = scmp.eq.s32.totalorder %s17, 0
      %s20 = sadd.s32 %s19, 1
      %s21 = scalar_select %p18, %s19, %s20
      %p24 = pneg %p18
      %p25 = scmp.eq.s32.totalorder %s9, 1
      %p26 = por %p24, %p25
      %p27 = scmp.ne.s32.totalorder %s19, %s22
      %p28 = scmp.eq.s32.totalorder %s9, 0
      %p29 = por %p27, %p28
      %p30 = scmp.ne.s32.totalorder %s19, %s22
      %p31 = scmp.eq.s32.totalorder %s14, 1
      %p32 = por %p30, %p31
      %p33 = scmp.ne.s32.totalorder %s22, %s23
      %p34 = scmp.eq.s32.totalorder %s14, 0
      %p35 = por %p33, %p34
      %p36 = scmp.ne.s32.totalorder %s22, %s23
      %p37 = scmp.eq.s32.totalorder %s15, 1
      %p38 = por %p36, %p37
      %p40 = scmp.ne.s32.totalorder %s23, %s39
      %p41 = scmp.eq.s32.totalorder %s15, 0
      %p42 = por %p40, %p41
      %s44 = sadd.s32 %s43, 1
      %p47 = scmp.eq.s32.totalorder %s9, 1
      %p48 = scmp.ne.s32.totalorder %s43, %s45
      %p49 = scmp.eq.s32.totalorder %s9, 0
      %p50 = por %p48, %p49
      %p51 = scmp.ne.s32.totalorder %s43, %s45
      %p52 = scmp.eq.s32.totalorder %s14, 1
      %p53 = por %p51, %p52
      %p54 = scmp.ne.s32.totalorder %s45, %s46
      %p55 = scmp.eq.s32.totalorder %s14, 0
      %p56 = por %p54, %p55
      %p57 = scmp.ne.s32.totalorder %s45, %s46
      %p58 = scmp.eq.s32.totalorder %s15, 1
      %p59 = por %p57, %p58
      %p61 = scmp.ne.s32.totalorder %s46, %s60
      %p62 = scmp.eq.s32.totalorder %s15, 0
      %p63 = por %p61, %p62
      %s65 = sadd.s32 %s64, 1
      %p68 = scmp.eq.s32.totalorder %s9, 1
      %p69 = scmp.ne.s32.totalorder %s64, %s66
      %p70 = scmp.eq.s32.totalorder %s9, 0
      %p71 = por %p69, %p70
      %p72 = scmp.ne.s32.totalorder %s64, %s66
      %p73 = scmp.eq.s32.totalorder %s14, 1
      %p74 = por %p72, %p73
      %p75 = scmp.ne.s32.totalorder %s66, %s67
      %p76 = scmp.eq.s32.totalorder %s14, 0
      %p77 = por %p75, %p76
      %p78 = scmp.ne.s32.totalorder %s66, %s67
      %p79 = scmp.eq.s32.totalorder %s15, 1
      %p80 = por %p78, %p79
      %p82 = scmp.ne.s32.totalorder %s67, %s81
      %p83 = scmp.eq.s32.totalorder %s15, 0
      %p84 = por %p82, %p83
      %s85 = ssub.s32 %s9, %s16
      %p86 = scmp.eq.s32.totalorder %s85, 0
      %s88 = sadd.s32 %s87, 1
      %s89 = scalar_select %p86, %s87, %s88
      %p92 = pneg %p86
      %p93 = scmp.eq.s32.totalorder %s9, 1
      %p94 = por %p92, %p93
      %p95 = scmp.ne.s32.totalorder %s87, %s90
      %p96 = scmp.eq.s32.totalorder %s9, 0
      %p97 = por %p95, %p96
      %p98 = scmp.ne.s32.totalorder %s87, %s90
      %p99 = scmp.eq.s32.totalorder %s14, 1
      %p100 = por %p98, %p99
      %p101 = scmp.ne.s32.totalorder %s90, %s91
      %p102 = scmp.eq.s32.totalorder %s14, 0
      %p103 = por %p101, %p102
      %p104 = scmp.ne.s32.totalorder %s90, %s91
      %p105 = scmp.eq.s32.totalorder %s15, 1
      %p106 = por %p104, %p105
      %p108 = scmp.ne.s32.totalorder %s91, %s107
      %p109 = scmp.eq.s32.totalorder %s15, 0
      %p110 = por %p108, %p109
      %p111 = scmp.le.s32.totalorder 1, %s9
      %p112 = scmp.lt.s32.totalorder %s9, 3
      %p113 = pnand %p111, %p112
      %p114 = pneg %p113
      // Predicated region
      $region9: #{_lambda_.26} parent=5 // pred_check
        _
      $region10: #{_lambda_.26} parent=5 // pred_check_branch
        %116 = sbr.rel (%p113) target = $region12
      $region11: #{_lambda_.26} parent=5 // pred_region
        %s117 = ssub.s32 %s9, 1
        // Predicated region
        $region13: #{_lambda_.26} parent=11 // pred_check
          %p118 = pneg %p56
        $region14: #{_lambda_.26} parent=11 // pred_check_branch
          %120 = sbr.rel (%p118) target = $region16
        $region15: #{_lambda_.26} parent=11 // pred_region
          _
        $region16: #{_lambda_.26} parent=11 // pred_fallthru
          _
        // Predicated region
        $region17: #{_lambda_.26} parent=11 // pred_check
          %p121 = pneg %p77
        $region18: #{_lambda_.26} parent=11 // pred_check_branch
          %123 = sbr.rel (%p121) target = $region20
        $region19: #{_lambda_.26} parent=11 // pred_region
          _
        $region20: #{_lambda_.26} parent=11 // pred_fallthru
          _
      $region12: #{_lambda_.26} parent=5 // pred_fallthru
        _
      %p124 = scmp.lt.s32.totalorder %s9, 2
      // Predicated region
      $region21: #{_lambda_.26} parent=5 // pred_check
        %p125 = pneg %p124
      $region22: #{_lambda_.26} parent=5 // pred_check_branch
        %127 = sbr.rel (%p125) target = $region24
      $region23: #{_lambda_.26} parent=5 // pred_region
        // Predicated region
        $region25: #{_lambda_.26} parent=23 // pred_check
          %p128 = pneg %p29
        $region26: #{_lambda_.26} parent=23 // pred_check_branch
          %130 = sbr.rel (%p128) target = $region28
        $region27: #{_lambda_.26} parent=23 // pred_region
          %s131 = sand.u32 %s19, 1
          %s132 = sand.u32 %s19, 1
          %s133 = smul.addr %s132, 24
          %s134 = scalar_lea.vmem [#allocation2], %s133
          %s135 = smul.u32 2, %s9
          %s136 = smul.addr %s135, 4
          %s137 = scalar_lea.vmem %s0, %s136
          // Predicated region
          $region29: #{_lambda_.26} parent=27 // pred_check
            _
          $region30: #{_lambda_.26} parent=27 // pred_check_branch
            %139 = sbr.rel (0) target = $region32
          $region31: #{_lambda_.26} parent=27 // pred_region
            // Predicated region
            $region33: #{_lambda_.26} parent=31 // pred_check
              _
            $region34: #{_lambda_.26} parent=31 // pred_check_branch
              %141 = sbr.rel (0) target = $region36
            $region35: #{_lambda_.26} parent=31 // pred_region
              // Predicated region
              $region48: #{_lambda_.26} parent=35 // pred_check
                _
              $region49: #{_lambda_.26} parent=35 // pred_check_branch
                %160 = sbr.rel (0) target = $region51
              $region50: #{_lambda_.26} parent=35 // pred_region
                loop: start=0, step=1, limit=1
                $region52: #{_lambda_.26} parent=50 // loop_pre_header
                  _
                $region53: #{_lambda_.26} parent=50 // loop_header
                  %s162 = sphi 0, %s166
                  %p163 = scmp.ge.s32.totalorder %s162, 1
                  %s167 = sphi %s137, %s137
                  %s168 = sphi %s134, %s134
                $region54: #{_lambda_.26} parent=50 // loop_header_branch
                  %165 = sbr.rel (%p163) target = $region58
                $region55: #{_lambda_.26} parent=50 // loop_body
                  %v169 = vld [vmem:[%s167] sm:$0xff]
                  %170 = vst [vmem:[%s168] sm:$0xff] %v169
                  %v171 = vld [vmem:[%s167 + $0x10] sm:$0xff]
                  %172 = vst [vmem:[%s168 + $0x8] sm:$0xff] %v171
                  %v173 = vld [vmem:[%s167 + $0x20] sm:$0xff]
                  %174 = vst [vmem:[%s168 + $0x10] sm:$0xff] %v173
                $region56: #{_lambda_.26} parent=50 // loop_footer
                  %s166 = sadd.s32 1, %s162
                $region57: #{_lambda_.26} parent=50 // loop_footer_branch
                  %161 = sbr.rel target = $region53
                $region58: #{_lambda_.26} parent=50 // loop_exit
                  _
              $region51: #{_lambda_.26} parent=35 // pred_fallthru
                _
              // Predicated region
              $region59: #{_lambda_.26} parent=35 // pred_check
                _
              $region60: #{_lambda_.26} parent=35 // pred_check_branch
                %176 = sbr.rel target = $region62
              $region61: #{_lambda_.26} parent=35 // pred_region
                _
              $region62: #{_lambda_.26} parent=35 // pred_fallthru
                _
            $region36: #{_lambda_.26} parent=31 // pred_fallthru
              _
            // Predicated region
            $region37: #{_lambda_.26} parent=31 // pred_check
              _
            $region38: #{_lambda_.26} parent=31 // pred_check_branch
              %143 = sbr.rel target = $region40
            $region39: #{_lambda_.26} parent=31 // pred_region
              loop: start=0, step=1, limit=1
              $region41: #{_lambda_.26} parent=39 // loop_pre_header
                _
              $region42: #{_lambda_.26} parent=39 // loop_header
                %s146 = sphi 0, %s150
                %p147 = scmp.ge.s32.totalorder %s146, 1
                %s151 = sphi %s137, %s137
                %s152 = sphi %s134, %s134
              $region43: #{_lambda_.26} parent=39 // loop_header_branch
                %149 = sbr.rel (%p147) target = $region47
              $region44: #{_lambda_.26} parent=39 // loop_body
                %v153 = vld [vmem:[%s151] sm:$0xff]
                %154 = vst [vmem:[%s152] sm:$0xff] %v153
                %v155 = vld [vmem:[%s151 + $0x10] sm:$0xff]
                %156 = vst [vmem:[%s152 + $0x8] sm:$0xff] %v155
                %v157 = vld [vmem:[%s151 + $0x20] sm:$0xff]
                %158 = vst [vmem:[%s152 + $0x10] sm:$0xff] %v157
              $region45: #{_lambda_.26} parent=39 // loop_footer
                %s150 = sadd.s32 1, %s146
              $region46: #{_lambda_.26} parent=39 // loop_footer_branch
                %145 = sbr.rel target = $region42
              $region47: #{_lambda_.26} parent=39 // loop_exit
                _
            $region40: #{_lambda_.26} parent=31 // pred_fallthru
              _
          $region32: #{_lambda_.26} parent=27 // pred_fallthru
            _
          %177 = vnop
        $region28: #{_lambda_.26} parent=23 // pred_fallthru
          _
      $region24: #{_lambda_.26} parent=5 // pred_fallthru
        _
      %p178 = scmp.le.s32.totalorder 1, %s9
      %p179 = scmp.lt.s32.totalorder %s9, 3
      %p180 = pnand %p178, %p179
      %p181 = pneg %p180
      // Predicated region
      $region63: #{_lambda_.26} parent=5 // pred_check
        _
      $region64: #{_lambda_.26} parent=5 // pred_check_branch
        %183 = sbr.rel (%p180) target = $region66
      $region65: #{_lambda_.26} parent=5 // pred_region
        %s184 = ssub.s32 %s9, 1
        %s185 = sand.u32 %s22, 1
        %s186 = sand.u32 %s22, 1
        %s187 = smul.addr %s186, 24
        %s188 = scalar_lea.vmem [#allocation2], %s187
        // Predicated region
        $region67: #{_lambda_.26} parent=65 // pred_check
          %p189 = pneg %p35
        $region68: #{_lambda_.26} parent=65 // pred_check_branch
          %191 = sbr.rel (%p189) target = $region70
        $region69: #{_lambda_.26} parent=65 // pred_region
          _
        $region70: #{_lambda_.26} parent=65 // pred_fallthru
          _
        %s192 = sand.u32 %s22, 1
        %s193 = sand.u32 %s22, 1
        %s194 = smul.addr %s193, 24
        %s195 = scalar_lea.vmem [#allocation2], %s194
        %p196 = pneg %p35
        %p197 = pneg %p32
        %p198 = pneg %p56
        %p199 = pneg %p53
        %p200 = pneg %p77
        %p201 = pneg %p74
        %p202 = pneg %p103
        %p203 = pneg %p100
        %s204 = smul.u32 2, %s14
        %p205 = scmp.lt.s32.totalorder %s204, 3
        %s206 = scalar_select %p205, %s204, 3
        %s207 = smul.addr %s206, 4
        %s208 = scalar_lea.vmem %s3, %s207
        %s209 = smul.u32 2, %s14
        %s210 = smul.u32 2, %s14
        %p211 = scmp.lt.s32.totalorder %s210, 3
        %s212 = scalar_select %p211, %s210, 3
        %s213 = smul.addr %s212, 4
        %s214 = scalar_lea.vmem %s3, %s213
        %s215 = smul.u32 2, %s14
        %v217 = vld [vmem:[%s1] sm:$0xf]
        %v218 = vld [vmem:[%s188] sm:$0xff]
        %v219 = vld [vmem:[%s188 + $0x8] sm:$0xff]
        %v220 = vld [vmem:[%s188 + $0x10] sm:$0xff]
        %v221 = vld [vmem:[%s2] sm:$0xff]
        %223 = vset.pattern.permute.xlu0 0
        %224 = vperm.xlu0 %223, %v221
        %v225 = vpop.permute.xlu0 %224
        %v230 = vunpack.c.l.b16 %v218
        %v231 = vunpack.c.h.b16 %v218
        %v232 = vunpack.c.l.b16 %v219
        %v233 = vunpack.c.h.b16 %v219
        %v234 = vunpack.c.l.b16 %v220
        %v235 = vunpack.c.h.b16 %v220
        %v236 = vpack.c.b16 %v232, %v230
        %v237 = vpack.c.b16 %v233, %v231
        %v238 = vpack.c.b16 %v234, %v234
        %v239 = vpack.c.b16 %v235, %v235
        %vm242 = vcmask 195584
        %v244 = vsel %vm242, %v217, 0
        %vm246 = vcmask 1043456
        %v248 = vsel %vm246, %v238, 0
        %v251 = vsel %vm246, %v239, 0
        %253 = vmatprep.subr.bf16.mxu0 %v237
        %254 = vmatpush1.bf16.msra.mxu0 %v236
        %255 = vmatprep.subr.bf16.mxu0 %v251
        %256 = vmatpush1.bf16.msra.mxu0 %v248
        %257 = vmatprep.subr.bf16.mxu0 0
        %258 = vmatpush1.bf16.msra.mxu0 0
        %259 = vmatprep.subr.bf16.mxu0 0
        %260 = vmatpush1.bf16.msra.mxu0 0
        %261 = vmatprep.subr.bf16.mxu0 0
        %262 = vmatpush1.bf16.msra.mxu0 0
        %263 = vmatprep.subr.bf16.mxu0 0
        %264 = vmatpush1.bf16.msra.mxu0 0
        %265 = vmatprep.subr.bf16.mxu0 0
        %266 = vmatpush1.bf16.msra.mxu0 0
        %267 = vmatprep.subr.bf16.mxu0 0
        %268 = vmatpush1.bf16.msra.mxu0 0
        %269 = vmatprep.subr.bf16.mxu0 0
        %270 = vmatpush1.bf16.msra.mxu0 0
        %271 = vmatprep.subr.bf16.mxu0 0
        %272 = vmatpush1.bf16.msra.mxu0 0
        %273 = vmatprep.subr.bf16.mxu0 0
        %274 = vmatpush1.bf16.msra.mxu0 0
        %275 = vmatprep.subr.bf16.mxu0 0
        %276 = vmatpush1.bf16.msra.mxu0 0
        %277 = vmatprep.subr.bf16.mxu0 0
        %278 = vmatpush1.bf16.msra.mxu0 0
        %279 = vmatprep.subr.bf16.mxu0 0
        %280 = vmatpush1.bf16.msra.mxu0 0
        %281 = vmatprep.subr.bf16.mxu0 0
        %282 = vmatpush1.bf16.msra.mxu0 0
        %283 = vmatprep.subr.bf16.mxu0 0
        %284 = vmatpush1.bf16.msra.mxu0 0
        %285 = vmatprep.mubr.bf16.mxu0 0
        %286 = vmatmul.mubr.bf16.gmra.mrb[0].mxu0 %v244
        %v287 = vpop.f32.mrb[0].mxu0
        %v288 = vadd.f32 %v225, %v287
        %v289 = vpop.f32.mrb[0].mxu0
        %v290 = vadd.f32 %v225, %v289
        %v291 = vpop.f32.mrb[0].mxu0
        %v292 = vpop.f32.mrb[0].mxu0
        %293 = vdwg.mxu0
        %v294 = vmax.f32 %v288, 0.0
        %v295 = vmax.f32 %v290, 0.0
        %v296 = vpack.c.bf16 %v294, %v294
        %v297 = vpack.c.bf16 %v295, %v295
        %v300 = vunpack.c.l.b16 %v296
        %v301 = vunpack.c.l.b16 %v297
        %v302 = vpack.c.b16 %v301, %v300
        %304 = vst [vmem:[%s214] sm:$0xff] %v302
        %s305 = smul.u32 2, %s14
        %p306 = scmp.lt.s32.totalorder %s305, 3
        %s307 = scalar_select %p306, %s305, 3
        %s308 = smul.addr %s307, 4
        %s309 = scalar_lea.vmem %s3, %s308
        // Predicated region
        $region71: #{_lambda_.26} parent=65 // pred_check
          %p310 = pneg %p100
        $region72: #{_lambda_.26} parent=65 // pred_check_branch
          %312 = sbr.rel (%p310) target = $region74
        $region73: #{_lambda_.26} parent=65 // pred_region
          %s313 = smul.u32 2, %s14
        $region74: #{_lambda_.26} parent=65 // pred_fallthru
          _
      $region66: #{_lambda_.26} parent=5 // pred_fallthru
        _
      %p314 = scmp.le.s32.totalorder 2, %s9
      // Predicated region
      $region75: #{_lambda_.26} parent=5 // pred_check
        %p315 = pneg %p314
      $region76: #{_lambda_.26} parent=5 // pred_check_branch
        %317 = sbr.rel (%p315) target = $region78
      $region77: #{_lambda_.26} parent=5 // pred_region
        %s318 = ssub.s32 %s9, 2
        // Predicated region
        $region79: #{_lambda_.26} parent=77 // pred_check
          %p319 = pneg %p106
        $region80: #{_lambda_.26} parent=77 // pred_check_branch
          %321 = sbr.rel (%p319) target = $region82
        $region81: #{_lambda_.26} parent=77 // pred_region
          %s322 = smul.u32 2, %s15
          %p323 = scmp.lt.s32.totalorder %s322, 3
          %s324 = scalar_select %p323, %s322, 3
          %s325 = smul.addr %s324, 4
          %s326 = scalar_lea.vmem %s3, %s325
        $region82: #{_lambda_.26} parent=77 // pred_fallthru
          _
      $region78: #{_lambda_.26} parent=5 // pred_fallthru
        _
    $region6: #{_lambda_.26} parent=1 // loop_footer
      %s13 = sadd.s32 1, %s9
    $region7: #{_lambda_.26} parent=1 // loop_footer_branch
      %8 = sbr.rel target = $region3
    $region8: #{_lambda_.26} parent=1 // loop_exit
      _

// kernel: _lambda_.27
$region0: #{_lambda_.27}
  #allocation0 [shape = 'u32[]', space=smem, size = 0x4, offset = 0x4, fixed_abs, tag = 'smem constant byte address 0x4 - core index']
  #allocation1 [shape = 'u32[144,128]{1,0:T(1,128)}', space=vmem, size = 0x12000, scoped, tag = 'internal scratch']
  %s0 = inlined_call_operand.vmem [shape: bf16[24,512], index: 0, kind: input, shape index: {}]
  %s1 = inlined_call_operand.vmem [shape: bf16[16,24], index: 1, kind: input, shape index: {}]
  %s2 = inlined_call_operand.vmem [shape: f32[16,1], index: 2, kind: input, shape index: {}]
  %s3 = inlined_call_operand.vmem [shape: bf16[16,512], index: 3, kind: output, shape index: {}]
  %s4 = sld [smem:[#allocation0]]
  $region117: #{_lambda_.27} parent=0
    _
  %s6 = ssub.s32 1, %s4
  %s7 = scalar_select 0, %s6, %s4
  $region1: #{_lambda_.27} parent=0
    #allocation2 [shape = 'u8[24576]{0}', space=vmem, size = 0x6000, scoped, tag = 'input window, operand 0']
    #allocation3 [shape = 'u8[16384]{0}', space=vmem, size = 0x4000, scoped, tag = 'output window, operand 0']
    loop: start=0, step=1, limit=4
    $region2: #{_lambda_.27} parent=1 // loop_pre_header
      _
    $region3: #{_lambda_.27} parent=1 // loop_header
      %s9 = sphi 0, %s13
      %p10 = scmp.ge.s32.totalorder %s9, 4
      %s19 = sphi 0, %s21
      %s22 = sphi 0, %s19
      %s23 = sphi 0, %s22
      %s39 = sphi 0, %s23
      %s43 = sphi 0, %s43
      %s45 = sphi 0, %s43
      %s46 = sphi 0, %s45
      %s60 = sphi 0, %s46
      %s64 = sphi 0, %s64
      %s66 = sphi 0, %s64
      %s67 = sphi 0, %s66
      %s81 = sphi 0, %s67
      %s87 = sphi 0, %s89
      %s90 = sphi 0, %s87
      %s91 = sphi 0, %s90
      %s107 = sphi 0, %s91
    $region4: #{_lambda_.27} parent=1 // loop_header_branch
      %12 = sbr.rel (%p10) target = $region8
    $region5: #{_lambda_.27} parent=1 // loop_body
      %s14 = ssub.s32 %s9, 1
      %s15 = ssub.s32 %s9, 2
      %s16 = sadd.s32 %s9, 1
      %s17 = ssub.s32 %s9, %s16
      %p18 = scmp.eq.s32.totalorder %s17, 0
      %s20 = sadd.s32 %s19, 1
      %s21 = scalar_select %p18, %s19, %s20
      %p24 = pneg %p18
      %p25 = scmp.eq.s32.totalorder %s9, 1
      %p26 = por %p24, %p25
      %p27 = scmp.ne.s32.totalorder %s19, %s22
      %p28 = scmp.eq.s32.totalorder %s9, 0
      %p29 = por %p27, %p28
      %p30 = scmp.ne.s32.totalorder %s19, %s22
      %p31 = scmp.eq.s32.totalorder %s14, 1
      %p32 = por %p30, %p31
      %p33 = scmp.ne.s32.totalorder %s22, %s23
      %p34 = scmp.eq.s32.totalorder %s14, 0
      %p35 = por %p33, %p34
      %p36 = scmp.ne.s32.totalorder %s22, %s23
      %p37 = scmp.eq.s32.totalorder %s15, 1
      %p38 = por %p36, %p37
      %p40 = scmp.ne.s32.totalorder %s23, %s39
      %p41 = scmp.eq.s32.totalorder %s15, 0
      %p42 = por %p40, %p41
      %s44 = sadd.s32 %s43, 1
      %p47 = scmp.eq.s32.totalorder %s9, 1
      %p48 = scmp.ne.s32.totalorder %s43, %s45
      %p49 = scmp.eq.s32.totalorder %s9, 0
      %p50 = por %p48, %p49
      %p51 = scmp.ne.s32.totalorder %s43, %s45
      %p52 = scmp.eq.s32.totalorder %s14, 1
      %p53 = por %p51, %p52
      %p54 = scmp.ne.s32.totalorder %s45, %s46
      %p55 = scmp.eq.s32.totalorder %s14, 0
      %p56 = por %p54, %p55
      %p57 = scmp.ne.s32.totalorder %s45, %s46
      %p58 = scmp.eq.s32.totalorder %s15, 1
      %p59 = por %p57, %p58
      %p61 = scmp.ne.s32.totalorder %s46, %s60
      %p62 = scmp.eq.s32.totalorder %s15, 0
      %p63 = por %p61, %p62
      %s65 = sadd.s32 %s64, 1
      %p68 = scmp.eq.s32.totalorder %s9, 1
      %p69 = scmp.ne.s32.totalorder %s64, %s66
      %p70 = scmp.eq.s32.totalorder %s9, 0
      %p71 = por %p69, %p70
      %p72 = scmp.ne.s32.totalorder %s64, %s66
      %p73 = scmp.eq.s32.totalorder %s14, 1
      %p74 = por %p72, %p73
      %p75 = scmp.ne.s32.totalorder %s66, %s67
      %p76 = scmp.eq.s32.totalorder %s14, 0
      %p77 = por %p75, %p76
      %p78 = scmp.ne.s32.totalorder %s66, %s67
      %p79 = scmp.eq.s32.totalorder %s15, 1
      %p80 = por %p78, %p79
      %p82 = scmp.ne.s32.totalorder %s67, %s81
      %p83 = scmp.eq.s32.totalorder %s15, 0
      %p84 = por %p82, %p83
      %s85 = ssub.s32 %s9, %s16
      %p86 = scmp.eq.s32.totalorder %s85, 0
      %s88 = sadd.s32 %s87, 1
      %s89 = scalar_select %p86, %s87, %s88
      %p92 = pneg %p86
      %p93 = scmp.eq.s32.totalorder %s9, 1
      %p94 = por %p92, %p93
      %p95 = scmp.ne.s32.totalorder %s87, %s90
      %p96 = scmp.eq.s32.totalorder %s9, 0
      %p97 = por %p95, %p96
      %p98 = scmp.ne.s32.totalorder %s87, %s90
      %p99 = scmp.eq.s32.totalorder %s14, 1
      %p100 = por %p98, %p99
      %p101 = scmp.ne.s32.totalorder %s90, %s91
      %p102 = scmp.eq.s32.totalorder %s14, 0
      %p103 = por %p101, %p102
      %p104 = scmp.ne.s32.totalorder %s90, %s91
      %p105 = scmp.eq.s32.totalorder %s15, 1
      %p106 = por %p104, %p105
      %p108 = scmp.ne.s32.totalorder %s91, %s107
      %p109 = scmp.eq.s32.totalorder %s15, 0
      %p110 = por %p108, %p109
      %p111 = scmp.le.s32.totalorder 1, %s9
      %p112 = scmp.lt.s32.totalorder %s9, 3
      %p113 = pnand %p111, %p112
      %p114 = pneg %p113
      // Predicated region
      $region9: #{_lambda_.27} parent=5 // pred_check
        _
      $region10: #{_lambda_.27} parent=5 // pred_check_branch
        %116 = sbr.rel (%p113) target = $region12
      $region11: #{_lambda_.27} parent=5 // pred_region
        %s117 = ssub.s32 %s9, 1
        // Predicated region
        $region13: #{_lambda_.27} parent=11 // pred_check
          %p118 = pneg %p56
        $region14: #{_lambda_.27} parent=11 // pred_check_branch
          %120 = sbr.rel (%p118) target = $region16
        $region15: #{_lambda_.27} parent=11 // pred_region
          _
        $region16: #{_lambda_.27} parent=11 // pred_fallthru
          _
        // Predicated region
        $region17: #{_lambda_.27} parent=11 // pred_check
          %p121 = pneg %p77
        $region18: #{_lambda_.27} parent=11 // pred_check_branch
          %123 = sbr.rel (%p121) target = $region20
        $region19: #{_lambda_.27} parent=11 // pred_region
          _
        $region20: #{_lambda_.27} parent=11 // pred_fallthru
          _
      $region12: #{_lambda_.27} parent=5 // pred_fallthru
        _
      %p124 = scmp.lt.s32.totalorder %s9, 2
      // Predicated region
      $region21: #{_lambda_.27} parent=5 // pred_check
        %p125 = pneg %p124
      $region22: #{_lambda_.27} parent=5 // pred_check_branch
        %127 = sbr.rel (%p125) target = $region24
      $region23: #{_lambda_.27} parent=5 // pred_region
        // Predicated region
        $region25: #{_lambda_.27} parent=23 // pred_check
          %p128 = pneg %p29
        $region26: #{_lambda_.27} parent=23 // pred_check_branch
          %130 = sbr.rel (%p128) target = $region28
        $region27: #{_lambda_.27} parent=23 // pred_region
          %s131 = sand.u32 %s19, 1
          %s132 = sand.u32 %s19, 1
          %s133 = smul.addr %s132, 24
          %s134 = scalar_lea.vmem [#allocation2], %s133
          %s135 = smul.u32 2, %s9
          %s136 = smul.addr %s135, 4
          %s137 = scalar_lea.vmem %s0, %s136
          // Predicated region
          $region29: #{_lambda_.27} parent=27 // pred_check
            _
          $region30: #{_lambda_.27} parent=27 // pred_check_branch
            %139 = sbr.rel (0) target = $region32
          $region31: #{_lambda_.27} parent=27 // pred_region
            // Predicated region
            $region33: #{_lambda_.27} parent=31 // pred_check
              _
            $region34: #{_lambda_.27} parent=31 // pred_check_branch
              %141 = sbr.rel (0) target = $region36
            $region35: #{_lambda_.27} parent=31 // pred_region
              // Predicated region
              $region48: #{_lambda_.27} parent=35 // pred_check
                _
              $region49: #{_lambda_.27} parent=35 // pred_check_branch
                %160 = sbr.rel (0) target = $region51
              $region50: #{_lambda_.27} parent=35 // pred_region
                loop: start=0, step=1, limit=1
                $region52: #{_lambda_.27} parent=50 // loop_pre_header
                  _
                $region53: #{_lambda_.27} parent=50 // loop_header
                  %s162 = sphi 0, %s166
                  %p163 = scmp.ge.s32.totalorder %s162, 1
                  %s167 = sphi %s137, %s137
                  %s168 = sphi %s134, %s134
                $region54: #{_lambda_.27} parent=50 // loop_header_branch
                  %165 = sbr.rel (%p163) target = $region58
                $region55: #{_lambda_.27} parent=50 // loop_body
                  %v169 = vld [vmem:[%s167] sm:$0xff]
                  %170 = vst [vmem:[%s168] sm:$0xff] %v169
                  %v171 = vld [vmem:[%s167 + $0x10] sm:$0xff]
                  %172 = vst [vmem:[%s168 + $0x8] sm:$0xff] %v171
                  %v173 = vld [vmem:[%s167 + $0x20] sm:$0xff]
                  %174 = vst [vmem:[%s168 + $0x10] sm:$0xff] %v173
                $region56: #{_lambda_.27} parent=50 // loop_footer
                  %s166 = sadd.s32 1, %s162
                $region57: #{_lambda_.27} parent=50 // loop_footer_branch
                  %161 = sbr.rel target = $region53
                $region58: #{_lambda_.27} parent=50 // loop_exit
                  _
              $region51: #{_lambda_.27} parent=35 // pred_fallthru
                _
              // Predicated region
              $region59: #{_lambda_.27} parent=35 // pred_check
                _
              $region60: #{_lambda_.27} parent=35 // pred_check_branch
                %176 = sbr.rel target = $region62
              $region61: #{_lambda_.27} parent=35 // pred_region
                _
              $region62: #{_lambda_.27} parent=35 // pred_fallthru
                _
            $region36: #{_lambda_.27} parent=31 // pred_fallthru
              _
            // Predicated region
            $region37: #{_lambda_.27} parent=31 // pred_check
              _
            $region38: #{_lambda_.27} parent=31 // pred_check_branch
              %143 = sbr.rel target = $region40
            $region39: #{_lambda_.27} parent=31 // pred_region
              loop: start=0, step=1, limit=1
              $region41: #{_lambda_.27} parent=39 // loop_pre_header
                _
              $region42: #{_lambda_.27} parent=39 // loop_header
                %s146 = sphi 0, %s150
                %p147 = scmp.ge.s32.totalorder %s146, 1
                %s151 = sphi %s137, %s137
                %s152 = sphi %s134, %s134
              $region43: #{_lambda_.27} parent=39 // loop_header_branch
                %149 = sbr.rel (%p147) target = $region47
              $region44: #{_lambda_.27} parent=39 // loop_body
                %v153 = vld [vmem:[%s151] sm:$0xff]
                %154 = vst [vmem:[%s152] sm:$0xff] %v153
                %v155 = vld [vmem:[%s151 + $0x10] sm:$0xff]
                %156 = vst [vmem:[%s152 + $0x8] sm:$0xff] %v155
                %v157 = vld [vmem:[%s151 + $0x20] sm:$0xff]
                %158 = vst [vmem:[%s152 + $0x10] sm:$0xff] %v157
              $region45: #{_lambda_.27} parent=39 // loop_footer
                %s150 = sadd.s32 1, %s146
              $region46: #{_lambda_.27} parent=39 // loop_footer_branch
                %145 = sbr.rel target = $region42
              $region47: #{_lambda_.27} parent=39 // loop_exit
                _
            $region40: #{_lambda_.27} parent=31 // pred_fallthru
              _
          $region32: #{_lambda_.27} parent=27 // pred_fallthru
            _
          %177 = vnop
        $region28: #{_lambda_.27} parent=23 // pred_fallthru
          _
      $region24: #{_lambda_.27} parent=5 // pred_fallthru
        _
      %p178 = scmp.le.s32.totalorder 1, %s9
      %p179 = scmp.lt.s32.totalorder %s9, 3
      %p180 = pnand %p178, %p179
      %p181 = pneg %p180
      // Predicated region
      $region63: #{_lambda_.27} parent=5 // pred_check
        _
      $region64: #{_lambda_.27} parent=5 // pred_check_branch
        %183 = sbr.rel (%p180) target = $region66
      $region65: #{_lambda_.27} parent=5 // pred_region
        %s184 = ssub.s32 %s9, 1
        %s185 = sand.u32 %s22, 1
        %s186 = sand.u32 %s22, 1
        %s187 = smul.addr %s186, 24
        %s188 = scalar_lea.vmem [#allocation2], %s187
        // Predicated region
        $region67: #{_lambda_.27} parent=65 // pred_check
          %p189 = pneg %p35
        $region68: #{_lambda_.27} parent=65 // pred_check_branch
          %191 = sbr.rel (%p189) target = $region70
        $region69: #{_lambda_.27} parent=65 // pred_region
          _
        $region70: #{_lambda_.27} parent=65 // pred_fallthru
          _
        %s192 = sand.u32 %s22, 1
        %s193 = sand.u32 %s22, 1
        %s194 = smul.addr %s193, 24
        %s195 = scalar_lea.vmem [#allocation2], %s194
        %p196 = pneg %p35
        %p197 = pneg %p32
        %p198 = pneg %p56
        %p199 = pneg %p53
        %p200 = pneg %p77
        %p201 = pneg %p74
        %p202 = pneg %p103
        %p203 = pneg %p100
        %s204 = sand.u32 %s90, 1
        %s205 = sand.u32 %s90, 1
        %s206 = smul.addr %s205, 16
        %s207 = scalar_lea.vmem [#allocation3], %s206
        %s208 = smul.u32 2, %s14
        %s209 = smul.u32 2, %s14
        %v211 = vld [vmem:[%s1] sm:$0xf]
        %v212 = vld [vmem:[%s1 + $0x4] sm:$0xf]
        %v213 = vld [vmem:[%s188] sm:$0xff]
        %v214 = vld [vmem:[%s188 + $0x8] sm:$0xff]
        %v215 = vld [vmem:[%s188 + $0x10] sm:$0xff]
        %v216 = vld [vmem:[%s2] sm:$0xff]
        %v217 = vld [vmem:[%s2 + $0x8] sm:$0xff]
        %219 = vset.pattern.permute.xlu0 0
        %220 = vperm.xlu0 %219, %v216
        %v221 = vpop.permute.xlu0 %220
        %224 = vset.pattern.permute.xlu0 0
        %225 = vperm.xlu0 %224, %v217
        %v226 = vpop.permute.xlu0 %225
        %v230 = vunpack.c.l.b16 %v211
        %v231 = vunpack.c.l.b16 %v212
        %v232 = vpack.c.b16 %v231, %v230
        %v236 = vunpack.c.l.b16 %v213
        %v237 = vunpack.c.h.b16 %v213
        %v238 = vunpack.c.l.b16 %v214
        %v239 = vunpack.c.h.b16 %v214
        %v240 = vunpack.c.l.b16 %v215
        %v241 = vunpack.c.h.b16 %v215
        %v242 = vpack.c.b16 %v238, %v236
        %v243 = vpack.c.b16 %v239, %v237
        %v244 = vpack.c.b16 %v240, %v240
        %v245 = vpack.c.b16 %v241, %v241
        %vm248 = vcmask 195584
        %v250 = vsel %vm248, %v232, 0
        %vm252 = vcmask 1043456
        %v254 = vsel %vm252, %v244, 0
        %v257 = vsel %vm252, %v245, 0
        %259 = vmatprep.subr.bf16.mxu0 %v243
        %260 = vmatpush1.bf16.msra.mxu0 %v242
        %261 = vmatprep.subr.bf16.mxu0 %v257
        %262 = vmatpush1.bf16.msra.mxu0 %v254
        %263 = vmatprep.subr.bf16.mxu0 0
        %264 = vmatpush1.bf16.msra.mxu0 0
        %265 = vmatprep.subr.bf16.mxu0 0
        %266 = vmatpush1.bf16.msra.mxu0 0
        %267 = vmatprep.subr.bf16.mxu0 0
        %268 = vmatpush1.bf16.msra.mxu0 0
        %269 = vmatprep.subr.bf16.mxu0 0
        %270 = vmatpush1.bf16.msra.mxu0 0
        %271 = vmatprep.subr.bf16.mxu0 0
        %272 = vmatpush1.bf16.msra.mxu0 0
        %273 = vmatprep.subr.bf16.mxu0 0
        %274 = vmatpush1.bf16.msra.mxu0 0
        %275 = vmatprep.subr.bf16.mxu0 0
        %276 = vmatpush1.bf16.msra.mxu0 0
        %277 = vmatprep.subr.bf16.mxu0 0
        %278 = vmatpush1.bf16.msra.mxu0 0
        %279 = vmatprep.subr.bf16.mxu0 0
        %280 = vmatpush1.bf16.msra.mxu0 0
        %281 = vmatprep.subr.bf16.mxu0 0
        %282 = vmatpush1.bf16.msra.mxu0 0
        %283 = vmatprep.subr.bf16.mxu0 0
        %284 = vmatpush1.bf16.msra.mxu0 0
        %285 = vmatprep.subr.bf16.mxu0 0
        %286 = vmatpush1.bf16.msra.mxu0 0
        %287 = vmatprep.subr.bf16.mxu0 0
        %288 = vmatpush1.bf16.msra.mxu0 0
        %289 = vmatprep.subr.bf16.mxu0 0
        %290 = vmatpush1.bf16.msra.mxu0 0
        %291 = vmatprep.mubr.bf16.mxu0 0
        %292 = vmatmul.mubr.bf16.gmra.mrb[0].mxu0 %v250
        %v293 = vpop.f32.mrb[0].mxu0
        %v294 = vadd.f32 %v221, %v293
        %v295 = vpop.f32.mrb[0].mxu0
        %v296 = vadd.f32 %v221, %v295
        %v297 = vpop.f32.mrb[0].mxu0
        %v298 = vadd.f32 %v226, %v297
        %v299 = vpop.f32.mrb[0].mxu0
        %v300 = vadd.f32 %v226, %v299
        %301 = vdwg.mxu0
        %v302 = vmax.f32 %v294, 0.0
        %v303 = vmax.f32 %v296, 0.0
        %v304 = vmax.f32 %v298, 0.0
        %v305 = vmax.f32 %v300, 0.0
        %v306 = vpack.c.bf16 %v304, %v302
        %v307 = vpack.c.bf16 %v305, %v303
        %v310 = vunpack.c.l.b16 %v306
        %v311 = vunpack.c.l.b16 %v307
        %v312 = vunpack.c.h.b16 %v306
        %v313 = vunpack.c.h.b16 %v307
        %v314 = vpack.c.b16 %v311, %v310
        %v315 = vpack.c.b16 %v313, %v312
        %318 = vst [vmem:[%s207] sm:$0xff] %v314
        %319 = vst [vmem:[%s207 + $0x8] sm:$0xff] %v315
        %s320 = sand.u32 %s90, 1
        %s321 = sand.u32 %s90, 1
        %s322 = smul.addr %s321, 16
        %s323 = scalar_lea.vmem [#allocation3], %s322
        // Predicated region
        $region71: #{_lambda_.27} parent=65 // pred_check
          %p324 = pneg %p100
        $region72: #{_lambda_.27} parent=65 // pred_check_branch
          %326 = sbr.rel (%p324) target = $region74
        $region73: #{_lambda_.27} parent=65 // pred_region
          %s327 = smul.u32 2, %s14
          %s328 = smul.addr %s327, 4
          %s329 = scalar_lea.vmem %s3, %s328
          // Predicated region
          $region75: #{_lambda_.27} parent=73 // pred_check
            _
          $region76: #{_lambda_.27} parent=73 // pred_check_branch
            %331 = sbr.rel (0) target = $region78
          $region77: #{_lambda_.27} parent=73 // pred_region
            // Predicated region
            $region79: #{_lambda_.27} parent=77 // pred_check
              _
            $region80: #{_lambda_.27} parent=77 // pred_check_branch
              %333 = sbr.rel (0) target = $region82
            $region81: #{_lambda_.27} parent=77 // pred_region
              // Predicated region
              $region94: #{_lambda_.27} parent=81 // pred_check
                _
              $region95: #{_lambda_.27} parent=81 // pred_check_branch
                %350 = sbr.rel (0) target = $region97
              $region96: #{_lambda_.27} parent=81 // pred_region
                loop: start=0, step=1, limit=1
                $region98: #{_lambda_.27} parent=96 // loop_pre_header
                  _
                $region99: #{_lambda_.27} parent=96 // loop_header
                  %s352 = sphi 0, %s356
                  %p353 = scmp.ge.s32.totalorder %s352, 1
                  %s357 = sphi %s323, %s323
                  %s358 = sphi %s329, %s329
                $region100: #{_lambda_.27} parent=96 // loop_header_branch
                  %355 = sbr.rel (%p353) target = $region104
                $region101: #{_lambda_.27} parent=96 // loop_body
                  %v359 = vld [vmem:[%s357] sm:$0xff]
                  %360 = vst [vmem:[%s358] sm:$0xff] %v359
                  %v361 = vld [vmem:[%s357 + $0x8] sm:$0xff]
                  %362 = vst [vmem:[%s358 + $0x10] sm:$0xff] %v361
                $region102: #{_lambda_.27} parent=96 // loop_footer
                  %s356 = sadd.s32 1, %s352
                $region103: #{_lambda_.27} parent=96 // loop_footer_branch
                  %351 = sbr.rel target = $region99
                $region104: #{_lambda_.27} parent=96 // loop_exit
                  _
              $region97: #{_lambda_.27} parent=81 // pred_fallthru
                _
              // Predicated region
              $region105: #{_lambda_.27} parent=81 // pred_check
                _
              $region106: #{_lambda_.27} parent=81 // pred_check_branch
                %364 = sbr.rel target = $region108
              $region107: #{_lambda_.27} parent=81 // pred_region
                _
              $region108: #{_lambda_.27} parent=81 // pred_fallthru
                _
            $region82: #{_lambda_.27} parent=77 // pred_fallthru
              _
            // Predicated region
            $region83: #{_lambda_.27} parent=77 // pred_check
              _
            $region84: #{_lambda_.27} parent=77 // pred_check_branch
              %335 = sbr.rel target = $region86
            $region85: #{_lambda_.27} parent=77 // pred_region
              loop: start=0, step=1, limit=1
              $region87: #{_lambda_.27} parent=85 // loop_pre_header
                _
              $region88: #{_lambda_.27} parent=85 // loop_header
                %s338 = sphi 0, %s342
                %p339 = scmp.ge.s32.totalorder %s338, 1
                %s343 = sphi %s323, %s323
                %s344 = sphi %s329, %s329
              $region89: #{_lambda_.27} parent=85 // loop_header_branch
                %341 = sbr.rel (%p339) target = $region93
              $region90: #{_lambda_.27} parent=85 // loop_body
                %v345 = vld [vmem:[%s343] sm:$0xff]
                %346 = vst [vmem:[%s344] sm:$0xff] %v345
                %v347 = vld [vmem:[%s343 + $0x8] sm:$0xff]
                %348 = vst [vmem:[%s344 + $0x10] sm:$0xff] %v347
              $region91: #{_lambda_.27} parent=85 // loop_footer
                %s342 = sadd.s32 1, %s338
              $region92: #{_lambda_.27} parent=85 // loop_footer_branch
                %337 = sbr.rel target = $region88
              $region93: #{_lambda_.27} parent=85 // loop_exit
                _
            $region86: #{_lambda_.27} parent=77 // pred_fallthru
              _
          $region78: #{_lambda_.27} parent=73 // pred_fallthru
            _
          %365 = vnop
        $region74: #{_lambda_.27} parent=65 // pred_fallthru
          _
      $region66: #{_lambda_.27} parent=5 // pred_fallthru
        _
      %p366 = scmp.le.s32.totalorder 2, %s9
      // Predicated region
      $region109: #{_lambda_.27} parent=5 // pred_check
        %p367 = pneg %p366
      $region110: #{_lambda_.27} parent=5 // pred_check_branch
        %369 = sbr.rel (%p367) target = $region112
      $region111: #{_lambda_.27} parent=5 // pred_region
        %s370 = ssub.s32 %s9, 2
        // Predicated region
        $region113: #{_lambda_.27} parent=111 // pred_check
          %p371 = pneg %p106
        $region114: #{_lambda_.27} parent=111 // pred_check_branch
          %373 = sbr.rel (%p371) target = $region116
        $region115: #{_lambda_.27} parent=111 // pred_region
          %s374 = sand.u32 %s91, 1
          %s375 = sand.u32 %s91, 1
          %s376 = smul.addr %s375, 16
          %s377 = scalar_lea.vmem [#allocation3], %s376
        $region116: #{_lambda_.27} parent=111 // pred_fallthru
          _
      $region112: #{_lambda_.27} parent=5 // pred_fallthru
        _
    $region6: #{_lambda_.27} parent=1 // loop_footer
      %s13 = sadd.s32 1, %s9
    $region7: #{_lambda_.27} parent=1 // loop_footer_branch
      %8 = sbr.rel target = $region3
    $region8: #{_lambda_.27} parent=1 // loop_exit
      _

// kernel: _lambda_.35
$region0: #{_lambda_.35}
  #allocation0 [shape = 'u32[]', space=smem, size = 0x4, offset = 0x4, fixed_abs, tag = 'smem constant byte address 0x4 - core index']
  #allocation1 [shape = 'u32[144,128]{1,0:T(1,128)}', space=vmem, size = 0x12000, scoped, tag = 'internal scratch']
  %s0 = inlined_call_operand.vmem [shape: bf16[16,2,16], index: 0, kind: input, shape index: {}]
  %s1 = inlined_call_operand.vmem [shape: f32[4,16], index: 1, kind: input, shape index: {}]
  %s2 = inlined_call_operand.vmem [shape: f32[4,1], index: 2, kind: input, shape index: {}]
  %s3 = inlined_call_operand.vmem [shape: f32[16,4], index: 3, kind: input, shape index: {}]
  %s4 = inlined_call_operand.vmem [shape: f32[16,1], index: 4, kind: input, shape index: {}]
  %s5 = inlined_call_operand.vmem [shape: f32[16,2,16], index: 5, kind: output, shape index: {}]
  %s6 = sld [smem:[#allocation0]]
  $region30: #{_lambda_.35} parent=0
    _
  %s8 = ssub.s32 1, %s6
  %s9 = scalar_select 0, %s8, %s6
  // Predicated region
  $region2: #{_lambda_.35} parent=0 // pred_check
    _
  $region3: #{_lambda_.35} parent=0 // pred_check_branch
    %11 = sbr.rel (0) target = $region5
  $region4: #{_lambda_.35} parent=0 // pred_region
    _
  $region5: #{_lambda_.35} parent=0 // pred_fallthru
    _
  // Predicated region
  $region6: #{_lambda_.35} parent=0 // pred_check
    _
  $region7: #{_lambda_.35} parent=0 // pred_check_branch
    %13 = sbr.rel (0) target = $region9
  $region8: #{_lambda_.35} parent=0 // pred_region
    _
  $region9: #{_lambda_.35} parent=0 // pred_fallthru
    _
  // Predicated region
  $region10: #{_lambda_.35} parent=0 // pred_check
    _
  $region11: #{_lambda_.35} parent=0 // pred_check_branch
    %15 = sbr.rel (0) target = $region13
  $region12: #{_lambda_.35} parent=0 // pred_region
    _
  $region13: #{_lambda_.35} parent=0 // pred_fallthru
    _
  // Predicated region
  $region14: #{_lambda_.35} parent=0 // pred_check
    _
  $region15: #{_lambda_.35} parent=0 // pred_check_branch
    %17 = sbr.rel (0) target = $region17
  $region16: #{_lambda_.35} parent=0 // pred_region
    _
  $region17: #{_lambda_.35} parent=0 // pred_fallthru
    _
  // Predicated region
  $region18: #{_lambda_.35} parent=0 // pred_check
    _
  $region19: #{_lambda_.35} parent=0 // pred_check_branch
    %19 = sbr.rel (0) target = $region21
  $region20: #{_lambda_.35} parent=0 // pred_region
    _
  $region21: #{_lambda_.35} parent=0 // pred_fallthru
    _
  %v20 = vld [vmem:[%s0] sm:$0x1]
  %v21 = vld [vmem:[%s0 + $0x1] sm:$0x1]
  %v22 = vld [vmem:[%s0 + $0x2] sm:$0x1]
  %v23 = vld [vmem:[%s0 + $0x3] sm:$0x1]
  %v24 = vld [vmem:[%s0 + $0x4] sm:$0x1]
  %v25 = vld [vmem:[%s0 + $0x5] sm:$0x1]
  %v26 = vld [vmem:[%s0 + $0x6] sm:$0x1]
  %v27 = vld [vmem:[%s0 + $0x7] sm:$0x1]
  %v28 = vld [vmem:[%s0 + $0x8] sm:$0x1]
  %v29 = vld [vmem:[%s0 + $0x9] sm:$0x1]
  %v30 = vld [vmem:[%s0 + $0xa] sm:$0x1]
  %v31 = vld [vmem:[%s0 + $0xb] sm:$0x1]
  %v32 = vld [vmem:[%s0 + $0xc] sm:$0x1]
  %v33 = vld [vmem:[%s0 + $0xd] sm:$0x1]
  %v34 = vld [vmem:[%s0 + $0xe] sm:$0x1]
  %v35 = vld [vmem:[%s0 + $0xf] sm:$0x1]
  %v36 = vunpack.c.l.bf16 %v20
  %v37 = vunpack.c.l.bf16 %v21
  %v38 = vunpack.c.l.bf16 %v22
  %v39 = vunpack.c.l.bf16 %v23
  %v40 = vunpack.c.l.bf16 %v24
  %v41 = vunpack.c.l.bf16 %v25
  %v42 = vunpack.c.l.bf16 %v26
  %v43 = vunpack.c.l.bf16 %v27
  %v44 = vunpack.c.l.bf16 %v28
  %v45 = vunpack.c.l.bf16 %v29
  %v46 = vunpack.c.l.bf16 %v30
  %v47 = vunpack.c.l.bf16 %v31
  %v48 = vunpack.c.l.bf16 %v32
  %v49 = vunpack.c.l.bf16 %v33
  %v50 = vunpack.c.l.bf16 %v34
  %v51 = vunpack.c.l.bf16 %v35
  %vm52 = vcmask 123904
  %v53 = vsel %vm52, %v36, 0.0
  %54 = vadd.xlane.f32.xlu0 %v53
  %v55 = vpop.xlane.xlu0 %54
  %v56 = vsel %vm52, %v37, 0.0
  %57 = vadd.xlane.f32.xlu0 %v56
  %v58 = vpop.xlane.xlu0 %57
  %v59 = vsel %vm52, %v38, 0.0
  %60 = vadd.xlane.f32.xlu0 %v59
  %v61 = vpop.xlane.xlu0 %60
  %v62 = vsel %vm52, %v39, 0.0
  %63 = vadd.xlane.f32.xlu0 %v62
  %v64 = vpop.xlane.xlu0 %63
  %v65 = vsel %vm52, %v40, 0.0
  %66 = vadd.xlane.f32.xlu0 %v65
  %v67 = vpop.xlane.xlu0 %66
  %v68 = vsel %vm52, %v41, 0.0
  %69 = vadd.xlane.f32.xlu0 %v68
  %v70 = vpop.xlane.xlu0 %69
  %v71 = vsel %vm52, %v42, 0.0
  %72 = vadd.xlane.f32.xlu0 %v71
  %v73 = vpop.xlane.xlu0 %72
  %v74 = vsel %vm52, %v43, 0.0
  %75 = vadd.xlane.f32.xlu0 %v74
  %v76 = vpop.xlane.xlu0 %75
  %v77 = vsel %vm52, %v44, 0.0
  %78 = vadd.xlane.f32.xlu0 %v77
  %v79 = vpop.xlane.xlu0 %78
  %v80 = vsel %vm52, %v45, 0.0
  %81 = vadd.xlane.f32.xlu0 %v80
  %v82 = vpop.xlane.xlu0 %81
  %v83 = vsel %vm52, %v46, 0.0
  %84 = vadd.xlane.f32.xlu0 %v83
  %v85 = vpop.xlane.xlu0 %84
  %v86 = vsel %vm52, %v47, 0.0
  %87 = vadd.xlane.f32.xlu0 %v86
  %v88 = vpop.xlane.xlu0 %87
  %v89 = vsel %vm52, %v48, 0.0
  %90 = vadd.xlane.f32.xlu0 %v89
  %v91 = vpop.xlane.xlu0 %90
  %v92 = vsel %vm52, %v49, 0.0
  %93 = vadd.xlane.f32.xlu0 %v92
  %v94 = vpop.xlane.xlu0 %93
  %v95 = vsel %vm52, %v50, 0.0
  %96 = vadd.xlane.f32.xlu0 %v95
  %v97 = vpop.xlane.xlu0 %96
  %v98 = vsel %vm52, %v51, 0.0
  %99 = vadd.xlane.f32.xlu0 %v98
  %v100 = vpop.xlane.xlu0 %99
  %v101 = vmul.f32 %v55, 0.0625
  %v102 = vmul.f32 %v58, 0.0625
  %v103 = vmul.f32 %v61, 0.0625
  %v104 = vmul.f32 %v64, 0.0625
  %v105 = vmul.f32 %v67, 0.0625
  %v106 = vmul.f32 %v70, 0.0625
  %v107 = vmul.f32 %v73, 0.0625
  %v108 = vmul.f32 %v76, 0.0625
  %v109 = vmul.f32 %v79, 0.0625
  %v110 = vmul.f32 %v82, 0.0625
  %v111 = vmul.f32 %v85, 0.0625
  %v112 = vmul.f32 %v88, 0.0625
  %v113 = vmul.f32 %v91, 0.0625
  %v114 = vmul.f32 %v94, 0.0625
  %v115 = vmul.f32 %v97, 0.0625
  %v116 = vmul.f32 %v100, 0.0625
  %v117 = vld [vmem:[%s1] sm:$0xf]
  %v118 = vld [vmem:[%s2] sm:$0xf]
  %120 = vset.pattern.permute.xlu0 0
  %121 = vperm.xlu0 %120, %v118
  %v122 = vpop.permute.xlu0 %121
  %v140 = vlaneseq
  %v141 = vand.u32 %v140, 127
  %v142 = vlaneseq
  %v143 = vshrl.u32 %v142, 7
  %v144 = vsub.s32 %v141, %v143
  %v145 = vrot.slane %v101, %v144
  %v146 = vlaneseq
  %v147 = vshrl.u32 %v146, 7
  %v148 = vsub.s32 %v141, %v147
  %v149 = vrot.slane %v102, %v148
  %v150 = vlaneseq
  %v151 = vshrl.u32 %v150, 7
  %v152 = vsub.s32 %v141, %v151
  %v153 = vrot.slane %v103, %v152
  %v154 = vlaneseq
  %v155 = vshrl.u32 %v154, 7
  %v156 = vsub.s32 %v141, %v155
  %v157 = vrot.slane %v104, %v156
  %v158 = vlaneseq
  %v159 = vshrl.u32 %v158, 7
  %v160 = vsub.s32 %v141, %v159
  %v161 = vrot.slane %v105, %v160
  %v162 = vlaneseq
  %v163 = vshrl.u32 %v162, 7
  %v164 = vsub.s32 %v141, %v163
  %v165 = vrot.slane %v106, %v164
  %v166 = vlaneseq
  %v167 = vshrl.u32 %v166, 7
  %v168 = vsub.s32 %v141, %v167
  %v169 = vrot.slane %v107, %v168
  %v170 = vlaneseq
  %v171 = vshrl.u32 %v170, 7
  %v172 = vsub.s32 %v141, %v171
  %v173 = vrot.slane %v108, %v172
  %v174 = vlaneseq
  %v175 = vshrl.u32 %v174, 7
  %v176 = vsub.s32 %v141, %v175
  %v177 = vrot.slane %v109, %v176
  %v178 = vlaneseq
  %v179 = vshrl.u32 %v178, 7
  %v180 = vsub.s32 %v141, %v179
  %v181 = vrot.slane %v110, %v180
  %v182 = vlaneseq
  %v183 = vshrl.u32 %v182, 7
  %v184 = vsub.s32 %v141, %v183
  %v185 = vrot.slane %v111, %v184
  %v186 = vlaneseq
  %v187 = vshrl.u32 %v186, 7
  %v188 = vsub.s32 %v141, %v187
  %v189 = vrot.slane %v112, %v188
  %v190 = vlaneseq
  %v191 = vshrl.u32 %v190, 7
  %v192 = vsub.s32 %v141, %v191
  %v193 = vrot.slane %v113, %v192
  %v194 = vlaneseq
  %v195 = vshrl.u32 %v194, 7
  %v196 = vsub.s32 %v141, %v195
  %v197 = vrot.slane %v114, %v196
  %v198 = vlaneseq
  %v199 = vshrl.u32 %v198, 7
  %v200 = vsub.s32 %v141, %v199
  %v201 = vrot.slane %v115, %v200
  %v202 = vlaneseq
  %v203 = vshrl.u32 %v202, 7
  %v204 = vsub.s32 %v141, %v203
  %v205 = vrot.slane %v116, %v204
  %vm206 = vcmask 1041409
  %v207 = vsel %vm206, %v149, %v145
  %vm208 = vcmask 1042434
  %v209 = vsel %vm208, %v153, %v207
  %vm210 = vcmask 1043459
  %v211 = vsel %vm210, %v157, %v209
  %vm212 = vcmask 1044484
  %v213 = vsel %vm212, %v161, %v211
  %vm214 = vcmask 1045509
  %v215 = vsel %vm214, %v165, %v213
  %vm216 = vcmask 1046534
  %v217 = vsel %vm216, %v169, %v215
  %vm218 = vcmask 1047559
  %v219 = vsel %vm218, %v173, %v217
  %v220 = vsel %vm206, %v181, %v177
  %v221 = vsel %vm208, %v185, %v220
  %v222 = vsel %vm210, %v189, %v221
  %v223 = vsel %vm212, %v193, %v222
  %v224 = vsel %vm214, %v197, %v223
  %v225 = vsel %vm216, %v201, %v224
  %v226 = vsel %vm218, %v205, %v225
  %vm229 = vcmask 130048
  %v231 = vsel %vm229, %v117, 0
  %233 = vmatprep.subr.mxu0 0.0
  %234 = vmatpush1.msra.mxu0 %v219
  %235 = vmatprep.subr.mxu0 0.0
  %236 = vmatpush1.msra.mxu0 %v226
  %237 = vmatprep.subr.mxu0 0.0
  %238 = vmatpush1.msra.mxu0 0.0
  %239 = vmatprep.subr.mxu0 0.0
  %240 = vmatpush1.msra.mxu0 0.0
  %241 = vmatprep.subr.mxu0 0.0
  %242 = vmatpush1.msra.mxu0 0.0
  %243 = vmatprep.subr.mxu0 0.0
  %244 = vmatpush1.msra.mxu0 0.0
  %245 = vmatprep.subr.mxu0 0.0
  %246 = vmatpush1.msra.mxu0 0.0
  %247 = vmatprep.subr.mxu0 0.0
  %248 = vmatpush1.msra.mxu0 0.0
  %249 = vmatprep.subr.mxu0 0.0
  %250 = vmatpush1.msra.mxu0 0.0
  %251 = vmatprep.subr.mxu0 0.0
  %252 = vmatpush1.msra.mxu0 0.0
  %253 = vmatprep.subr.mxu0 0.0
  %254 = vmatpush1.msra.mxu0 0.0
  %255 = vmatprep.subr.mxu0 0.0
  %256 = vmatpush1.msra.mxu0 0.0
  %257 = vmatprep.subr.mxu0 0.0
  %258 = vmatpush1.msra.mxu0 0.0
  %259 = vmatprep.subr.mxu0 0.0
  %260 = vmatpush1.msra.mxu0 0.0
  %261 = vmatprep.subr.mxu0 0.0
  %262 = vmatpush1.msra.mxu0 0.0
  %263 = vmatprep.subr.mxu0 0.0
  %264 = vmatpush1.msra.mxu0 0.0
  %265 = vmatprep.subr.mxu0 0.0
  %266 = vmatpush1.msra.mxu0 0.0
  %267 = vmatprep.subr.mxu0 0.0
  %268 = vmatpush1.msra.mxu0 0.0
  %269 = vmatprep.subr.mxu0 0.0
  %270 = vmatpush1.msra.mxu0 0.0
  %271 = vmatprep.subr.mxu0 0.0
  %272 = vmatpush1.msra.mxu0 0.0
  %273 = vmatprep.subr.mxu0 0.0
  %274 = vmatpush1.msra.mxu0 0.0
  %275 = vmatprep.subr.mxu0 0.0
  %276 = vmatpush1.msra.mxu0 0.0
  %277 = vmatprep.subr.mxu0 0.0
  %278 = vmatpush1.msra.mxu0 0.0
  %279 = vmatprep.subr.mxu0 0.0
  %280 = vmatpush1.msra.mxu0 0.0
  %281 = vmatprep.subr.mxu0 0.0
  %282 = vmatpush1.msra.mxu0 0.0
  %283 = vmatprep.subr.mxu0 0.0
  %284 = vmatpush1.msra.mxu0 0.0
  %285 = vmatprep.subr.mxu0 0.0
  %286 = vmatpush1.msra.mxu0 0.0
  %287 = vmatprep.subr.mxu0 0.0
  %288 = vmatpush1.msra.mxu0 0.0
  %289 = vmatprep.subr.mxu0 0.0
  %290 = vmatpush1.msra.mxu0 0.0
  %291 = vmatprep.subr.mxu0 0.0
  %292 = vmatpush1.msra.mxu0 0.0
  %293 = vmatprep.subr.mxu0 0.0
  %294 = vmatpush1.msra.mxu0 0.0
  %295 = vmatprep.subr.mxu0 0.0
  %296 = vmatpush1.msra.mxu0 0.0
  %297 = vmatprep.mubr.f32.mxu0 0.0
  %298 = vmatmul.mubr.f32.gmra.mrb[0].mxu0 %v231
  %v299 = vpop.f32.mrb[0].mxu0
  %v300 = vadd.f32 %v122, %v299
  %v301 = vpop.f32.mrb[0].mxu0
  %302 = vdwg.mxu0
  %v303 = vmax.f32 %v300, 0.0
  %v304 = vld [vmem:[%s3] sm:$0xff]
  %v305 = vld [vmem:[%s3 + $0x8] sm:$0xff]
  %v306 = vld [vmem:[%s4] sm:$0xff]
  %v307 = vld [vmem:[%s4 + $0x8] sm:$0xff]
  %309 = vset.pattern.permute.xlu0 0
  %310 = vperm.xlu0 %309, %v306
  %v311 = vpop.permute.xlu0 %310
  %314 = vset.pattern.permute.xlu0 0
  %315 = vperm.xlu0 %314, %v307
  %v316 = vpop.permute.xlu0 %315
  %vm318 = vcmask 31744
  %v320 = vsel %vm318, %v304, 0
  %v323 = vsel %vm318, %v305, 0
  %vm325 = vcmask 1043456
  %v327 = vsel %vm325, %v303, 0
  %329 = vmatprep.subr.mxu0 0.0
  %330 = vmatpush1.msra.mxu0 %v327
  %331 = vmatprep.subr.mxu0 0.0
  %332 = vmatpush1.msra.mxu0 0.0
  %333 = vmatprep.subr.mxu0 0.0
  %334 = vmatpush1.msra.mxu0 0.0
  %335 = vmatprep.subr.mxu0 0.0
  %336 = vmatpush1.msra.mxu0 0.0
  %337 = vmatprep.subr.mxu0 0.0
  %338 = vmatpush1.msra.mxu0 0.0
  %339 = vmatprep.subr.mxu0 0.0
  %340 = vmatpush1.msra.mxu0 0.0
  %341 = vmatprep.subr.mxu0 0.0
  %342 = vmatpush1.msra.mxu0 0.0
  %343 = vmatprep.subr.mxu0 0.0
  %344 = vmatpush1.msra.mxu0 0.0
  %345 = vmatprep.subr.mxu0 0.0
  %346 = vmatpush1.msra.mxu0 0.0
  %347 = vmatprep.subr.mxu0 0.0
  %348 = vmatpush1.msra.mxu0 0.0
  %349 = vmatprep.subr.mxu0 0.0
  %350 = vmatpush1.msra.mxu0 0.0
  %351 = vmatprep.subr.mxu0 0.0
  %352 = vmatpush1.msra.mxu0 0.0
  %353 = vmatprep.subr.mxu0 0.0
  %354 = vmatpush1.msra.mxu0 0.0
  %355 = vmatprep.subr.mxu0 0.0
  %356 = vmatpush1.msra.mxu0 0.0
  %357 = vmatprep.subr.mxu0 0.0
  %358 = vmatpush1.msra.mxu0 0.0
  %359 = vmatprep.subr.mxu0 0.0
  %360 = vmatpush1.msra.mxu0 0.0
  %361 = vmatprep.subr.mxu0 0.0
  %362 = vmatpush1.msra.mxu0 0.0
  %363 = vmatprep.subr.mxu0 0.0
  %364 = vmatpush1.msra.mxu0 0.0
  %365 = vmatprep.subr.mxu0 0.0
  %366 = vmatpush1.msra.mxu0 0.0
  %367 = vmatprep.subr.mxu0 0.0
  %368 = vmatpush1.msra.mxu0 0.0
  %369 = vmatprep.subr.mxu0 0.0
  %370 = vmatpush1.msra.mxu0 0.0
  %371 = vmatprep.subr.mxu0 0.0
  %372 = vmatpush1.msra.mxu0 0.0
  %373 = vmatprep.subr.mxu0 0.0
  %374 = vmatpush1.msra.mxu0 0.0
  %375 = vmatprep.subr.mxu0 0.0
  %376 = vmatpush1.msra.mxu0 0.0
  %377 = vmatprep.subr.mxu0 0.0
  %378 = vmatpush1.msra.mxu0 0.0
  %379 = vmatprep.subr.mxu0 0.0
  %380 = vmatpush1.msra.mxu0 0.0
  %381 = vmatprep.subr.mxu0 0.0
  %382 = vmatpush1.msra.mxu0 0.0
  %383 = vmatprep.subr.mxu0 0.0
  %384 = vmatpush1.msra.mxu0 0.0
  %385 = vmatprep.subr.mxu0 0.0
  %386 = vmatpush1.msra.mxu0 0.0
  %387 = vmatprep.subr.mxu0 0.0
  %388 = vmatpush1.msra.mxu0 0.0
  %389 = vmatprep.subr.mxu0 0.0
  %390 = vmatpush1.msra.mxu0 0.0
  %391 = vmatprep.subr.mxu0 0.0
  %392 = vmatpush1.msra.mxu0 0.0
  %393 = vmatprep.mubr.f32.mxu0 0.0
  %394 = vmatmul.mubr.f32.gmra.mrb[0].mxu0 %v320
  %v395 = vpop.f32.mrb[0].mxu0
  %v396 = vadd.f32 %v311, %v395
  %v397 = vpop.f32.mrb[0].mxu0
  %398 = vmatprep.mubr.f32.mxu0 0.0
  %399 = vmatmul.mubr.f32.gmra.mrb[0].mxu0 %v323
  %v400 = vpop.f32.mrb[0].mxu0
  %v401 = vadd.f32 %v316, %v400
  %v402 = vpop.f32.mrb[0].mxu0
  %403 = vdwg.mxu0
  %v404 = vsub.f32 0.0, %v396
  %v405 = vsub.f32 0.0, %v401
  %v406 = vmul.f32 %v404, 1.442695
  %v407 = vpow.pop %v406
  %v408 = vmul.f32 %v405, 1.442695
  %v409 = vpow.pop %v408
  %v410 = vadd.f32 %v407, 1.0
  %v411 = vadd.f32 %v409, 1.0
  %v412 = vrcp.pop %v410
  %v413 = vmul.f32 1.0, %v412
  %v414 = vrcp.pop %v411
  %v415 = vmul.f32 1.0, %v414
  %v416 = vlaneseq
  %v417 = vshrl.u32 %v416, 7
  %v418 = vsub.s32 0, %v417
  %v419 = vrot.slane %v413, %v418
  %421 = vbcast.lane.b32.xlu0 %v419, 256
  %v422 = vpop.permute.xlu0 %421
  %v423 = vlaneseq
  %v424 = vshrl.u32 %v423, 7
  %v425 = vsub.s32 1, %v424
  %v426 = vrot.slane %v413, %v425
  %428 = vbcast.lane.b32.xlu0 %v426, 256
  %v429 = vpop.permute.xlu0 %428
  %v430 = vlaneseq
  %v431 = vshrl.u32 %v430, 7
  %v432 = vsub.s32 2, %v431
  %v433 = vrot.slane %v413, %v432
  %435 = vbcast.lane.b32.xlu0 %v433, 256
  %v436 = vpop.permute.xlu0 %435
  %v437 = vlaneseq
  %v438 = vshrl.u32 %v437, 7
  %v439 = vsub.s32 3, %v438
  %v440 = vrot.slane %v413, %v439
  %442 = vbcast.lane.b32.xlu0 %v440, 256
  %v443 = vpop.permute.xlu0 %442
  %v444 = vlaneseq
  %v445 = vshrl.u32 %v444, 7
  %v446 = vsub.s32 4, %v445
  %v447 = vrot.slane %v413, %v446
  %449 = vbcast.lane.b32.xlu0 %v447, 256
  %v450 = vpop.permute.xlu0 %449
  %v451 = vlaneseq
  %v452 = vshrl.u32 %v451, 7
  %v453 = vsub.s32 5, %v452
  %v454 = vrot.slane %v413, %v453
  %456 = vbcast.lane.b32.xlu0 %v454, 256
  %v457 = vpop.permute.xlu0 %456
  %v458 = vlaneseq
  %v459 = vshrl.u32 %v458, 7
  %v460 = vsub.s32 6, %v459
  %v461 = vrot.slane %v413, %v460
  %463 = vbcast.lane.b32.xlu0 %v461, 256
  %v464 = vpop.permute.xlu0 %463
  %v465 = vlaneseq
  %v466 = vshrl.u32 %v465, 7
  %v467 = vsub.s32 7, %v466
  %v468 = vrot.slane %v413, %v467
  %470 = vbcast.lane.b32.xlu0 %v468, 256
  %v471 = vpop.permute.xlu0 %470
  %v472 = vlaneseq
  %v473 = vshrl.u32 %v472, 7
  %v474 = vsub.s32 0, %v473
  %v475 = vrot.slane %v415, %v474
  %477 = vbcast.lane.b32.xlu0 %v475, 256
  %v478 = vpop.permute.xlu0 %477
  %v479 = vlaneseq
  %v480 = vshrl.u32 %v479, 7
  %v481 = vsub.s32 1, %v480
  %v482 = vrot.slane %v415, %v481
  %484 = vbcast.lane.b32.xlu0 %v482, 256
  %v485 = vpop.permute.xlu0 %484
  %v486 = vlaneseq
  %v487 = vshrl.u32 %v486, 7
  %v488 = vsub.s32 2, %v487
  %v489 = vrot.slane %v415, %v488
  %491 = vbcast.lane.b32.xlu0 %v489, 256
  %v492 = vpop.permute.xlu0 %491
  %v493 = vlaneseq
  %v494 = vshrl.u32 %v493, 7
  %v495 = vsub.s32 3, %v494
  %v496 = vrot.slane %v415, %v495
  %498 = vbcast.lane.b32.xlu0 %v496, 256
  %v499 = vpop.permute.xlu0 %498
  %v500 = vlaneseq
  %v501 = vshrl.u32 %v500, 7
  %v502 = vsub.s32 4, %v501
  %v503 = vrot.slane %v415, %v502
  %505 = vbcast.lane.b32.xlu0 %v503, 256
  %v506 = vpop.permute.xlu0 %505
  %v507 = vlaneseq
  %v508 = vshrl.u32 %v507, 7
  %v509 = vsub.s32 5, %v508
  %v510 = vrot.slane %v415, %v509
  %512 = vbcast.lane.b32.xlu0 %v510, 256
  %v513 = vpop.permute.xlu0 %512
  %v514 = vlaneseq
  %v515 = vshrl.u32 %v514, 7
  %v516 = vsub.s32 6, %v515
  %v517 = vrot.slane %v415, %v516
  %519 = vbcast.lane.b32.xlu0 %v517, 256
  %v520 = vpop.permute.xlu0 %519
  %v521 = vlaneseq
  %v522 = vshrl.u32 %v521, 7
  %v523 = vsub.s32 7, %v522
  %v524 = vrot.slane %v415, %v523
  %526 = vbcast.lane.b32.xlu0 %v524, 256
  %v527 = vpop.permute.xlu0 %526
  %v528 = vmul.f32 %v36, %v422
  %v529 = vmul.f32 %v37, %v429
  %v530 = vmul.f32 %v38, %v436
  %v531 = vmul.f32 %v39, %v443
  %v532 = vmul.f32 %v40, %v450
  %v533 = vmul.f32 %v41, %v457
  %v534 = vmul.f32 %v42, %v464
  %v535 = vmul.f32 %v43, %v471
  %v536 = vmul.f32 %v44, %v478
  %v537 = vmul.f32 %v45, %v485
  %v538 = vmul.f32 %v46, %v492
  %v539 = vmul.f32 %v47, %v499
  %v540 = vmul.f32 %v48, %v506
  %v541 = vmul.f32 %v49, %v513
  %v542 = vmul.f32 %v50, %v520
  %v543 = vmul.f32 %v51, %v527
  %544 = vst.msk [vmem:[%s5] sm:$0x3] %vm52, %v528
  %545 = vst.msk [vmem:[%s5 + $0x2] sm:$0x3] %vm52, %v529
  %546 = vst.msk [vmem:[%s5 + $0x4] sm:$0x3] %vm52, %v530
  %547 = vst.msk [vmem:[%s5 + $0x6] sm:$0x3] %vm52, %v531
  %548 = vst.msk [vmem:[%s5 + $0x8] sm:$0x3] %vm52, %v532
  %549 = vst.msk [vmem:[%s5 + $0xa] sm:$0x3] %vm52, %v533
  %550 = vst.msk [vmem:[%s5 + $0xc] sm:$0x3] %vm52, %v534
  %551 = vst.msk [vmem:[%s5 + $0xe] sm:$0x3] %vm52, %v535
  %552 = vst.msk [vmem:[%s5 + $0x10] sm:$0x3] %vm52, %v536
  %553 = vst.msk [vmem:[%s5 + $0x12] sm:$0x3] %vm52, %v537
  %554 = vst.msk [vmem:[%s5 + $0x14] sm:$0x3] %vm52, %v538
  %555 = vst.msk [vmem:[%s5 + $0x16] sm:$0x3] %vm52, %v539
  %556 = vst.msk [vmem:[%s5 + $0x18] sm:$0x3] %vm52, %v540
  %557 = vst.msk [vmem:[%s5 + $0x1a] sm:$0x3] %vm52, %v541
  %558 = vst.msk [vmem:[%s5 + $0x1c] sm:$0x3] %vm52, %v542
  %559 = vst.msk [vmem:[%s5 + $0x1e] sm:$0x3] %vm52, %v543
  // Predicated region
  $region22: #{_lambda_.35} parent=0 // pred_check
    _
  $region23: #{_lambda_.35} parent=0 // pred_check_branch
    %561 = sbr.rel (0) target = $region25
  $region24: #{_lambda_.35} parent=0 // pred_region
    _
  $region25: #{_lambda_.35} parent=0 // pred_fallthru
    _
  // Predicated region
  $region26: #{_lambda_.35} parent=0 // pred_check
    _
  $region27: #{_lambda_.35} parent=0 // pred_check_branch
    %563 = sbr.rel (0) target = $region29
  $region28: #{_lambda_.35} parent=0 // pred_region
    _
  $region29: #{_lambda_.35} parent=0 // pred_fallthru
    _

// kernel: _lambda_.34
$region0: #{_lambda_.34}
  #allocation0 [shape = 'u32[]', space=smem, size = 0x4, offset = 0x4, fixed_abs, tag = 'smem constant byte address 0x4 - core index']
  #allocation1 [shape = 'u32[144,128]{1,0:T(1,128)}', space=vmem, size = 0x12000, scoped, tag = 'internal scratch']
  %s0 = inlined_call_operand.vmem [shape: bf16[16,2,64], index: 0, kind: input, shape index: {}]
  %s1 = inlined_call_operand.vmem [shape: f32[4,16], index: 1, kind: input, shape index: {}]
  %s2 = inlined_call_operand.vmem [shape: f32[4,1], index: 2, kind: input, shape index: {}]
  %s3 = inlined_call_operand.vmem [shape: f32[16,4], index: 3, kind: input, shape index: {}]
  %s4 = inlined_call_operand.vmem [shape: f32[16,1], index: 4, kind: input, shape index: {}]
  %s5 = inlined_call_operand.vmem [shape: f32[16,2,64], index: 5, kind: output, shape index: {}]
  %s6 = sld [smem:[#allocation0]]
  $region30: #{_lambda_.34} parent=0
    _
  %s8 = ssub.s32 1, %s6
  %s9 = scalar_select 0, %s8, %s6
  // Predicated region
  $region2: #{_lambda_.34} parent=0 // pred_check
    _
  $region3: #{_lambda_.34} parent=0 // pred_check_branch
    %11 = sbr.rel (0) target = $region5
  $region4: #{_lambda_.34} parent=0 // pred_region
    _
  $region5: #{_lambda_.34} parent=0 // pred_fallthru
    _
  // Predicated region
  $region6: #{_lambda_.34} parent=0 // pred_check
    _
  $region7: #{_lambda_.34} parent=0 // pred_check_branch
    %13 = sbr.rel (0) target = $region9
  $region8: #{_lambda_.34} parent=0 // pred_region
    _
  $region9: #{_lambda_.34} parent=0 // pred_fallthru
    _
  // Predicated region
  $region10: #{_lambda_.34} parent=0 // pred_check
    _
  $region11: #{_lambda_.34} parent=0 // pred_check_branch
    %15 = sbr.rel (0) target = $region13
  $region12: #{_lambda_.34} parent=0 // pred_region
    _
  $region13: #{_lambda_.34} parent=0 // pred_fallthru
    _
  // Predicated region
  $region14: #{_lambda_.34} parent=0 // pred_check
    _
  $region15: #{_lambda_.34} parent=0 // pred_check_branch
    %17 = sbr.rel (0) target = $region17
  $region16: #{_lambda_.34} parent=0 // pred_region
    _
  $region17: #{_lambda_.34} parent=0 // pred_fallthru
    _
  // Predicated region
  $region18: #{_lambda_.34} parent=0 // pred_check
    _
  $region19: #{_lambda_.34} parent=0 // pred_check_branch
    %19 = sbr.rel (0) target = $region21
  $region20: #{_lambda_.34} parent=0 // pred_region
    _
  $region21: #{_lambda_.34} parent=0 // pred_fallthru
    _
  %v20 = vld [vmem:[%s0] sm:$0x1]
  %v21 = vld [vmem:[%s0 + $0x1] sm:$0x1]
  %v22 = vld [vmem:[%s0 + $0x2] sm:$0x1]
  %v23 = vld [vmem:[%s0 + $0x3] sm:$0x1]
  %v24 = vld [vmem:[%s0 + $0x4] sm:$0x1]
  %v25 = vld [vmem:[%s0 + $0x5] sm:$0x1]
  %v26 = vld [vmem:[%s0 + $0x6] sm:$0x1]
  %v27 = vld [vmem:[%s0 + $0x7] sm:$0x1]
  %v28 = vld [vmem:[%s0 + $0x8] sm:$0x1]
  %v29 = vld [vmem:[%s0 + $0x9] sm:$0x1]
  %v30 = vld [vmem:[%s0 + $0xa] sm:$0x1]
  %v31 = vld [vmem:[%s0 + $0xb] sm:$0x1]
  %v32 = vld [vmem:[%s0 + $0xc] sm:$0x1]
  %v33 = vld [vmem:[%s0 + $0xd] sm:$0x1]
  %v34 = vld [vmem:[%s0 + $0xe] sm:$0x1]
  %v35 = vld [vmem:[%s0 + $0xf] sm:$0x1]
  %v36 = vunpack.c.l.bf16 %v20
  %v37 = vunpack.c.l.bf16 %v21
  %v38 = vunpack.c.l.bf16 %v22
  %v39 = vunpack.c.l.bf16 %v23
  %v40 = vunpack.c.l.bf16 %v24
  %v41 = vunpack.c.l.bf16 %v25
  %v42 = vunpack.c.l.bf16 %v26
  %v43 = vunpack.c.l.bf16 %v27
  %v44 = vunpack.c.l.bf16 %v28
  %v45 = vunpack.c.l.bf16 %v29
  %v46 = vunpack.c.l.bf16 %v30
  %v47 = vunpack.c.l.bf16 %v31
  %v48 = vunpack.c.l.bf16 %v32
  %v49 = vunpack.c.l.bf16 %v33
  %v50 = vunpack.c.l.bf16 %v34
  %v51 = vunpack.c.l.bf16 %v35
  %vm52 = vcmask 517120
  %v53 = vsel %vm52, %v36, 0.0
  %54 = vadd.xlane.f32.xlu0 %v53
  %v55 = vpop.xlane.xlu0 %54
  %v56 = vsel %vm52, %v37, 0.0
  %57 = vadd.xlane.f32.xlu0 %v56
  %v58 = vpop.xlane.xlu0 %57
  %v59 = vsel %vm52, %v38, 0.0
  %60 = vadd.xlane.f32.xlu0 %v59
  %v61 = vpop.xlane.xlu0 %60
  %v62 = vsel %vm52, %v39, 0.0
  %63 = vadd.xlane.f32.xlu0 %v62
  %v64 = vpop.xlane.xlu0 %63
  %v65 = vsel %vm52, %v40, 0.0
  %66 = vadd.xlane.f32.xlu0 %v65
  %v67 = vpop.xlane.xlu0 %66
  %v68 = vsel %vm52, %v41, 0.0
  %69 = vadd.xlane.f32.xlu0 %v68
  %v70 = vpop.xlane.xlu0 %69
  %v71 = vsel %vm52, %v42, 0.0
  %72 = vadd.xlane.f32.xlu0 %v71
  %v73 = vpop.xlane.xlu0 %72
  %v74 = vsel %vm52, %v43, 0.0
  %75 = vadd.xlane.f32.xlu0 %v74
  %v76 = vpop.xlane.xlu0 %75
  %v77 = vsel %vm52, %v44, 0.0
  %78 = vadd.xlane.f32.xlu0 %v77
  %v79 = vpop.xlane.xlu0 %78
  %v80 = vsel %vm52, %v45, 0.0
  %81 = vadd.xlane.f32.xlu0 %v80
  %v82 = vpop.xlane.xlu0 %81
  %v83 = vsel %vm52, %v46, 0.0
  %84 = vadd.xlane.f32.xlu0 %v83
  %v85 = vpop.xlane.xlu0 %84
  %v86 = vsel %vm52, %v47, 0.0
  %87 = vadd.xlane.f32.xlu0 %v86
  %v88 = vpop.xlane.xlu0 %87
  %v89 = vsel %vm52, %v48, 0.0
  %90 = vadd.xlane.f32.xlu0 %v89
  %v91 = vpop.xlane.xlu0 %90
  %v92 = vsel %vm52, %v49, 0.0
  %93 = vadd.xlane.f32.xlu0 %v92
  %v94 = vpop.xlane.xlu0 %93
  %v95 = vsel %vm52, %v50, 0.0
  %96 = vadd.xlane.f32.xlu0 %v95
  %v97 = vpop.xlane.xlu0 %96
  %v98 = vsel %vm52, %v51, 0.0
  %99 = vadd.xlane.f32.xlu0 %v98
  %v100 = vpop.xlane.xlu0 %99
  %v101 = vmul.f32 %v55, 0.015625
  %v102 = vmul.f32 %v58, 0.015625
  %v103 = vmul.f32 %v61, 0.015625
  %v104 = vmul.f32 %v64, 0.015625
  %v105 = vmul.f32 %v67, 0.015625
  %v106 = vmul.f32 %v70, 0.015625
  %v107 = vmul.f32 %v73, 0.015625
  %v108 = vmul.f32 %v76, 0.015625
  %v109 = vmul.f32 %v79, 0.015625
  %v110 = vmul.f32 %v82, 0.015625
  %v111 = vmul.f32 %v85, 0.015625
  %v112 = vmul.f32 %v88, 0.015625
  %v113 = vmul.f32 %v91, 0.015625
  %v114 = vmul.f32 %v94, 0.015625
  %v115 = vmul.f32 %v97, 0.015625
  %v116 = vmul.f32 %v100, 0.015625
  %v117 = vld [vmem:[%s1] sm:$0xf]
  %v118 = vld [vmem:[%s2] sm:$0xf]
  %120 = vset.pattern.permute.xlu0 0
  %121 = vperm.xlu0 %120, %v118
  %v122 = vpop.permute.xlu0 %121
  %v140 = vlaneseq
  %v141 = vand.u32 %v140, 127
  %v142 = vlaneseq
  %v143 = vshrl.u32 %v142, 7
  %v144 = vsub.s32 %v141, %v143
  %v145 = vrot.slane %v101, %v144
  %v146 = vlaneseq
  %v147 = vshrl.u32 %v146, 7
  %v148 = vsub.s32 %v141, %v147
  %v149 = vrot.slane %v102, %v148
  %v150 = vlaneseq
  %v151 = vshrl.u32 %v150, 7
  %v152 = vsub.s32 %v141, %v151
  %v153 = vrot.slane %v103, %v152
  %v154 = vlaneseq
  %v155 = vshrl.u32 %v154, 7
  %v156 = vsub.s32 %v141, %v155
  %v157 = vrot.slane %v104, %v156
  %v158 = vlaneseq
  %v159 = vshrl.u32 %v158, 7
  %v160 = vsub.s32 %v141, %v159
  %v161 = vrot.slane %v105, %v160
  %v162 = vlaneseq
  %v163 = vshrl.u32 %v162, 7
  %v164 = vsub.s32 %v141, %v163
  %v165 = vrot.slane %v106, %v164
  %v166 = vlaneseq
  %v167 = vshrl.u32 %v166, 7
  %v168 = vsub.s32 %v141, %v167
  %v169 = vrot.slane %v107, %v168
  %v170 = vlaneseq
  %v171 = vshrl.u32 %v170, 7
  %v172 = vsub.s32 %v141, %v171
  %v173 = vrot.slane %v108, %v172
  %v174 = vlaneseq
  %v175 = vshrl.u32 %v174, 7
  %v176 = vsub.s32 %v141, %v175
  %v177 = vrot.slane %v109, %v176
  %v178 = vlaneseq
  %v179 = vshrl.u32 %v178, 7
  %v180 = vsub.s32 %v141, %v179
  %v181 = vrot.slane %v110, %v180
  %v182 = vlaneseq
  %v183 = vshrl.u32 %v182, 7
  %v184 = vsub.s32 %v141, %v183
  %v185 = vrot.slane %v111, %v184
  %v186 = vlaneseq
  %v187 = vshrl.u32 %v186, 7
  %v188 = vsub.s32 %v141, %v187
  %v189 = vrot.slane %v112, %v188
  %v190 = vlaneseq
  %v191 = vshrl.u32 %v190, 7
  %v192 = vsub.s32 %v141, %v191
  %v193 = vrot.slane %v113, %v192
  %v194 = vlaneseq
  %v195 = vshrl.u32 %v194, 7
  %v196 = vsub.s32 %v141, %v195
  %v197 = vrot.slane %v114, %v196
  %v198 = vlaneseq
  %v199 = vshrl.u32 %v198, 7
  %v200 = vsub.s32 %v141, %v199
  %v201 = vrot.slane %v115, %v200
  %v202 = vlaneseq
  %v203 = vshrl.u32 %v202, 7
  %v204 = vsub.s32 %v141, %v203
  %v205 = vrot.slane %v116, %v204
  %vm206 = vcmask 1041409
  %v207 = vsel %vm206, %v149, %v145
  %vm208 = vcmask 1042434
  %v209 = vsel %vm208, %v153, %v207
  %vm210 = vcmask 1043459
  %v211 = vsel %vm210, %v157, %v209
  %vm212 = vcmask 1044484
  %v213 = vsel %vm212, %v161, %v211
  %vm214 = vcmask 1045509
  %v215 = vsel %vm214, %v165, %v213
  %vm216 = vcmask 1046534
  %v217 = vsel %vm216, %v169, %v215
  %vm218 = vcmask 1047559
  %v219 = vsel %vm218, %v173, %v217
  %v220 = vsel %vm206, %v181, %v177
  %v221 = vsel %vm208, %v185, %v220
  %v222 = vsel %vm210, %v189, %v221
  %v223 = vsel %vm212, %v193, %v222
  %v224 = vsel %vm214, %v197, %v223
  %v225 = vsel %vm216, %v201, %v224
  %v226 = vsel %vm218, %v205, %v225
  %vm229 = vcmask 130048
  %v231 = vsel %vm229, %v117, 0
  %233 = vmatprep.subr.mxu0 0.0
  %234 = vmatpush1.msra.mxu0 %v219
  %235 = vmatprep.subr.mxu0 0.0
  %236 = vmatpush1.msra.mxu0 %v226
  %237 = vmatprep.subr.mxu0 0.0
  %238 = vmatpush1.msra.mxu0 0.0
  %239 = vmatprep.subr.mxu0 0.0
  %240 = vmatpush1.msra.mxu0 0.0
  %241 = vmatprep.subr.mxu0 0.0
  %242 = vmatpush1.msra.mxu0 0.0
  %243 = vmatprep.subr.mxu0 0.0
  %244 = vmatpush1.msra.mxu0 0.0
  %245 = vmatprep.subr.mxu0 0.0
  %246 = vmatpush1.msra.mxu0 0.0
  %247 = vmatprep.subr.mxu0 0.0
  %248 = vmatpush1.msra.mxu0 0.0
  %249 = vmatprep.subr.mxu0 0.0
  %250 = vmatpush1.msra.mxu0 0.0
  %251 = vmatprep.subr.mxu0 0.0
  %252 = vmatpush1.msra.mxu0 0.0
  %253 = vmatprep.subr.mxu0 0.0
  %254 = vmatpush1.msra.mxu0 0.0
  %255 = vmatprep.subr.mxu0 0.0
  %256 = vmatpush1.msra.mxu0 0.0
  %257 = vmatprep.subr.mxu0 0.0
  %258 = vmatpush1.msra.mxu0 0.0
  %259 = vmatprep.subr.mxu0 0.0
  %260 = vmatpush1.msra.mxu0 0.0
  %261 = vmatprep.subr.mxu0 0.0
  %262 = vmatpush1.msra.mxu0 0.0
  %263 = vmatprep.subr.mxu0 0.0
  %264 = vmatpush1.msra.mxu0 0.0
  %265 = vmatprep.subr.mxu0 0.0
  %266 = vmatpush1.msra.mxu0 0.0
  %267 = vmatprep.subr.mxu0 0.0
  %268 = vmatpush1.msra.mxu0 0.0
  %269 = vmatprep.subr.mxu0 0.0
  %270 = vmatpush1.msra.mxu0 0.0
  %271 = vmatprep.subr.mxu0 0.0
  %272 = vmatpush1.msra.mxu0 0.0
  %273 = vmatprep.subr.mxu0 0.0
  %274 = vmatpush1.msra.mxu0 0.0
  %275 = vmatprep.subr.mxu0 0.0
  %276 = vmatpush1.msra.mxu0 0.0
  %277 = vmatprep.subr.mxu0 0.0
  %278 = vmatpush1.msra.mxu0 0.0
  %279 = vmatprep.subr.mxu0 0.0
  %280 = vmatpush1.msra.mxu0 0.0
  %281 = vmatprep.subr.mxu0 0.0
  %282 = vmatpush1.msra.mxu0 0.0
  %283 = vmatprep.subr.mxu0 0.0
  %284 = vmatpush1.msra.mxu0 0.0
  %285 = vmatprep.subr.mxu0 0.0
  %286 = vmatpush1.msra.mxu0 0.0
  %287 = vmatprep.subr.mxu0 0.0
  %288 = vmatpush1.msra.mxu0 0.0
  %289 = vmatprep.subr.mxu0 0.0
  %290 = vmatpush1.msra.mxu0 0.0
  %291 = vmatprep.subr.mxu0 0.0
  %292 = vmatpush1.msra.mxu0 0.0
  %293 = vmatprep.subr.mxu0 0.0
  %294 = vmatpush1.msra.mxu0 0.0
  %295 = vmatprep.subr.mxu0 0.0
  %296 = vmatpush1.msra.mxu0 0.0
  %297 = vmatprep.mubr.f32.mxu0 0.0
  %298 = vmatmul.mubr.f32.gmra.mrb[0].mxu0 %v231
  %v299 = vpop.f32.mrb[0].mxu0
  %v300 = vadd.f32 %v122, %v299
  %v301 = vpop.f32.mrb[0].mxu0
  %302 = vdwg.mxu0
  %v303 = vmax.f32 %v300, 0.0
  %v304 = vld [vmem:[%s3] sm:$0xff]
  %v305 = vld [vmem:[%s3 + $0x8] sm:$0xff]
  %v306 = vld [vmem:[%s4] sm:$0xff]
  %v307 = vld [vmem:[%s4 + $0x8] sm:$0xff]
  %309 = vset.pattern.permute.xlu0 0
  %310 = vperm.xlu0 %309, %v306
  %v311 = vpop.permute.xlu0 %310
  %314 = vset.pattern.permute.xlu0 0
  %315 = vperm.xlu0 %314, %v307
  %v316 = vpop.permute.xlu0 %315
  %vm318 = vcmask 31744
  %v320 = vsel %vm318, %v304, 0
  %v323 = vsel %vm318, %v305, 0
  %vm325 = vcmask 1043456
  %v327 = vsel %vm325, %v303, 0
  %329 = vmatprep.subr.mxu0 0.0
  %330 = vmatpush1.msra.mxu0 %v327
  %331 = vmatprep.subr.mxu0 0.0
  %332 = vmatpush1.msra.mxu0 0.0
  %333 = vmatprep.subr.mxu0 0.0
  %334 = vmatpush1.msra.mxu0 0.0
  %335 = vmatprep.subr.mxu0 0.0
  %336 = vmatpush1.msra.mxu0 0.0
  %337 = vmatprep.subr.mxu0 0.0
  %338 = vmatpush1.msra.mxu0 0.0
  %339 = vmatprep.subr.mxu0 0.0
  %340 = vmatpush1.msra.mxu0 0.0
  %341 = vmatprep.subr.mxu0 0.0
  %342 = vmatpush1.msra.mxu0 0.0
  %343 = vmatprep.subr.mxu0 0.0
  %344 = vmatpush1.msra.mxu0 0.0
  %345 = vmatprep.subr.mxu0 0.0
  %346 = vmatpush1.msra.mxu0 0.0
  %347 = vmatprep.subr.mxu0 0.0
  %348 = vmatpush1.msra.mxu0 0.0
  %349 = vmatprep.subr.mxu0 0.0
  %350 = vmatpush1.msra.mxu0 0.0
  %351 = vmatprep.subr.mxu0 0.0
  %352 = vmatpush1.msra.mxu0 0.0
  %353 = vmatprep.subr.mxu0 0.0
  %354 = vmatpush1.msra.mxu0 0.0
  %355 = vmatprep.subr.mxu0 0.0
  %356 = vmatpush1.msra.mxu0 0.0
  %357 = vmatprep.subr.mxu0 0.0
  %358 = vmatpush1.msra.mxu0 0.0
  %359 = vmatprep.subr.mxu0 0.0
  %360 = vmatpush1.msra.mxu0 0.0
  %361 = vmatprep.subr.mxu0 0.0
  %362 = vmatpush1.msra.mxu0 0.0
  %363 = vmatprep.subr.mxu0 0.0
  %364 = vmatpush1.msra.mxu0 0.0
  %365 = vmatprep.subr.mxu0 0.0
  %366 = vmatpush1.msra.mxu0 0.0
  %367 = vmatprep.subr.mxu0 0.0
  %368 = vmatpush1.msra.mxu0 0.0
  %369 = vmatprep.subr.mxu0 0.0
  %370 = vmatpush1.msra.mxu0 0.0
  %371 = vmatprep.subr.mxu0 0.0
  %372 = vmatpush1.msra.mxu0 0.0
  %373 = vmatprep.subr.mxu0 0.0
  %374 = vmatpush1.msra.mxu0 0.0
  %375 = vmatprep.subr.mxu0 0.0
  %376 = vmatpush1.msra.mxu0 0.0
  %377 = vmatprep.subr.mxu0 0.0
  %378 = vmatpush1.msra.mxu0 0.0
  %379 = vmatprep.subr.mxu0 0.0
  %380 = vmatpush1.msra.mxu0 0.0
  %381 = vmatprep.subr.mxu0 0.0
  %382 = vmatpush1.msra.mxu0 0.0
  %383 = vmatprep.subr.mxu0 0.0
  %384 = vmatpush1.msra.mxu0 0.0
  %385 = vmatprep.subr.mxu0 0.0
  %386 = vmatpush1.msra.mxu0 0.0
  %387 = vmatprep.subr.mxu0 0.0
  %388 = vmatpush1.msra.mxu0 0.0
  %389 = vmatprep.subr.mxu0 0.0
  %390 = vmatpush1.msra.mxu0 0.0
  %391 = vmatprep.subr.mxu0 0.0
  %392 = vmatpush1.msra.mxu0 0.0
  %393 = vmatprep.mubr.f32.mxu0 0.0
  %394 = vmatmul.mubr.f32.gmra.mrb[0].mxu0 %v320
  %v395 = vpop.f32.mrb[0].mxu0
  %v396 = vadd.f32 %v311, %v395
  %v397 = vpop.f32.mrb[0].mxu0
  %398 = vmatprep.mubr.f32.mxu0 0.0
  %399 = vmatmul.mubr.f32.gmra.mrb[0].mxu0 %v323
  %v400 = vpop.f32.mrb[0].mxu0
  %v401 = vadd.f32 %v316, %v400
  %v402 = vpop.f32.mrb[0].mxu0
  %403 = vdwg.mxu0
  %v404 = vsub.f32 0.0, %v396
  %v405 = vsub.f32 0.0, %v401
  %v406 = vmul.f32 %v404, 1.442695
  %v407 = vpow.pop %v406
  %v408 = vmul.f32 %v405, 1.442695
  %v409 = vpow.pop %v408
  %v410 = vadd.f32 %v407, 1.0
  %v411 = vadd.f32 %v409, 1.0
  %v412 = vrcp.pop %v410
  %v413 = vmul.f32 1.0, %v412
  %v414 = vrcp.pop %v411
  %v415 = vmul.f32 1.0, %v414
  %v416 = vlaneseq
  %v417 = vshrl.u32 %v416, 7
  %v418 = vsub.s32 0, %v417
  %v419 = vrot.slane %v413, %v418
  %421 = vbcast.lane.b32.xlu0 %v419, 256
  %v422 = vpop.permute.xlu0 %421
  %v423 = vlaneseq
  %v424 = vshrl.u32 %v423, 7
  %v425 = vsub.s32 1, %v424
  %v426 = vrot.slane %v413, %v425
  %428 = vbcast.lane.b32.xlu0 %v426, 256
  %v429 = vpop.permute.xlu0 %428
  %v430 = vlaneseq
  %v431 = vshrl.u32 %v430, 7
  %v432 = vsub.s32 2, %v431
  %v433 = vrot.slane %v413, %v432
  %435 = vbcast.lane.b32.xlu0 %v433, 256
  %v436 = vpop.permute.xlu0 %435
  %v437 = vlaneseq
  %v438 = vshrl.u32 %v437, 7
  %v439 = vsub.s32 3, %v438
  %v440 = vrot.slane %v413, %v439
  %442 = vbcast.lane.b32.xlu0 %v440, 256
  %v443 = vpop.permute.xlu0 %442
  %v444 = vlaneseq
  %v445 = vshrl.u32 %v444, 7
  %v446 = vsub.s32 4, %v445
  %v447 = vrot.slane %v413, %v446
  %449 = vbcast.lane.b32.xlu0 %v447, 256
  %v450 = vpop.permute.xlu0 %449
  %v451 = vlaneseq
  %v452 = vshrl.u32 %v451, 7
  %v453 = vsub.s32 5, %v452
  %v454 = vrot.slane %v413, %v453
  %456 = vbcast.lane.b32.xlu0 %v454, 256
  %v457 = vpop.permute.xlu0 %456
  %v458 = vlaneseq
  %v459 = vshrl.u32 %v458, 7
  %v460 = vsub.s32 6, %v459
  %v461 = vrot.slane %v413, %v460
  %463 = vbcast.lane.b32.xlu0 %v461, 256
  %v464 = vpop.permute.xlu0 %463
  %v465 = vlaneseq
  %v466 = vshrl.u32 %v465, 7
  %v467 = vsub.s32 7, %v466
  %v468 = vrot.slane %v413, %v467
  %470 = vbcast.lane.b32.xlu0 %v468, 256
  %v471 = vpop.permute.xlu0 %470
  %v472 = vlaneseq
  %v473 = vshrl.u32 %v472, 7
  %v474 = vsub.s32 0, %v473
  %v475 = vrot.slane %v415, %v474
  %477 = vbcast.lane.b32.xlu0 %v475, 256
  %v478 = vpop.permute.xlu0 %477
  %v479 = vlaneseq
  %v480 = vshrl.u32 %v479, 7
  %v481 = vsub.s32 1, %v480
  %v482 = vrot.slane %v415, %v481
  %484 = vbcast.lane.b32.xlu0 %v482, 256
  %v485 = vpop.permute.xlu0 %484
  %v486 = vlaneseq
  %v487 = vshrl.u32 %v486, 7
  %v488 = vsub.s32 2, %v487
  %v489 = vrot.slane %v415, %v488
  %491 = vbcast.lane.b32.xlu0 %v489, 256
  %v492 = vpop.permute.xlu0 %491
  %v493 = vlaneseq
  %v494 = vshrl.u32 %v493, 7
  %v495 = vsub.s32 3, %v494
  %v496 = vrot.slane %v415, %v495
  %498 = vbcast.lane.b32.xlu0 %v496, 256
  %v499 = vpop.permute.xlu0 %498
  %v500 = vlaneseq
  %v501 = vshrl.u32 %v500, 7
  %v502 = vsub.s32 4, %v501
  %v503 = vrot.slane %v415, %v502
  %505 = vbcast.lane.b32.xlu0 %v503, 256
  %v506 = vpop.permute.xlu0 %505
  %v507 = vlaneseq
  %v508 = vshrl.u32 %v507, 7
  %v509 = vsub.s32 5, %v508
  %v510 = vrot.slane %v415, %v509
  %512 = vbcast.lane.b32.xlu0 %v510, 256
  %v513 = vpop.permute.xlu0 %512
  %v514 = vlaneseq
  %v515 = vshrl.u32 %v514, 7
  %v516 = vsub.s32 6, %v515
  %v517 = vrot.slane %v415, %v516
  %519 = vbcast.lane.b32.xlu0 %v517, 256
  %v520 = vpop.permute.xlu0 %519
  %v521 = vlaneseq
  %v522 = vshrl.u32 %v521, 7
  %v523 = vsub.s32 7, %v522
  %v524 = vrot.slane %v415, %v523
  %526 = vbcast.lane.b32.xlu0 %v524, 256
  %v527 = vpop.permute.xlu0 %526
  %v528 = vmul.f32 %v36, %v422
  %v529 = vmul.f32 %v37, %v429
  %v530 = vmul.f32 %v38, %v436
  %v531 = vmul.f32 %v39, %v443
  %v532 = vmul.f32 %v40, %v450
  %v533 = vmul.f32 %v41, %v457
  %v534 = vmul.f32 %v42, %v464
  %v535 = vmul.f32 %v43, %v471
  %v536 = vmul.f32 %v44, %v478
  %v537 = vmul.f32 %v45, %v485
  %v538 = vmul.f32 %v46, %v492
  %v539 = vmul.f32 %v47, %v499
  %v540 = vmul.f32 %v48, %v506
  %v541 = vmul.f32 %v49, %v513
  %v542 = vmul.f32 %v50, %v520
  %v543 = vmul.f32 %v51, %v527
  %544 = vst.msk [vmem:[%s5] sm:$0x3] %vm52, %v528
  %545 = vst.msk [vmem:[%s5 + $0x2] sm:$0x3] %vm52, %v529
  %546 = vst.msk [vmem:[%s5 + $0x4] sm:$0x3] %vm52, %v530
  %547 = vst.msk [vmem:[%s5 + $0x6] sm:$0x3] %vm52, %v531
  %548 = vst.msk [vmem:[%s5 + $0x8] sm:$0x3] %vm52, %v532
  %549 = vst.msk [vmem:[%s5 + $0xa] sm:$0x3] %vm52, %v533
  %550 = vst.msk [vmem:[%s5 + $0xc] sm:$0x3] %vm52, %v534
  %551 = vst.msk [vmem:[%s5 + $0xe] sm:$0x3] %vm52, %v535
  %552 = vst.msk [vmem:[%s5 + $0x10] sm:$0x3] %vm52, %v536
  %553 = vst.msk [vmem:[%s5 + $0x12] sm:$0x3] %vm52, %v537
  %554 = vst.msk [vmem:[%s5 + $0x14] sm:$0x3] %vm52, %v538
  %555 = vst.msk [vmem:[%s5 + $0x16] sm:$0x3] %vm52, %v539
  %556 = vst.msk [vmem:[%s5 + $0x18] sm:$0x3] %vm52, %v540
  %557 = vst.msk [vmem:[%s5 + $0x1a] sm:$0x3] %vm52, %v541
  %558 = vst.msk [vmem:[%s5 + $0x1c] sm:$0x3] %vm52, %v542
  %559 = vst.msk [vmem:[%s5 + $0x1e] sm:$0x3] %vm52, %v543
  // Predicated region
  $region22: #{_lambda_.34} parent=0 // pred_check
    _
  $region23: #{_lambda_.34} parent=0 // pred_check_branch
    %561 = sbr.rel (0) target = $region25
  $region24: #{_lambda_.34} parent=0 // pred_region
    _
  $region25: #{_lambda_.34} parent=0 // pred_fallthru
    _
  // Predicated region
  $region26: #{_lambda_.34} parent=0 // pred_check
    _
  $region27: #{_lambda_.34} parent=0 // pred_check_branch
    %563 = sbr.rel (0) target = $region29
  $region28: #{_lambda_.34} parent=0 // pred_region
    _
  $region29: #{_lambda_.34} parent=0 // pred_fallthru
    _

// kernel: _lambda_.33
$region0: #{_lambda_.33}
  #allocation0 [shape = 'u32[]', space=smem, size = 0x4, offset = 0x4, fixed_abs, tag = 'smem constant byte address 0x4 - core index']
  #allocation1 [shape = 'u32[144,128]{1,0:T(1,128)}', space=vmem, size = 0x12000, scoped, tag = 'internal scratch']
  %s0 = inlined_call_operand.vmem [shape: bf16[16,2,256], index: 0, kind: input, shape index: {}]
  %s1 = inlined_call_operand.vmem [shape: f32[4,16], index: 1, kind: input, shape index: {}]
  %s2 = inlined_call_operand.vmem [shape: f32[4,1], index: 2, kind: input, shape index: {}]
  %s3 = inlined_call_operand.vmem [shape: f32[16,4], index: 3, kind: input, shape index: {}]
  %s4 = inlined_call_operand.vmem [shape: f32[16,1], index: 4, kind: input, shape index: {}]
  %s5 = inlined_call_operand.vmem [shape: f32[16,2,256], index: 5, kind: output, shape index: {}]
  %s6 = sld [smem:[#allocation0]]
  $region30: #{_lambda_.33} parent=0
    _
  %s8 = ssub.s32 1, %s6
  %s9 = scalar_select 0, %s8, %s6
  // Predicated region
  $region2: #{_lambda_.33} parent=0 // pred_check
    _
  $region3: #{_lambda_.33} parent=0 // pred_check_branch
    %11 = sbr.rel (0) target = $region5
  $region4: #{_lambda_.33} parent=0 // pred_region
    _
  $region5: #{_lambda_.33} parent=0 // pred_fallthru
    _
  // Predicated region
  $region6: #{_lambda_.33} parent=0 // pred_check
    _
  $region7: #{_lambda_.33} parent=0 // pred_check_branch
    %13 = sbr.rel (0) target = $region9
  $region8: #{_lambda_.33} parent=0 // pred_region
    _
  $region9: #{_lambda_.33} parent=0 // pred_fallthru
    _
  // Predicated region
  $region10: #{_lambda_.33} parent=0 // pred_check
    _
  $region11: #{_lambda_.33} parent=0 // pred_check_branch
    %15 = sbr.rel (0) target = $region13
  $region12: #{_lambda_.33} parent=0 // pred_region
    _
  $region13: #{_lambda_.33} parent=0 // pred_fallthru
    _
  // Predicated region
  $region14: #{_lambda_.33} parent=0 // pred_check
    _
  $region15: #{_lambda_.33} parent=0 // pred_check_branch
    %17 = sbr.rel (0) target = $region17
  $region16: #{_lambda_.33} parent=0 // pred_region
    _
  $region17: #{_lambda_.33} parent=0 // pred_fallthru
    _
  // Predicated region
  $region18: #{_lambda_.33} parent=0 // pred_check
    _
  $region19: #{_lambda_.33} parent=0 // pred_check_branch
    %19 = sbr.rel (0) target = $region21
  $region20: #{_lambda_.33} parent=0 // pred_region
    _
  $region21: #{_lambda_.33} parent=0 // pred_fallthru
    _
  %v20 = vld [vmem:[%s0] sm:$0x3]
  %v21 = vld [vmem:[%s0 + $0x2] sm:$0x3]
  %v22 = vld [vmem:[%s0 + $0x4] sm:$0x3]
  %v23 = vld [vmem:[%s0 + $0x6] sm:$0x3]
  %v24 = vld [vmem:[%s0 + $0x8] sm:$0x3]
  %v25 = vld [vmem:[%s0 + $0xa] sm:$0x3]
  %v26 = vld [vmem:[%s0 + $0xc] sm:$0x3]
  %v27 = vld [vmem:[%s0 + $0xe] sm:$0x3]
  %v28 = vld [vmem:[%s0 + $0x10] sm:$0x3]
  %v29 = vld [vmem:[%s0 + $0x12] sm:$0x3]
  %v30 = vld [vmem:[%s0 + $0x14] sm:$0x3]
  %v31 = vld [vmem:[%s0 + $0x16] sm:$0x3]
  %v32 = vld [vmem:[%s0 + $0x18] sm:$0x3]
  %v33 = vld [vmem:[%s0 + $0x1a] sm:$0x3]
  %v34 = vld [vmem:[%s0 + $0x1c] sm:$0x3]
  %v35 = vld [vmem:[%s0 + $0x1e] sm:$0x3]
  %v36 = vunpack.c.l.bf16 %v20
  %v37 = vunpack.c.l.bf16 %v21
  %v38 = vunpack.c.l.bf16 %v22
  %v39 = vunpack.c.l.bf16 %v23
  %v40 = vunpack.c.l.bf16 %v24
  %v41 = vunpack.c.l.bf16 %v25
  %v42 = vunpack.c.l.bf16 %v26
  %v43 = vunpack.c.l.bf16 %v27
  %v44 = vunpack.c.l.bf16 %v28
  %v45 = vunpack.c.l.bf16 %v29
  %v46 = vunpack.c.l.bf16 %v30
  %v47 = vunpack.c.l.bf16 %v31
  %v48 = vunpack.c.l.bf16 %v32
  %v49 = vunpack.c.l.bf16 %v33
  %v50 = vunpack.c.l.bf16 %v34
  %v51 = vunpack.c.l.bf16 %v35
  %v69 = vunpack.c.l.s4 1983009808
  %v70 = vunpack.c.0.s8 %v69
  %v71 = vlaneseq
  %v72 = vshrl.u32 %v71, 7
  %v73 = vsub.s32 %v70, %v72
  %v74 = vrot.slane %v36, %v73
  %v75 = vcombine.high %v74, %v74
  %v77 = vunpack.c.l.s4 1983009808
  %v78 = vunpack.c.0.s8 %v77
  %v79 = vlaneseq
  %v80 = vshrl.u32 %v79, 7
  %v81 = vsub.s32 %v78, %v80
  %v82 = vrot.slane %v37, %v81
  %v83 = vcombine.high %v82, %v82
  %v85 = vunpack.c.l.s4 1983009808
  %v86 = vunpack.c.0.s8 %v85
  %v87 = vlaneseq
  %v88 = vshrl.u32 %v87, 7
  %v89 = vsub.s32 %v86, %v88
  %v90 = vrot.slane %v38, %v89
  %v91 = vcombine.high %v90, %v90
  %v93 = vunpack.c.l.s4 1983009808
  %v94 = vunpack.c.0.s8 %v93
  %v95 = vlaneseq
  %v96 = vshrl.u32 %v95, 7
  %v97 = vsub.s32 %v94, %v96
  %v98 = vrot.slane %v39, %v97
  %v99 = vcombine.high %v98, %v98
  %v101 = vunpack.c.l.s4 1983009808
  %v102 = vunpack.c.0.s8 %v101
  %v103 = vlaneseq
  %v104 = vshrl.u32 %v103, 7
  %v105 = vsub.s32 %v102, %v104
  %v106 = vrot.slane %v40, %v105
  %v107 = vcombine.high %v106, %v106
  %v109 = vunpack.c.l.s4 1983009808
  %v110 = vunpack.c.0.s8 %v109
  %v111 = vlaneseq
  %v112 = vshrl.u32 %v111, 7
  %v113 = vsub.s32 %v110, %v112
  %v114 = vrot.slane %v41, %v113
  %v115 = vcombine.high %v114, %v114
  %v117 = vunpack.c.l.s4 1983009808
  %v118 = vunpack.c.0.s8 %v117
  %v119 = vlaneseq
  %v120 = vshrl.u32 %v119, 7
  %v121 = vsub.s32 %v118, %v120
  %v122 = vrot.slane %v42, %v121
  %v123 = vcombine.high %v122, %v122
  %v125 = vunpack.c.l.s4 1983009808
  %v126 = vunpack.c.0.s8 %v125
  %v127 = vlaneseq
  %v128 = vshrl.u32 %v127, 7
  %v129 = vsub.s32 %v126, %v128
  %v130 = vrot.slane %v43, %v129
  %v131 = vcombine.high %v130, %v130
  %v133 = vunpack.c.l.s4 1983009808
  %v134 = vunpack.c.0.s8 %v133
  %v135 = vlaneseq
  %v136 = vshrl.u32 %v135, 7
  %v137 = vsub.s32 %v134, %v136
  %v138 = vrot.slane %v44, %v137
  %v139 = vcombine.high %v138, %v138
  %v141 = vunpack.c.l.s4 1983009808
  %v142 = vunpack.c.0.s8 %v141
  %v143 = vlaneseq
  %v144 = vshrl.u32 %v143, 7
  %v145 = vsub.s32 %v142, %v144
  %v146 = vrot.slane %v45, %v145
  %v147 = vcombine.high %v146, %v146
  %v149 = vunpack.c.l.s4 1983009808
  %v150 = vunpack.c.0.s8 %v149
  %v151 = vlaneseq
  %v152 = vshrl.u32 %v151, 7
  %v153 = vsub.s32 %v150, %v152
  %v154 = vrot.slane %v46, %v153
  %v155 = vcombine.high %v154, %v154
  %v157 = vunpack.c.l.s4 1983009808
  %v158 = vunpack.c.0.s8 %v157
  %v159 = vlaneseq
  %v160 = vshrl.u32 %v159, 7
  %v161 = vsub.s32 %v158, %v160
  %v162 = vrot.slane %v47, %v161
  %v163 = vcombine.high %v162, %v162
  %v165 = vunpack.c.l.s4 1983009808
  %v166 = vunpack.c.0.s8 %v165
  %v167 = vlaneseq
  %v168 = vshrl.u32 %v167, 7
  %v169 = vsub.s32 %v166, %v168
  %v170 = vrot.slane %v48, %v169
  %v171 = vcombine.high %v170, %v170
  %v173 = vunpack.c.l.s4 1983009808
  %v174 = vunpack.c.0.s8 %v173
  %v175 = vlaneseq
  %v176 = vshrl.u32 %v175, 7
  %v177 = vsub.s32 %v174, %v176
  %v178 = vrot.slane %v49, %v177
  %v179 = vcombine.high %v178, %v178
  %v181 = vunpack.c.l.s4 1983009808
  %v182 = vunpack.c.0.s8 %v181
  %v183 = vlaneseq
  %v184 = vshrl.u32 %v183, 7
  %v185 = vsub.s32 %v182, %v184
  %v186 = vrot.slane %v50, %v185
  %v187 = vcombine.high %v186, %v186
  %v189 = vunpack.c.l.s4 1983009808
  %v190 = vunpack.c.0.s8 %v189
  %v191 = vlaneseq
  %v192 = vshrl.u32 %v191, 7
  %v193 = vsub.s32 %v190, %v192
  %v194 = vrot.slane %v51, %v193
  %v195 = vcombine.high %v194, %v194
  %vm228 = vcmask 1041408
  %v229 = vsel %vm228, %v74, 0.0
  %v230 = vsel %vm228, %v75, 0.0
  %v231 = vadd.f32 %v229, %v230
  %232 = vadd.xlane.f32.xlu0 %v231
  %v233 = vpop.xlane.xlu0 %232
  %v234 = vsel %vm228, %v82, 0.0
  %v235 = vsel %vm228, %v83, 0.0
  %v236 = vadd.f32 %v234, %v235
  %237 = vadd.xlane.f32.xlu0 %v236
  %v238 = vpop.xlane.xlu0 %237
  %v239 = vsel %vm228, %v90, 0.0
  %v240 = vsel %vm228, %v91, 0.0
  %v241 = vadd.f32 %v239, %v240
  %242 = vadd.xlane.f32.xlu0 %v241
  %v243 = vpop.xlane.xlu0 %242
  %v244 = vsel %vm228, %v98, 0.0
  %v245 = vsel %vm228, %v99, 0.0
  %v246 = vadd.f32 %v244, %v245
  %247 = vadd.xlane.f32.xlu0 %v246
  %v248 = vpop.xlane.xlu0 %247
  %v249 = vsel %vm228, %v106, 0.0
  %v250 = vsel %vm228, %v107, 0.0
  %v251 = vadd.f32 %v249, %v250
  %252 = vadd.xlane.f32.xlu0 %v251
  %v253 = vpop.xlane.xlu0 %252
  %v254 = vsel %vm228, %v114, 0.0
  %v255 = vsel %vm228, %v115, 0.0
  %v256 = vadd.f32 %v254, %v255
  %257 = vadd.xlane.f32.xlu0 %v256
  %v258 = vpop.xlane.xlu0 %257
  %v259 = vsel %vm228, %v122, 0.0
  %v260 = vsel %vm228, %v123, 0.0
  %v261 = vadd.f32 %v259, %v260
  %262 = vadd.xlane.f32.xlu0 %v261
  %v263 = vpop.xlane.xlu0 %262
  %v264 = vsel %vm228, %v130, 0.0
  %v265 = vsel %vm228, %v131, 0.0
  %v266 = vadd.f32 %v264, %v265
  %267 = vadd.xlane.f32.xlu0 %v266
  %v268 = vpop.xlane.xlu0 %267
  %v269 = vsel %vm228, %v138, 0.0
  %v270 = vsel %vm228, %v139, 0.0
  %v271 = vadd.f32 %v269, %v270
  %272 = vadd.xlane.f32.xlu0 %v271
  %v273 = vpop.xlane.xlu0 %272
  %v274 = vsel %vm228, %v146, 0.0
  %v275 = vsel %vm228, %v147, 0.0
  %v276 = vadd.f32 %v274, %v275
  %277 = vadd.xlane.f32.xlu0 %v276
  %v278 = vpop.xlane.xlu0 %277
  %v279 = vsel %vm228, %v154, 0.0
  %v280 = vsel %vm228, %v155, 0.0
  %v281 = vadd.f32 %v279, %v280
  %282 = vadd.xlane.f32.xlu0 %v281
  %v283 = vpop.xlane.xlu0 %282
  %v284 = vsel %vm228, %v162, 0.0
  %v285 = vsel %vm228, %v163, 0.0
  %v286 = vadd.f32 %v284, %v285
  %287 = vadd.xlane.f32.xlu0 %v286
  %v288 = vpop.xlane.xlu0 %287
  %v289 = vsel %vm228, %v170, 0.0
  %v290 = vsel %vm228, %v171, 0.0
  %v291 = vadd.f32 %v289, %v290
  %292 = vadd.xlane.f32.xlu0 %v291
  %v293 = vpop.xlane.xlu0 %292
  %v294 = vsel %vm228, %v178, 0.0
  %v295 = vsel %vm228, %v179, 0.0
  %v296 = vadd.f32 %v294, %v295
  %297 = vadd.xlane.f32.xlu0 %v296
  %v298 = vpop.xlane.xlu0 %297
  %v299 = vsel %vm228, %v186, 0.0
  %v300 = vsel %vm228, %v187, 0.0
  %v301 = vadd.f32 %v299, %v300
  %302 = vadd.xlane.f32.xlu0 %v301
  %v303 = vpop.xlane.xlu0 %302
  %v304 = vsel %vm228, %v194, 0.0
  %v305 = vsel %vm228, %v195, 0.0
  %v306 = vadd.f32 %v304, %v305
  %307 = vadd.xlane.f32.xlu0 %v306
  %v308 = vpop.xlane.xlu0 %307
  %v309 = vmul.f32 %v233, 0.00390625
  %v310 = vmul.f32 %v238, 0.00390625
  %v311 = vmul.f32 %v243, 0.00390625
  %v312 = vmul.f32 %v248, 0.00390625
  %v313 = vmul.f32 %v253, 0.00390625
  %v314 = vmul.f32 %v258, 0.00390625
  %v315 = vmul.f32 %v263, 0.00390625
  %v316 = vmul.f32 %v268, 0.00390625
  %v317 = vmul.f32 %v273, 0.00390625
  %v318 = vmul.f32 %v278, 0.00390625
  %v319 = vmul.f32 %v283, 0.00390625
  %v320 = vmul.f32 %v288, 0.00390625
  %v321 = vmul.f32 %v293, 0.00390625
  %v322 = vmul.f32 %v298, 0.00390625
  %v323 = vmul.f32 %v303, 0.00390625
  %v324 = vmul.f32 %v308, 0.00390625
  %v325 = vld [vmem:[%s1] sm:$0xf]
  %v326 = vld [vmem:[%s2] sm:$0xf]
  %328 = vset.pattern.permute.xlu0 0
  %329 = vperm.xlu0 %328, %v326
  %v330 = vpop.permute.xlu0 %329
  %v348 = vlaneseq
  %v349 = vand.u32 %v348, 127
  %v350 = vlaneseq
  %v351 = vshrl.u32 %v350, 7
  %v352 = vsub.s32 %v349, %v351
  %v353 = vrot.slane %v309, %v352
  %v354 = vlaneseq
  %v355 = vshrl.u32 %v354, 7
  %v356 = vsub.s32 %v349, %v355
  %v357 = vrot.slane %v310, %v356
  %v358 = vlaneseq
  %v359 = vshrl.u32 %v358, 7
  %v360 = vsub.s32 %v349, %v359
  %v361 = vrot.slane %v311, %v360
  %v362 = vlaneseq
  %v363 = vshrl.u32 %v362, 7
  %v364 = vsub.s32 %v349, %v363
  %v365 = vrot.slane %v312, %v364
  %v366 = vlaneseq
  %v367 = vshrl.u32 %v366, 7
  %v368 = vsub.s32 %v349, %v367
  %v369 = vrot.slane %v313, %v368
  %v370 = vlaneseq
  %v371 = vshrl.u32 %v370, 7
  %v372 = vsub.s32 %v349, %v371
  %v373 = vrot.slane %v314, %v372
  %v374 = vlaneseq
  %v375 = vshrl.u32 %v374, 7
  %v376 = vsub.s32 %v349, %v375
  %v377 = vrot.slane %v315, %v376
  %v378 = vlaneseq
  %v379 = vshrl.u32 %v378, 7
  %v380 = vsub.s32 %v349, %v379
  %v381 = vrot.slane %v316, %v380
  %v382 = vlaneseq
  %v383 = vshrl.u32 %v382, 7
  %v384 = vsub.s32 %v349, %v383
  %v385 = vrot.slane %v317, %v384
  %v386 = vlaneseq
  %v387 = vshrl.u32 %v386, 7
  %v388 = vsub.s32 %v349, %v387
  %v389 = vrot.slane %v318, %v388
  %v390 = vlaneseq
  %v391 = vshrl.u32 %v390, 7
  %v392 = vsub.s32 %v349, %v391
  %v393 = vrot.slane %v319, %v392
  %v394 = vlaneseq
  %v395 = vshrl.u32 %v394, 7
  %v396 = vsub.s32 %v349, %v395
  %v397 = vrot.slane %v320, %v396
  %v398 = vlaneseq
  %v399 = vshrl.u32 %v398, 7
  %v400 = vsub.s32 %v349, %v399
  %v401 = vrot.slane %v321, %v400
  %v402 = vlaneseq
  %v403 = vshrl.u32 %v402, 7
  %v404 = vsub.s32 %v349, %v403
  %v405 = vrot.slane %v322, %v404
  %v406 = vlaneseq
  %v407 = vshrl.u32 %v406, 7
  %v408 = vsub.s32 %v349, %v407
  %v409 = vrot.slane %v323, %v408
  %v410 = vlaneseq
  %v411 = vshrl.u32 %v410, 7
  %v412 = vsub.s32 %v349, %v411
  %v413 = vrot.slane %v324, %v412
  %vm414 = vcmask 1041409
  %v415 = vsel %vm414, %v357, %v353
  %vm416 = vcmask 1042434
  %v417 = vsel %vm416, %v361, %v415
  %vm418 = vcmask 1043459
  %v419 = vsel %vm418, %v365, %v417
  %vm420 = vcmask 1044484
  %v421 = vsel %vm420, %v369, %v419
  %vm422 = vcmask 1045509
  %v423 = vsel %vm422, %v373, %v421
  %vm424 = vcmask 1046534
  %v425 = vsel %vm424, %v377, %v423
  %vm426 = vcmask 1047559
  %v427 = vsel %vm426, %v381, %v425
  %v428 = vsel %vm414, %v389, %v385
  %v429 = vsel %vm416, %v393, %v428
  %v430 = vsel %vm418, %v397, %v429
  %v431 = vsel %vm420, %v401, %v430
  %v432 = vsel %vm422, %v405, %v431
  %v433 = vsel %vm424, %v409, %v432
  %v434 = vsel %vm426, %v413, %v433
  %vm437 = vcmask 130048
  %v439 = vsel %vm437, %v325, 0
  %441 = vmatprep.subr.mxu0 0.0
  %442 = vmatpush1.msra.mxu0 %v427
  %443 = vmatprep.subr.mxu0 0.0
  %444 = vmatpush1.msra.mxu0 %v434
  %445 = vmatprep.subr.mxu0 0.0
  %446 = vmatpush1.msra.mxu0 0.0
  %447 = vmatprep.subr.mxu0 0.0
  %448 = vmatpush1.msra.mxu0 0.0
  %449 = vmatprep.subr.mxu0 0.0
  %450 = vmatpush1.msra.mxu0 0.0
  %451 = vmatprep.subr.mxu0 0.0
  %452 = vmatpush1.msra.mxu0 0.0
  %453 = vmatprep.subr.mxu0 0.0
  %454 = vmatpush1.msra.mxu0 0.0
  %455 = vmatprep.subr.mxu0 0.0
  %456 = vmatpush1.msra.mxu0 0.0
  %457 = vmatprep.subr.mxu0 0.0
  %458 = vmatpush1.msra.mxu0 0.0
  %459 = vmatprep.subr.mxu0 0.0
  %460 = vmatpush1.msra.mxu0 0.0
  %461 = vmatprep.subr.mxu0 0.0
  %462 = vmatpush1.msra.mxu0 0.0
  %463 = vmatprep.subr.mxu0 0.0
  %464 = vmatpush1.msra.mxu0 0.0
  %465 = vmatprep.subr.mxu0 0.0
  %466 = vmatpush1.msra.mxu0 0.0
  %467 = vmatprep.subr.mxu0 0.0
  %468 = vmatpush1.msra.mxu0 0.0
  %469 = vmatprep.subr.mxu0 0.0
  %470 = vmatpush1.msra.mxu0 0.0
  %471 = vmatprep.subr.mxu0 0.0
  %472 = vmatpush1.msra.mxu0 0.0
  %473 = vmatprep.subr.mxu0 0.0
  %474 = vmatpush1.msra.mxu0 0.0
  %475 = vmatprep.subr.mxu0 0.0
  %476 = vmatpush1.msra.mxu0 0.0
  %477 = vmatprep.subr.mxu0 0.0
  %478 = vmatpush1.msra.mxu0 0.0
  %479 = vmatprep.subr.mxu0 0.0
  %480 = vmatpush1.msra.mxu0 0.0
  %481 = vmatprep.subr.mxu0 0.0
  %482 = vmatpush1.msra.mxu0 0.0
  %483 = vmatprep.subr.mxu0 0.0
  %484 = vmatpush1.msra.mxu0 0.0
  %485 = vmatprep.subr.mxu0 0.0
  %486 = vmatpush1.msra.mxu0 0.0
  %487 = vmatprep.subr.mxu0 0.0
  %488 = vmatpush1.msra.mxu0 0.0
  %489 = vmatprep.subr.mxu0 0.0
  %490 = vmatpush1.msra.mxu0 0.0
  %491 = vmatprep.subr.mxu0 0.0
  %492 = vmatpush1.msra.mxu0 0.0
  %493 = vmatprep.subr.mxu0 0.0
  %494 = vmatpush1.msra.mxu0 0.0
  %495 = vmatprep.subr.mxu0 0.0
  %496 = vmatpush1.msra.mxu0 0.0
  %497 = vmatprep.subr.mxu0 0.0
  %498 = vmatpush1.msra.mxu0 0.0
  %499 = vmatprep.subr.mxu0 0.0
  %500 = vmatpush1.msra.mxu0 0.0
  %501 = vmatprep.subr.mxu0 0.0
  %502 = vmatpush1.msra.mxu0 0.0
  %503 = vmatprep.subr.mxu0 0.0
  %504 = vmatpush1.msra.mxu0 0.0
  %505 = vmatprep.mubr.f32.mxu0 0.0
  %506 = vmatmul.mubr.f32.gmra.mrb[0].mxu0 %v439
  %v507 = vpop.f32.mrb[0].mxu0
  %v508 = vadd.f32 %v330, %v507
  %v509 = vpop.f32.mrb[0].mxu0
  %510 = vdwg.mxu0
  %v511 = vmax.f32 %v508, 0.0
  %v512 = vld [vmem:[%s3] sm:$0xff]
  %v513 = vld [vmem:[%s3 + $0x8] sm:$0xff]
  %v514 = vld [vmem:[%s4] sm:$0xff]
  %v515 = vld [vmem:[%s4 + $0x8] sm:$0xff]
  %517 = vset.pattern.permute.xlu0 0
  %518 = vperm.xlu0 %517, %v514
  %v519 = vpop.permute.xlu0 %518
  %522 = vset.pattern.permute.xlu0 0
  %523 = vperm.xlu0 %522, %v515
  %v524 = vpop.permute.xlu0 %523
  %vm526 = vcmask 31744
  %v528 = vsel %vm526, %v512, 0
  %v531 = vsel %vm526, %v513, 0
  %vm533 = vcmask 1043456
  %v535 = vsel %vm533, %v511, 0
  %537 = vmatprep.subr.mxu0 0.0
  %538 = vmatpush1.msra.mxu0 %v535
  %539 = vmatprep.subr.mxu0 0.0
  %540 = vmatpush1.msra.mxu0 0.0
  %541 = vmatprep.subr.mxu0 0.0
  %542 = vmatpush1.msra.mxu0 0.0
  %543 = vmatprep.subr.mxu0 0.0
  %544 = vmatpush1.msra.mxu0 0.0
  %545 = vmatprep.subr.mxu0 0.0
  %546 = vmatpush1.msra.mxu0 0.0
  %547 = vmatprep.subr.mxu0 0.0
  %548 = vmatpush1.msra.mxu0 0.0
  %549 = vmatprep.subr.mxu0 0.0
  %550 = vmatpush1.msra.mxu0 0.0
  %551 = vmatprep.subr.mxu0 0.0
  %552 = vmatpush1.msra.mxu0 0.0
  %553 = vmatprep.subr.mxu0 0.0
  %554 = vmatpush1.msra.mxu0 0.0
  %555 = vmatprep.subr.mxu0 0.0
  %556 = vmatpush1.msra.mxu0 0.0
  %557 = vmatprep.subr.mxu0 0.0
  %558 = vmatpush1.msra.mxu0 0.0
  %559 = vmatprep.subr.mxu0 0.0
  %560 = vmatpush1.msra.mxu0 0.0
  %561 = vmatprep.subr.mxu0 0.0
  %562 = vmatpush1.msra.mxu0 0.0
  %563 = vmatprep.subr.mxu0 0.0
  %564 = vmatpush1.msra.mxu0 0.0
  %565 = vmatprep.subr.mxu0 0.0
  %566 = vmatpush1.msra.mxu0 0.0
  %567 = vmatprep.subr.mxu0 0.0
  %568 = vmatpush1.msra.mxu0 0.0
  %569 = vmatprep.subr.mxu0 0.0
  %570 = vmatpush1.msra.mxu0 0.0
  %571 = vmatprep.subr.mxu0 0.0
  %572 = vmatpush1.msra.mxu0 0.0
  %573 = vmatprep.subr.mxu0 0.0
  %574 = vmatpush1.msra.mxu0 0.0
  %575 = vmatprep.subr.mxu0 0.0
  %576 = vmatpush1.msra.mxu0 0.0
  %577 = vmatprep.subr.mxu0 0.0
  %578 = vmatpush1.msra.mxu0 0.0
  %579 = vmatprep.subr.mxu0 0.0
  %580 = vmatpush1.msra.mxu0 0.0
  %581 = vmatprep.subr.mxu0 0.0
  %582 = vmatpush1.msra.mxu0 0.0
  %583 = vmatprep.subr.mxu0 0.0
  %584 = vmatpush1.msra.mxu0 0.0
  %585 = vmatprep.subr.mxu0 0.0
  %586 = vmatpush1.msra.mxu0 0.0
  %587 = vmatprep.subr.mxu0 0.0
  %588 = vmatpush1.msra.mxu0 0.0
  %589 = vmatprep.subr.mxu0 0.0
  %590 = vmatpush1.msra.mxu0 0.0
  %591 = vmatprep.subr.mxu0 0.0
  %592 = vmatpush1.msra.mxu0 0.0
  %593 = vmatprep.subr.mxu0 0.0
  %594 = vmatpush1.msra.mxu0 0.0
  %595 = vmatprep.subr.mxu0 0.0
  %596 = vmatpush1.msra.mxu0 0.0
  %597 = vmatprep.subr.mxu0 0.0
  %598 = vmatpush1.msra.mxu0 0.0
  %599 = vmatprep.subr.mxu0 0.0
  %600 = vmatpush1.msra.mxu0 0.0
  %601 = vmatprep.mubr.f32.mxu0 0.0
  %602 = vmatmul.mubr.f32.gmra.mrb[0].mxu0 %v528
  %v603 = vpop.f32.mrb[0].mxu0
  %v604 = vadd.f32 %v519, %v603
  %v605 = vpop.f32.mrb[0].mxu0
  %606 = vmatprep.mubr.f32.mxu0 0.0
  %607 = vmatmul.mubr.f32.gmra.mrb[0].mxu0 %v531
  %v608 = vpop.f32.mrb[0].mxu0
  %v609 = vadd.f32 %v524, %v608
  %v610 = vpop.f32.mrb[0].mxu0
  %611 = vdwg.mxu0
  %v612 = vsub.f32 0.0, %v604
  %v613 = vsub.f32 0.0, %v609
  %v614 = vmul.f32 %v612, 1.442695
  %v615 = vpow.pop %v614
  %v616 = vmul.f32 %v613, 1.442695
  %v617 = vpow.pop %v616
  %v618 = vadd.f32 %v615, 1.0
  %v619 = vadd.f32 %v617, 1.0
  %v620 = vrcp.pop %v618
  %v621 = vmul.f32 1.0, %v620
  %v622 = vrcp.pop %v619
  %v623 = vmul.f32 1.0, %v622
  %v624 = vlaneseq
  %v625 = vshrl.u32 %v624, 7
  %v626 = vsub.s32 0, %v625
  %v627 = vrot.slane %v621, %v626
  %629 = vbcast.lane.b32.xlu0 %v627, 256
  %v630 = vpop.permute.xlu0 %629
  %v631 = vlaneseq
  %v632 = vshrl.u32 %v631, 7
  %v633 = vsub.s32 1, %v632
  %v634 = vrot.slane %v621, %v633
  %636 = vbcast.lane.b32.xlu0 %v634, 256
  %v637 = vpop.permute.xlu0 %636
  %v638 = vlaneseq
  %v639 = vshrl.u32 %v638, 7
  %v640 = vsub.s32 2, %v639
  %v641 = vrot.slane %v621, %v640
  %643 = vbcast.lane.b32.xlu0 %v641, 256
  %v644 = vpop.permute.xlu0 %643
  %v645 = vlaneseq
  %v646 = vshrl.u32 %v645, 7
  %v647 = vsub.s32 3, %v646
  %v648 = vrot.slane %v621, %v647
  %650 = vbcast.lane.b32.xlu0 %v648, 256
  %v651 = vpop.permute.xlu0 %650
  %v652 = vlaneseq
  %v653 = vshrl.u32 %v652, 7
  %v654 = vsub.s32 4, %v653
  %v655 = vrot.slane %v621, %v654
  %657 = vbcast.lane.b32.xlu0 %v655, 256
  %v658 = vpop.permute.xlu0 %657
  %v659 = vlaneseq
  %v660 = vshrl.u32 %v659, 7
  %v661 = vsub.s32 5, %v660
  %v662 = vrot.slane %v621, %v661
  %664 = vbcast.lane.b32.xlu0 %v662, 256
  %v665 = vpop.permute.xlu0 %664
  %v666 = vlaneseq
  %v667 = vshrl.u32 %v666, 7
  %v668 = vsub.s32 6, %v667
  %v669 = vrot.slane %v621, %v668
  %671 = vbcast.lane.b32.xlu0 %v669, 256
  %v672 = vpop.permute.xlu0 %671
  %v673 = vlaneseq
  %v674 = vshrl.u32 %v673, 7
  %v675 = vsub.s32 7, %v674
  %v676 = vrot.slane %v621, %v675
  %678 = vbcast.lane.b32.xlu0 %v676, 256
  %v679 = vpop.permute.xlu0 %678
  %v680 = vlaneseq
  %v681 = vshrl.u32 %v680, 7
  %v682 = vsub.s32 0, %v681
  %v683 = vrot.slane %v623, %v682
  %685 = vbcast.lane.b32.xlu0 %v683, 256
  %v686 = vpop.permute.xlu0 %685
  %v687 = vlaneseq
  %v688 = vshrl.u32 %v687, 7
  %v689 = vsub.s32 1, %v688
  %v690 = vrot.slane %v623, %v689
  %692 = vbcast.lane.b32.xlu0 %v690, 256
  %v693 = vpop.permute.xlu0 %692
  %v694 = vlaneseq
  %v695 = vshrl.u32 %v694, 7
  %v696 = vsub.s32 2, %v695
  %v697 = vrot.slane %v623, %v696
  %699 = vbcast.lane.b32.xlu0 %v697, 256
  %v700 = vpop.permute.xlu0 %699
  %v701 = vlaneseq
  %v702 = vshrl.u32 %v701, 7
  %v703 = vsub.s32 3, %v702
  %v704 = vrot.slane %v623, %v703
  %706 = vbcast.lane.b32.xlu0 %v704, 256
  %v707 = vpop.permute.xlu0 %706
  %v708 = vlaneseq
  %v709 = vshrl.u32 %v708, 7
  %v710 = vsub.s32 4, %v709
  %v711 = vrot.slane %v623, %v710
  %713 = vbcast.lane.b32.xlu0 %v711, 256
  %v714 = vpop.permute.xlu0 %713
  %v715 = vlaneseq
  %v716 = vshrl.u32 %v715, 7
  %v717 = vsub.s32 5, %v716
  %v718 = vrot.slane %v623, %v717
  %720 = vbcast.lane.b32.xlu0 %v718, 256
  %v721 = vpop.permute.xlu0 %720
  %v722 = vlaneseq
  %v723 = vshrl.u32 %v722, 7
  %v724 = vsub.s32 6, %v723
  %v725 = vrot.slane %v623, %v724
  %727 = vbcast.lane.b32.xlu0 %v725, 256
  %v728 = vpop.permute.xlu0 %727
  %v729 = vlaneseq
  %v730 = vshrl.u32 %v729, 7
  %v731 = vsub.s32 7, %v730
  %v732 = vrot.slane %v623, %v731
  %734 = vbcast.lane.b32.xlu0 %v732, 256
  %v735 = vpop.permute.xlu0 %734
  %v753 = vunpack.c.l.s4 269488144
  %v754 = vunpack.c.0.s8 %v753
  %v755 = vlaneseq
  %v756 = vshrl.u32 %v755, 7
  %v757 = vsub.s32 %v754, %v756
  %v758 = vrot.slane %v630, %v757
  %v760 = vunpack.c.l.s4 269488144
  %v761 = vunpack.c.0.s8 %v760
  %v762 = vlaneseq
  %v763 = vshrl.u32 %v762, 7
  %v764 = vsub.s32 %v761, %v763
  %v765 = vrot.slane %v637, %v764
  %v767 = vunpack.c.l.s4 269488144
  %v768 = vunpack.c.0.s8 %v767
  %v769 = vlaneseq
  %v770 = vshrl.u32 %v769, 7
  %v771 = vsub.s32 %v768, %v770
  %v772 = vrot.slane %v644, %v771
  %v774 = vunpack.c.l.s4 269488144
  %v775 = vunpack.c.0.s8 %v774
  %v776 = vlaneseq
  %v777 = vshrl.u32 %v776, 7
  %v778 = vsub.s32 %v775, %v777
  %v779 = vrot.slane %v651, %v778
  %v781 = vunpack.c.l.s4 269488144
  %v782 = vunpack.c.0.s8 %v781
  %v783 = vlaneseq
  %v784 = vshrl.u32 %v783, 7
  %v785 = vsub.s32 %v782, %v784
  %v786 = vrot.slane %v658, %v785
  %v788 = vunpack.c.l.s4 269488144
  %v789 = vunpack.c.0.s8 %v788
  %v790 = vlaneseq
  %v791 = vshrl.u32 %v790, 7
  %v792 = vsub.s32 %v789, %v791
  %v793 = vrot.slane %v665, %v792
  %v795 = vunpack.c.l.s4 269488144
  %v796 = vunpack.c.0.s8 %v795
  %v797 = vlaneseq
  %v798 = vshrl.u32 %v797, 7
  %v799 = vsub.s32 %v796, %v798
  %v800 = vrot.slane %v672, %v799
  %v802 = vunpack.c.l.s4 269488144
  %v803 = vunpack.c.0.s8 %v802
  %v804 = vlaneseq
  %v805 = vshrl.u32 %v804, 7
  %v806 = vsub.s32 %v803, %v805
  %v807 = vrot.slane %v679, %v806
  %v809 = vunpack.c.l.s4 269488144
  %v810 = vunpack.c.0.s8 %v809
  %v811 = vlaneseq
  %v812 = vshrl.u32 %v811, 7
  %v813 = vsub.s32 %v810, %v812
  %v814 = vrot.slane %v686, %v813
  %v816 = vunpack.c.l.s4 269488144
  %v817 = vunpack.c.0.s8 %v816
  %v818 = vlaneseq
  %v819 = vshrl.u32 %v818, 7
  %v820 = vsub.s32 %v817, %v819
  %v821 = vrot.slane %v693, %v820
  %v823 = vunpack.c.l.s4 269488144
  %v824 = vunpack.c.0.s8 %v823
  %v825 = vlaneseq
  %v826 = vshrl.u32 %v825, 7
  %v827 = vsub.s32 %v824, %v826
  %v828 = vrot.slane %v700, %v827
  %v830 = vunpack.c.l.s4 269488144
  %v831 = vunpack.c.0.s8 %v830
  %v832 = vlaneseq
  %v833 = vshrl.u32 %v832, 7
  %v834 = vsub.s32 %v831, %v833
  %v835 = vrot.slane %v707, %v834
  %v837 = vunpack.c.l.s4 269488144
  %v838 = vunpack.c.0.s8 %v837
  %v839 = vlaneseq
  %v840 = vshrl.u32 %v839, 7
  %v841 = vsub.s32 %v838, %v840
  %v842 = vrot.slane %v714, %v841
  %v844 = vunpack.c.l.s4 269488144
  %v845 = vunpack.c.0.s8 %v844
  %v846 = vlaneseq
  %v847 = vshrl.u32 %v846, 7
  %v848 = vsub.s32 %v845, %v847
  %v849 = vrot.slane %v721, %v848
  %v851 = vunpack.c.l.s4 269488144
  %v852 = vunpack.c.0.s8 %v851
  %v853 = vlaneseq
  %v854 = vshrl.u32 %v853, 7
  %v855 = vsub.s32 %v852, %v854
  %v856 = vrot.slane %v728, %v855
  %v858 = vunpack.c.l.s4 269488144
  %v859 = vunpack.c.0.s8 %v858
  %v860 = vlaneseq
  %v861 = vshrl.u32 %v860, 7
  %v862 = vsub.s32 %v859, %v861
  %v863 = vrot.slane %v735, %v862
  %v880 = vmul.f32 %v36, %v758
  %v881 = vmul.f32 %v37, %v765
  %v882 = vmul.f32 %v38, %v772
  %v883 = vmul.f32 %v39, %v779
  %v884 = vmul.f32 %v40, %v786
  %v885 = vmul.f32 %v41, %v793
  %v886 = vmul.f32 %v42, %v800
  %v887 = vmul.f32 %v43, %v807
  %v888 = vmul.f32 %v44, %v814
  %v889 = vmul.f32 %v45, %v821
  %v890 = vmul.f32 %v46, %v828
  %v891 = vmul.f32 %v47, %v835
  %v892 = vmul.f32 %v48, %v842
  %v893 = vmul.f32 %v49, %v849
  %v894 = vmul.f32 %v50, %v856
  %v895 = vmul.f32 %v51, %v863
  %896 = vst [vmem:[%s5] sm:$0xf] %v880
  %897 = vst [vmem:[%s5 + $0x4] sm:$0xf] %v881
  %898 = vst [vmem:[%s5 + $0x8] sm:$0xf] %v882
  %899 = vst [vmem:[%s5 + $0xc] sm:$0xf] %v883
  %900 = vst [vmem:[%s5 + $0x10] sm:$0xf] %v884
  %901 = vst [vmem:[%s5 + $0x14] sm:$0xf] %v885
  %902 = vst [vmem:[%s5 + $0x18] sm:$0xf] %v886
  %903 = vst [vmem:[%s5 + $0x1c] sm:$0xf] %v887
  %904 = vst [vmem:[%s5 + $0x20] sm:$0xf] %v888
  %905 = vst [vmem:[%s5 + $0x24] sm:$0xf] %v889
  %906 = vst [vmem:[%s5 + $0x28] sm:$0xf] %v890
  %907 = vst [vmem:[%s5 + $0x2c] sm:$0xf] %v891
  %908 = vst [vmem:[%s5 + $0x30] sm:$0xf] %v892
  %909 = vst [vmem:[%s5 + $0x34] sm:$0xf] %v893
  %910 = vst [vmem:[%s5 + $0x38] sm:$0xf] %v894
  %911 = vst [vmem:[%s5 + $0x3c] sm:$0xf] %v895
  // Predicated region
  $region22: #{_lambda_.33} parent=0 // pred_check
    _
  $region23: #{_lambda_.33} parent=0 // pred_check_branch
    %913 = sbr.rel (0) target = $region25
  $region24: #{_lambda_.33} parent=0 // pred_region
    _
  $region25: #{_lambda_.33} parent=0 // pred_fallthru
    _
  // Predicated region
  $region26: #{_lambda_.33} parent=0 // pred_check
    _
  $region27: #{_lambda_.33} parent=0 // pred_check_branch
    %915 = sbr.rel (0) target = $region29
  $region28: #{_lambda_.33} parent=0 // pred_region
    _
  $region29: #{_lambda_.33} parent=0 // pred_fallthru
    _

</llo_original>
